<compile_context>
chip_gen: v6e
topology: v6e:2x2x1
jax: 0.10.0
libtpu: 0.0.40
codegen_flags: <defaults>
</compile_context>

<pallas_src>
import functools

import numpy as np

import jax
import jax.numpy as jnp
from jax.experimental import pallas as pl
from jax.experimental.pallas import tpu as pltpu

_MXU_DTYPE = jnp.bfloat16
_CPAD = 8  # channel counts zero-padded to 8 -> im2col row blocks stay aligned


# ----------------------------------------------------------------------------
# Kernel
# ----------------------------------------------------------------------------
def _fused_cnn_kernel(x_ref, w1_ref, b1_ref, w2_ref, b2_ref, sel_ref,
                      wf1_ref, bf1_ref, wf2_ref, bf2_ref, wf3_ref, bf3_ref,
                      out_ref, im1_s, im2_s, *, width, ksize, cpad, lens):
    W, K, CP = width, ksize, cpad
    L1, L2, L3, L4 = lens  # dilated-grid lane extents of conv1/pool1/conv2/pool2

    x = x_ref[0]                                           # (CP, H*W)

    # ---- conv1: im2col (aligned 8-row blocks) + ONE MXU contraction ---------
    for idx in range(K * K):
        s = (idx // K) * W + (idx % K)
        im1_s[CP * idx:CP * (idx + 1), :] = x[:, s:s + L1]
    c1 = jnp.dot(w1_ref[...], im1_s[...], preferred_element_type=jnp.float32)
    c1 = jnp.maximum(c1 + b1_ref[...], 0.0)                # (CP, L1), pad rows = 0

    # ---- maxpool 2x2/2 (output stays on the dilated h*w grid), two passes ---
    t1 = jnp.maximum(c1[:, 0:L2 + W], c1[:, 1:L2 + W + 1])
    p1 = jnp.maximum(t1[:, 0:L2], t1[:, W:L2 + W]).astype(_MXU_DTYPE)  # (CP, L2)

    # ---- conv2 (pool1 grid spacing 2): im2col + ONE MXU contraction ---------
    for idx in range(K * K):
        s = 2 * ((idx // K) * W + (idx % K))
        im2_s[CP * idx:CP * (idx + 1), :] = p1[:, s:s + L3]
    c2 = jnp.dot(w2_ref[...], im2_s[...], preferred_element_type=jnp.float32)
    c2 = jnp.maximum(c2 + b2_ref[...], 0.0)                # (16, L3)

    # ---- maxpool 2x2/2 on the conv2 grid (offsets doubled), two passes ------
    t2 = jnp.maximum(c2[:, 0:L4 + 2 * W], c2[:, 2:L4 + 2 * W + 2])
    p2 = jnp.maximum(t2[:, 0:L4], t2[:, 2 * W:L4 + 2 * W]).astype(_MXU_DTYPE)

    # ---- flatten: gather the 25 valid pool2 columns with ONE selection matmul
    v = jnp.dot(p2, sel_ref[...], preferred_element_type=jnp.float32)  # (16, 25)
    vb = v.astype(_MXU_DTYPE)

    # ---- fc1 (+ReLU): contract (channel, position); features on lanes -------
    acc = None
    for c in range(wf1_ref.shape[0]):
        part = jnp.dot(vb[c:c + 1, :], wf1_ref[c],
                       preferred_element_type=jnp.float32)             # (1, 120)
        acc = part if acc is None else acc + part
    h = jnp.maximum(acc + bf1_ref[...], 0.0).astype(_MXU_DTYPE)

    # ---- fc2 (+ReLU), fc3 ----------------------------------------------------
    h = jnp.dot(h, wf2_ref[...], preferred_element_type=jnp.float32)
    h = jnp.maximum(h + bf2_ref[...], 0.0).astype(_MXU_DTYPE)          # (1, 84)
    out = jnp.dot(h, wf3_ref[...], preferred_element_type=jnp.float32)
    out_ref[0] = out + bf3_ref[...]                                    # (1, C)


# ----------------------------------------------------------------------------
# Host-side (one-time) parameter packing
# ----------------------------------------------------------------------------
def _pack_conv(w, oc_pad, ic_pad):
    """(OC,IC,KH,KW) torch conv weight -> (oc_pad, KH*KW*ic_pad) im2col weight."""
    oc, ic, kh, kw = w.shape
    out = np.zeros((oc_pad, kh * kw, ic_pad), np.float32)
    out[:oc, :, :ic] = np.asarray(w, np.float32).transpose(0, 2, 3, 1).reshape(
        oc, kh * kw, ic)
    return out.reshape(oc_pad, kh * kw * ic_pad)


def prepare_params(params, *, height=32, width=32):
    """Repack torch-layout params for the kernel.  Run once, outside the jit."""
    k = 5
    f32 = jnp.float32
    c1o = params["conv1_w"].shape[0]                   # 6
    c2o = params["conv2_w"].shape[0]                   # 16
    ph2 = (((height - k + 1) // 2) - k + 1) // 2       # 5
    l4 = 4 * (width + 1) * (ph2 - 1) + 1               # pool2 dilated lane extent

    b1 = np.zeros((_CPAD, 1), np.float32)
    b1[:c1o, 0] = np.asarray(params["conv1_b"], np.float32)

    # 0/1 matrix gathering the valid pool2 column (r, t) (dilated lane
    # 4*(W*r + t)) into flat position p = 5*r + t.
    sel = np.zeros((l4, ph2 * ph2), np.float32)
    for r in range(ph2):
        for t in range(ph2):
            sel[4 * (width * r + t), r * ph2 + t] = 1.0

    # fc1: torch's .view(-1, 400) flattens (16,5,5) as c*25 + (5r+t);
    # split into per-channel (25, 120) blocks.
    nf1 = params["fc1_w"].shape[0]
    wf1 = np.asarray(params["fc1_w"], np.float32).reshape(
        nf1, c2o, ph2 * ph2).transpose(1, 2, 0)        # (16, 25, 120)

    return {
        "w1": jnp.asarray(_pack_conv(params["conv1_w"], _CPAD, _CPAD), _MXU_DTYPE),
        "b1": jnp.asarray(b1, f32),
        "w2": jnp.asarray(_pack_conv(params["conv2_w"], c2o, _CPAD), _MXU_DTYPE),
        "b2": jnp.asarray(params["conv2_b"], f32).reshape(c2o, 1),
        "sel": jnp.asarray(sel, _MXU_DTYPE),
        "wf1": jnp.asarray(wf1, _MXU_DTYPE),
        "bf1": jnp.asarray(params["fc1_b"], f32).reshape(1, -1),
        "bf2": jnp.asarray(params["fc2_b"], f32).reshape(1, -1),
        "bf3": jnp.asarray(params["fc3_b"], f32).reshape(1, -1),
        "wf2": jnp.asarray(params["fc2_w"], f32).T.astype(_MXU_DTYPE),
        "wf3": jnp.asarray(params["fc3_w"], f32).T.astype(_MXU_DTYPE),
    }


# ----------------------------------------------------------------------------
# Forward wrapper
# ----------------------------------------------------------------------------
def cnn_forward(packed, x):
    """Forward pass matching CNN.forward for NCHW input x of shape (N, 3, 32, 32)."""
    n, cin, hh, ww = x.shape
    assert cin == 3 and hh == 32 and ww == 32, "architecture implies 3x32x32 input"
    k = 5
    hw = hh * ww
    oh1 = hh - k + 1           # 28  conv1 output h/w
    ph1 = oh1 // 2             # 14  pool1
    oh2 = ph1 - k + 1          # 10  conv2
    ph2 = oh2 // 2             # 5   pool2

    # Per-image dilated-grid lane extents: each stage only reads lanes the
    # previous stage wrote (the reaches telescope exactly).
    l1 = (ww + 1) * (oh1 - 1) + 1
    l2 = 2 * (ww + 1) * (ph1 - 1) + 1
    l3 = 2 * (ww + 1) * (oh2 - 1) + 1
    l4 = 4 * (ww + 1) * (ph2 - 1) + 1
    assert l1 + (k - 1) * (ww + 1) == hw               # conv1 reads stay in range
    assert l2 + (ww + 1) == l1                         # pool1 reads stay in range
    assert l3 + 2 * (k - 1) * (ww + 1) == l2           # conv2 reads stay in range
    assert l4 + 2 * (ww + 1) == l3                     # pool2 reads stay in range
    assert packed["sel"].shape[0] == l4

    num_classes = packed["wf3"].shape[1]

    # The only per-call host ops: channel-pad to 8 and flatten (h, w) onto lanes.
    xp = jnp.pad(x, ((0, 0), (0, _CPAD - cin), (0, 0), (0, 0)))
    x3 = xp.reshape(n, _CPAD, hw).astype(_MXU_DTYPE)

    operands = (x3, packed["w1"], packed["b1"], packed["w2"], packed["b2"],
                packed["sel"], packed["wf1"], packed["bf1"], packed["wf2"],
                packed["bf2"], packed["wf3"], packed["bf3"])

    def rep_spec(shape):
        zeros = (0,) * len(shape)
        return pl.BlockSpec(shape, lambda i, _z=zeros: _z)

    in_specs = [pl.BlockSpec((1, _CPAD, hw), lambda i: (i, 0, 0))]
    in_specs += [rep_spec(op.shape) for op in operands[1:]]

    kernel = functools.partial(_fused_cnn_kernel, width=ww, ksize=k,
                               cpad=_CPAD, lens=(l1, l2, l3, l4))

    out = pl.pallas_call(
        kernel,
        out_shape=jax.ShapeDtypeStruct((n, 1, num_classes), jnp.float32),
        grid=(n,),
        in_specs=in_specs,
        out_specs=pl.BlockSpec((1, 1, num_classes), lambda i: (i, 0, 0)),
        scratch_shapes=[
            pltpu.VMEM((k * k * _CPAD, l1), _MXU_DTYPE),   # conv1 im2col
            pltpu.VMEM((k * k * _CPAD, l3), _MXU_DTYPE),   # conv2 im2col
        ],
        compiler_params=pltpu.CompilerParams(
            dimension_semantics=("parallel",)),
    )(*operands)
    return out.reshape(n, num_classes)


# ----------------------------------------------------------------------------
# Synthetic params, pure-JAX reference, and smoke test
# ----------------------------------------------------------------------------
def init_params(key, num_classes=10):
    """Deterministic synthetic parameters in PyTorch layouts."""
    ks = jax.random.split(key, 10)

    def init(kk, shape, fan_in):
        return jax.random.normal(kk, shape, jnp.float32) / jnp.sqrt(float(fan_in))

    return {
        "conv1_w": init(ks[0], (6, 3, 5, 5), 3 * 25),
        "conv1_b": init(ks[1], (6,), 3 * 25),
        "conv2_w": init(ks[2], (16, 6, 5, 5), 6 * 25),
        "conv2_b": init(ks[3], (16,), 6 * 25),
        "fc1_w": init(ks[4], (120, 400), 400),
        "fc1_b": init(ks[5], (120,), 400),
        "fc2_w": init(ks[6], (84, 120), 120),
        "fc2_b": init(ks[7], (84,), 120),
        "fc3_w": init(ks[8], (num_classes, 84), 84),
        "fc3_b": init(ks[9], (num_classes,), 84),
    }


def _reference_forward(params, x):
    """Plain-XLA f32 reference of the torch module (for validation)."""
    f32 = jnp.float32

    def conv(z, w, b):
        out = jax.lax.conv_general_dilated(
            z, jnp.asarray(w, f32), window_strides=(1, 1), padding="VALID",
            dimension_numbers=("NCHW", "OIHW", "NCHW"))
        return out + jnp.asarray(b, f32).reshape(1, -1, 1, 1)

    def pool(z):
        return jax.lax.reduce_window(z, -jnp.inf, jax.lax.max,
                                     (1, 1, 2, 2), (1, 1, 2, 2), "VALID")

    z = x.astype(f32)
    z = pool(jax.nn.relu(conv(z, params["conv1_w"], params["conv1_b"])))
    z = pool(jax.nn.relu(conv(z, params["conv2_w"], params["conv2_b"])))
    z = z.reshape(z.shape[0], -1)
    z = jax.nn.relu(z @ params["fc1_w"].T + params["fc1_b"])
    z = jax.nn.relu(z @ params["fc2_w"].T + params["fc2_b"])
    return z @ params["fc3_w"].T + params["fc3_b"]


if __name__ == "__main__":
    root = jax.random.PRNGKey(0)
    pkey, xkey = jax.random.split(root)
    params = init_params(pkey, num_classes=10)
    packed = prepare_params(params)                 # host-side repack, once
    # 16*5*5 FC input after two conv(5)+pool(2) stages implies a 32x32 input.
    x = jax.random.normal(xkey, (2, 3, 32, 32), jnp.float32)

    logits = jax.jit(cnn_forward)(packed, x)
    jax.block_until_ready(logits)
    assert logits.shape == (2, 10) and logits.dtype == jnp.float32

    # Validate the dilated-grid indexing against the plain-XLA f32 reference
    # (bf16 MXU operands -> generous tolerance; catches gross indexing bugs).
    ref = _reference_forward(params, x)
    scale = float(jnp.max(jnp.abs(ref)))
    err = float(jnp.max(jnp.abs(logits - ref)))
    assert err <= 0.15 * max(1.0, scale), (
        f"kernel/reference mismatch: max abs err {err:.4f} (ref scale {scale:.3f})")
    print("KERNEL_OK")
</pallas_src>

<mosaic_0001>
module attributes {stable_mosaic.version = 11 : i64} {
  func.func @_fused_cnn_kernel(%arg0: i32, %arg1: memref<1x8x1024xbf16, #tpu.memory_space<vmem>>, %arg2: memref<8x200xbf16, #tpu.memory_space<vmem>>, %arg3: memref<8x1xf32, #tpu.memory_space<vmem>>, %arg4: memref<16x200xbf16, #tpu.memory_space<vmem>>, %arg5: memref<16x1xf32, #tpu.memory_space<vmem>>, %arg6: memref<529x25xbf16, #tpu.memory_space<vmem>>, %arg7: memref<16x25x120xbf16, #tpu.memory_space<vmem>>, %arg8: memref<1x120xf32, #tpu.memory_space<vmem>>, %arg9: memref<120x84xbf16, #tpu.memory_space<vmem>>, %arg10: memref<1x84xf32, #tpu.memory_space<vmem>>, %arg11: memref<84x10xbf16, #tpu.memory_space<vmem>>, %arg12: memref<1x10xf32, #tpu.memory_space<vmem>>, %arg13: memref<1x1x10xf32, #tpu.memory_space<vmem>>, %arg14: memref<200x892xbf16, #tpu.memory_space<vmem>>, %arg15: memref<200x595xbf16, #tpu.memory_space<vmem>>) attributes {dimension_semantics = [#tpu.dimension_semantics<parallel>], iteration_bounds = array<i64: 2>, scalar_prefetch = 0 : i64, scratch_operands = 2 : i64, tpu.core_type = #tpu.core_type<tc>, window_params = [{transform_indices = @transform_0, window_bounds = array<i64: 1, 8, 1024>}, {pipeline_mode = #tpu.pipeline_mode<synchronous>, transform_indices = @transform_1, window_bounds = array<i64: 8, 200>}, {pipeline_mode = #tpu.pipeline_mode<synchronous>, transform_indices = @transform_2, window_bounds = array<i64: 8, 1>}, {pipeline_mode = #tpu.pipeline_mode<synchronous>, transform_indices = @transform_3, window_bounds = array<i64: 16, 200>}, {pipeline_mode = #tpu.pipeline_mode<synchronous>, transform_indices = @transform_4, window_bounds = array<i64: 16, 1>}, {pipeline_mode = #tpu.pipeline_mode<synchronous>, transform_indices = @transform_5, window_bounds = array<i64: 529, 25>}, {pipeline_mode = #tpu.pipeline_mode<synchronous>, transform_indices = @transform_6, window_bounds = array<i64: 16, 25, 120>}, {pipeline_mode = #tpu.pipeline_mode<synchronous>, transform_indices = @transform_7, window_bounds = array<i64: 1, 120>}, {pipeline_mode = #tpu.pipeline_mode<synchronous>, transform_indices = @transform_8, window_bounds = array<i64: 120, 84>}, {pipeline_mode = #tpu.pipeline_mode<synchronous>, transform_indices = @transform_9, window_bounds = array<i64: 1, 84>}, {pipeline_mode = #tpu.pipeline_mode<synchronous>, transform_indices = @transform_10, window_bounds = array<i64: 84, 10>}, {pipeline_mode = #tpu.pipeline_mode<synchronous>, transform_indices = @transform_11, window_bounds = array<i64: 1, 10>}, {transform_indices = @transform_12, window_bounds = array<i64: 1, 1, 10>}]} {
    %c0 = arith.constant 0 : index
    %c0_0 = arith.constant 0 : index
    %c0_1 = arith.constant 0 : index
    %0 = vector.load %arg1[%c0, %c0_0, %c0_1] : memref<1x8x1024xbf16, #tpu.memory_space<vmem>>, vector<1x8x1024xbf16>
    %1 = vector.shape_cast %0 : vector<1x8x1024xbf16> to vector<8x1024xbf16>
    %2 = vector.extract_strided_slice %1 {offsets = [0, 0], sizes = [8, 892], strides = [1, 1]} : vector<8x1024xbf16> to vector<8x892xbf16>
    %c0_2 = arith.constant 0 : index
    %c0_3 = arith.constant 0 : index
    %3 = vector.load %arg14[%c0_2, %c0_3] : memref<200x892xbf16, #tpu.memory_space<vmem>>, vector<8x892xbf16>
    tpu.vector_store %arg14[%c0_2, %c0_3], %2 {strides = array<i32>} : memref<200x892xbf16, #tpu.memory_space<vmem>>, vector<8x892xbf16>,
    %4 = vector.extract_strided_slice %1 {offsets = [0, 1], sizes = [8, 892], strides = [1, 1]} : vector<8x1024xbf16> to vector<8x892xbf16>
    %c8 = arith.constant 8 : index
    %c0_4 = arith.constant 0 : index
    %5 = vector.load %arg14[%c8, %c0_4] : memref<200x892xbf16, #tpu.memory_space<vmem>>, vector<8x892xbf16>
    tpu.vector_store %arg14[%c8, %c0_4], %4 {strides = array<i32>} : memref<200x892xbf16, #tpu.memory_space<vmem>>, vector<8x892xbf16>,
    %6 = vector.extract_strided_slice %1 {offsets = [0, 2], sizes = [8, 892], strides = [1, 1]} : vector<8x1024xbf16> to vector<8x892xbf16>
    %c16 = arith.constant 16 : index
    %c0_5 = arith.constant 0 : index
    %7 = vector.load %arg14[%c16, %c0_5] : memref<200x892xbf16, #tpu.memory_space<vmem>>, vector<8x892xbf16>
    tpu.vector_store %arg14[%c16, %c0_5], %6 {strides = array<i32>} : memref<200x892xbf16, #tpu.memory_space<vmem>>, vector<8x892xbf16>,
    %8 = vector.extract_strided_slice %1 {offsets = [0, 3], sizes = [8, 892], strides = [1, 1]} : vector<8x1024xbf16> to vector<8x892xbf16>
    %c24 = arith.constant 24 : index
    %c0_6 = arith.constant 0 : index
    %9 = vector.load %arg14[%c24, %c0_6] : memref<200x892xbf16, #tpu.memory_space<vmem>>, vector<8x892xbf16>
    tpu.vector_store %arg14[%c24, %c0_6], %8 {strides = array<i32>} : memref<200x892xbf16, #tpu.memory_space<vmem>>, vector<8x892xbf16>,
    %10 = vector.extract_strided_slice %1 {offsets = [0, 4], sizes = [8, 892], strides = [1, 1]} : vector<8x1024xbf16> to vector<8x892xbf16>
    %c32 = arith.constant 32 : index
    %c0_7 = arith.constant 0 : index
    %11 = vector.load %arg14[%c32, %c0_7] : memref<200x892xbf16, #tpu.memory_space<vmem>>, vector<8x892xbf16>
    tpu.vector_store %arg14[%c32, %c0_7], %10 {strides = array<i32>} : memref<200x892xbf16, #tpu.memory_space<vmem>>, vector<8x892xbf16>,
    %12 = vector.extract_strided_slice %1 {offsets = [0, 32], sizes = [8, 892], strides = [1, 1]} : vector<8x1024xbf16> to vector<8x892xbf16>
    %c40 = arith.constant 40 : index
    %c0_8 = arith.constant 0 : index
    %13 = vector.load %arg14[%c40, %c0_8] : memref<200x892xbf16, #tpu.memory_space<vmem>>, vector<8x892xbf16>
    tpu.vector_store %arg14[%c40, %c0_8], %12 {strides = array<i32>} : memref<200x892xbf16, #tpu.memory_space<vmem>>, vector<8x892xbf16>,
    %14 = vector.extract_strided_slice %1 {offsets = [0, 33], sizes = [8, 892], strides = [1, 1]} : vector<8x1024xbf16> to vector<8x892xbf16>
    %c48 = arith.constant 48 : index
    %c0_9 = arith.constant 0 : index
    %15 = vector.load %arg14[%c48, %c0_9] : memref<200x892xbf16, #tpu.memory_space<vmem>>, vector<8x892xbf16>
    tpu.vector_store %arg14[%c48, %c0_9], %14 {strides = array<i32>} : memref<200x892xbf16, #tpu.memory_space<vmem>>, vector<8x892xbf16>,
    %16 = vector.extract_strided_slice %1 {offsets = [0, 34], sizes = [8, 892], strides = [1, 1]} : vector<8x1024xbf16> to vector<8x892xbf16>
    %c56 = arith.constant 56 : index
    %c0_10 = arith.constant 0 : index
    %17 = vector.load %arg14[%c56, %c0_10] : memref<200x892xbf16, #tpu.memory_space<vmem>>, vector<8x892xbf16>
    tpu.vector_store %arg14[%c56, %c0_10], %16 {strides = array<i32>} : memref<200x892xbf16, #tpu.memory_space<vmem>>, vector<8x892xbf16>,
    %18 = vector.extract_strided_slice %1 {offsets = [0, 35], sizes = [8, 892], strides = [1, 1]} : vector<8x1024xbf16> to vector<8x892xbf16>
    %c64 = arith.constant 64 : index
    %c0_11 = arith.constant 0 : index
    %19 = vector.load %arg14[%c64, %c0_11] : memref<200x892xbf16, #tpu.memory_space<vmem>>, vector<8x892xbf16>
    tpu.vector_store %arg14[%c64, %c0_11], %18 {strides = array<i32>} : memref<200x892xbf16, #tpu.memory_space<vmem>>, vector<8x892xbf16>,
    %20 = vector.extract_strided_slice %1 {offsets = [0, 36], sizes = [8, 892], strides = [1, 1]} : vector<8x1024xbf16> to vector<8x892xbf16>
    %c72 = arith.constant 72 : index
    %c0_12 = arith.constant 0 : index
    %21 = vector.load %arg14[%c72, %c0_12] : memref<200x892xbf16, #tpu.memory_space<vmem>>, vector<8x892xbf16>
    tpu.vector_store %arg14[%c72, %c0_12], %20 {strides = array<i32>} : memref<200x892xbf16, #tpu.memory_space<vmem>>, vector<8x892xbf16>,
    %22 = vector.extract_strided_slice %1 {offsets = [0, 64], sizes = [8, 892], strides = [1, 1]} : vector<8x1024xbf16> to vector<8x892xbf16>
    %c80 = arith.constant 80 : index
    %c0_13 = arith.constant 0 : index
    %23 = vector.load %arg14[%c80, %c0_13] : memref<200x892xbf16, #tpu.memory_space<vmem>>, vector<8x892xbf16>
    tpu.vector_store %arg14[%c80, %c0_13], %22 {strides = array<i32>} : memref<200x892xbf16, #tpu.memory_space<vmem>>, vector<8x892xbf16>,
    %24 = vector.extract_strided_slice %1 {offsets = [0, 65], sizes = [8, 892], strides = [1, 1]} : vector<8x1024xbf16> to vector<8x892xbf16>
    %c88 = arith.constant 88 : index
    %c0_14 = arith.constant 0 : index
    %25 = vector.load %arg14[%c88, %c0_14] : memref<200x892xbf16, #tpu.memory_space<vmem>>, vector<8x892xbf16>
    tpu.vector_store %arg14[%c88, %c0_14], %24 {strides = array<i32>} : memref<200x892xbf16, #tpu.memory_space<vmem>>, vector<8x892xbf16>,
    %26 = vector.extract_strided_slice %1 {offsets = [0, 66], sizes = [8, 892], strides = [1, 1]} : vector<8x1024xbf16> to vector<8x892xbf16>
    %c96 = arith.constant 96 : index
    %c0_15 = arith.constant 0 : index
    %27 = vector.load %arg14[%c96, %c0_15] : memref<200x892xbf16, #tpu.memory_space<vmem>>, vector<8x892xbf16>
    tpu.vector_store %arg14[%c96, %c0_15], %26 {strides = array<i32>} : memref<200x892xbf16, #tpu.memory_space<vmem>>, vector<8x892xbf16>,
    %28 = vector.extract_strided_slice %1 {offsets = [0, 67], sizes = [8, 892], strides = [1, 1]} : vector<8x1024xbf16> to vector<8x892xbf16>
    %c104 = arith.constant 104 : index
    %c0_16 = arith.constant 0 : index
    %29 = vector.load %arg14[%c104, %c0_16] : memref<200x892xbf16, #tpu.memory_space<vmem>>, vector<8x892xbf16>
    tpu.vector_store %arg14[%c104, %c0_16], %28 {strides = array<i32>} : memref<200x892xbf16, #tpu.memory_space<vmem>>, vector<8x892xbf16>,
    %30 = vector.extract_strided_slice %1 {offsets = [0, 68], sizes = [8, 892], strides = [1, 1]} : vector<8x1024xbf16> to vector<8x892xbf16>
    %c112 = arith.constant 112 : index
    %c0_17 = arith.constant 0 : index
    %31 = vector.load %arg14[%c112, %c0_17] : memref<200x892xbf16, #tpu.memory_space<vmem>>, vector<8x892xbf16>
    tpu.vector_store %arg14[%c112, %c0_17], %30 {strides = array<i32>} : memref<200x892xbf16, #tpu.memory_space<vmem>>, vector<8x892xbf16>,
    %32 = vector.extract_strided_slice %1 {offsets = [0, 96], sizes = [8, 892], strides = [1, 1]} : vector<8x1024xbf16> to vector<8x892xbf16>
    %c120 = arith.constant 120 : index
    %c0_18 = arith.constant 0 : index
    %33 = vector.load %arg14[%c120, %c0_18] : memref<200x892xbf16, #tpu.memory_space<vmem>>, vector<8x892xbf16>
    tpu.vector_store %arg14[%c120, %c0_18], %32 {strides = array<i32>} : memref<200x892xbf16, #tpu.memory_space<vmem>>, vector<8x892xbf16>,
    %34 = vector.extract_strided_slice %1 {offsets = [0, 97], sizes = [8, 892], strides = [1, 1]} : vector<8x1024xbf16> to vector<8x892xbf16>
    %c128 = arith.constant 128 : index
    %c0_19 = arith.constant 0 : index
    %35 = vector.load %arg14[%c128, %c0_19] : memref<200x892xbf16, #tpu.memory_space<vmem>>, vector<8x892xbf16>
    tpu.vector_store %arg14[%c128, %c0_19], %34 {strides = array<i32>} : memref<200x892xbf16, #tpu.memory_space<vmem>>, vector<8x892xbf16>,
    %36 = vector.extract_strided_slice %1 {offsets = [0, 98], sizes = [8, 892], strides = [1, 1]} : vector<8x1024xbf16> to vector<8x892xbf16>
    %c136 = arith.constant 136 : index
    %c0_20 = arith.constant 0 : index
    %37 = vector.load %arg14[%c136, %c0_20] : memref<200x892xbf16, #tpu.memory_space<vmem>>, vector<8x892xbf16>
    tpu.vector_store %arg14[%c136, %c0_20], %36 {strides = array<i32>} : memref<200x892xbf16, #tpu.memory_space<vmem>>, vector<8x892xbf16>,
    %38 = vector.extract_strided_slice %1 {offsets = [0, 99], sizes = [8, 892], strides = [1, 1]} : vector<8x1024xbf16> to vector<8x892xbf16>
    %c144 = arith.constant 144 : index
    %c0_21 = arith.constant 0 : index
    %39 = vector.load %arg14[%c144, %c0_21] : memref<200x892xbf16, #tpu.memory_space<vmem>>, vector<8x892xbf16>
    tpu.vector_store %arg14[%c144, %c0_21], %38 {strides = array<i32>} : memref<200x892xbf16, #tpu.memory_space<vmem>>, vector<8x892xbf16>,
    %40 = vector.extract_strided_slice %1 {offsets = [0, 100], sizes = [8, 892], strides = [1, 1]} : vector<8x1024xbf16> to vector<8x892xbf16>
    %c152 = arith.constant 152 : index
    %c0_22 = arith.constant 0 : index
    %41 = vector.load %arg14[%c152, %c0_22] : memref<200x892xbf16, #tpu.memory_space<vmem>>, vector<8x892xbf16>
    tpu.vector_store %arg14[%c152, %c0_22], %40 {strides = array<i32>} : memref<200x892xbf16, #tpu.memory_space<vmem>>, vector<8x892xbf16>,
    %42 = vector.extract_strided_slice %1 {offsets = [0, 128], sizes = [8, 892], strides = [1, 1]} : vector<8x1024xbf16> to vector<8x892xbf16>
    %c160 = arith.constant 160 : index
    %c0_23 = arith.constant 0 : index
    %43 = vector.load %arg14[%c160, %c0_23] : memref<200x892xbf16, #tpu.memory_space<vmem>>, vector<8x892xbf16>
    tpu.vector_store %arg14[%c160, %c0_23], %42 {strides = array<i32>} : memref<200x892xbf16, #tpu.memory_space<vmem>>, vector<8x892xbf16>,
    %44 = vector.extract_strided_slice %1 {offsets = [0, 129], sizes = [8, 892], strides = [1, 1]} : vector<8x1024xbf16> to vector<8x892xbf16>
    %c168 = arith.constant 168 : index
    %c0_24 = arith.constant 0 : index
    %45 = vector.load %arg14[%c168, %c0_24] : memref<200x892xbf16, #tpu.memory_space<vmem>>, vector<8x892xbf16>
    tpu.vector_store %arg14[%c168, %c0_24], %44 {strides = array<i32>} : memref<200x892xbf16, #tpu.memory_space<vmem>>, vector<8x892xbf16>,
    %46 = vector.extract_strided_slice %1 {offsets = [0, 130], sizes = [8, 892], strides = [1, 1]} : vector<8x1024xbf16> to vector<8x892xbf16>
    %c176 = arith.constant 176 : index
    %c0_25 = arith.constant 0 : index
    %47 = vector.load %arg14[%c176, %c0_25] : memref<200x892xbf16, #tpu.memory_space<vmem>>, vector<8x892xbf16>
    tpu.vector_store %arg14[%c176, %c0_25], %46 {strides = array<i32>} : memref<200x892xbf16, #tpu.memory_space<vmem>>, vector<8x892xbf16>,
    %48 = vector.extract_strided_slice %1 {offsets = [0, 131], sizes = [8, 892], strides = [1, 1]} : vector<8x1024xbf16> to vector<8x892xbf16>
    %c184 = arith.constant 184 : index
    %c0_26 = arith.constant 0 : index
    %49 = vector.load %arg14[%c184, %c0_26] : memref<200x892xbf16, #tpu.memory_space<vmem>>, vector<8x892xbf16>
    tpu.vector_store %arg14[%c184, %c0_26], %48 {strides = array<i32>} : memref<200x892xbf16, #tpu.memory_space<vmem>>, vector<8x892xbf16>,
    %50 = vector.extract_strided_slice %1 {offsets = [0, 132], sizes = [8, 892], strides = [1, 1]} : vector<8x1024xbf16> to vector<8x892xbf16>
    %c192 = arith.constant 192 : index
    %c0_27 = arith.constant 0 : index
    %51 = vector.load %arg14[%c192, %c0_27] : memref<200x892xbf16, #tpu.memory_space<vmem>>, vector<8x892xbf16>
    tpu.vector_store %arg14[%c192, %c0_27], %50 {strides = array<i32>} : memref<200x892xbf16, #tpu.memory_space<vmem>>, vector<8x892xbf16>,
    %c0_28 = arith.constant 0 : index
    %c0_29 = arith.constant 0 : index
    %52 = vector.load %arg2[%c0_28, %c0_29] : memref<8x200xbf16, #tpu.memory_space<vmem>>, vector<8x200xbf16>
    %c0_30 = arith.constant 0 : index
    %c0_31 = arith.constant 0 : index
    %53 = vector.load %arg14[%c0_30, %c0_31] : memref<200x892xbf16, #tpu.memory_space<vmem>>, vector<200x892xbf16>
    %cst = arith.constant dense<0.000000e+00> : vector<8x892xf32>
    %54 = tpu.matmul %52, %53, %cst {dimension_numbers = #tpu.dot_dimension_numbers<[1], [0], [0], [1], [0, 0, 1, 1], [], []>} : vector<8x200xbf16>, vector<200x892xbf16>, vector<8x892xf32> -> vector<8x892xf32>
    %c0_32 = arith.constant 0 : index
    %c0_33 = arith.constant 0 : index
    %55 = vector.load %arg3[%c0_32, %c0_33] : memref<8x1xf32, #tpu.memory_space<vmem>>, vector<8x1xf32>
    %56 = vector.broadcast %55 : vector<8x1xf32> to vector<8x892xf32>
    %57 = arith.addf %54, %56 : vector<8x892xf32>
    %cst_34 = arith.constant 0.000000e+00 : f32
    %58 = vector.broadcast %cst_34 : f32 to vector<8x892xf32>
    %59 = arith.maximumf %57, %58 : vector<8x892xf32>
    %60 = vector.extract_strided_slice %59 {offsets = [0, 0], sizes = [8, 891], strides = [1, 1]} : vector<8x892xf32> to vector<8x891xf32>
    %61 = vector.extract_strided_slice %59 {offsets = [0, 1], sizes = [8, 891], strides = [1, 1]} : vector<8x892xf32> to vector<8x891xf32>
    %62 = arith.maximumf %60, %61 : vector<8x891xf32>
    %63 = vector.extract_strided_slice %62 {offsets = [0, 0], sizes = [8, 859], strides = [1, 1]} : vector<8x891xf32> to vector<8x859xf32>
    %64 = vector.extract_strided_slice %62 {offsets = [0, 32], sizes = [8, 859], strides = [1, 1]} : vector<8x891xf32> to vector<8x859xf32>
    %65 = arith.maximumf %63, %64 : vector<8x859xf32>
    %66 = arith.truncf %65 : vector<8x859xf32> to vector<8x859xbf16>
    %67 = vector.extract_strided_slice %66 {offsets = [0, 0], sizes = [8, 595], strides = [1, 1]} : vector<8x859xbf16> to vector<8x595xbf16>
    %c0_35 = arith.constant 0 : index
    %c0_36 = arith.constant 0 : index
    %68 = vector.load %arg15[%c0_35, %c0_36] : memref<200x595xbf16, #tpu.memory_space<vmem>>, vector<8x595xbf16>
    tpu.vector_store %arg15[%c0_35, %c0_36], %67 {strides = array<i32>} : memref<200x595xbf16, #tpu.memory_space<vmem>>, vector<8x595xbf16>,
    %69 = vector.extract_strided_slice %66 {offsets = [0, 2], sizes = [8, 595], strides = [1, 1]} : vector<8x859xbf16> to vector<8x595xbf16>
    %c8_37 = arith.constant 8 : index
    %c0_38 = arith.constant 0 : index
    %70 = vector.load %arg15[%c8_37, %c0_38] : memref<200x595xbf16, #tpu.memory_space<vmem>>, vector<8x595xbf16>
    tpu.vector_store %arg15[%c8_37, %c0_38], %69 {strides = array<i32>} : memref<200x595xbf16, #tpu.memory_space<vmem>>, vector<8x595xbf16>,
    %71 = vector.extract_strided_slice %66 {offsets = [0, 4], sizes = [8, 595], strides = [1, 1]} : vector<8x859xbf16> to vector<8x595xbf16>
    %c16_39 = arith.constant 16 : index
    %c0_40 = arith.constant 0 : index
    %72 = vector.load %arg15[%c16_39, %c0_40] : memref<200x595xbf16, #tpu.memory_space<vmem>>, vector<8x595xbf16>
    tpu.vector_store %arg15[%c16_39, %c0_40], %71 {strides = array<i32>} : memref<200x595xbf16, #tpu.memory_space<vmem>>, vector<8x595xbf16>,
    %73 = vector.extract_strided_slice %66 {offsets = [0, 6], sizes = [8, 595], strides = [1, 1]} : vector<8x859xbf16> to vector<8x595xbf16>
    %c24_41 = arith.constant 24 : index
    %c0_42 = arith.constant 0 : index
    %74 = vector.load %arg15[%c24_41, %c0_42] : memref<200x595xbf16, #tpu.memory_space<vmem>>, vector<8x595xbf16>
    tpu.vector_store %arg15[%c24_41, %c0_42], %73 {strides = array<i32>} : memref<200x595xbf16, #tpu.memory_space<vmem>>, vector<8x595xbf16>,
    %75 = vector.extract_strided_slice %66 {offsets = [0, 8], sizes = [8, 595], strides = [1, 1]} : vector<8x859xbf16> to vector<8x595xbf16>
    %c32_43 = arith.constant 32 : index
    %c0_44 = arith.constant 0 : index
    %76 = vector.load %arg15[%c32_43, %c0_44] : memref<200x595xbf16, #tpu.memory_space<vmem>>, vector<8x595xbf16>
    tpu.vector_store %arg15[%c32_43, %c0_44], %75 {strides = array<i32>} : memref<200x595xbf16, #tpu.memory_space<vmem>>, vector<8x595xbf16>,
    %77 = vector.extract_strided_slice %66 {offsets = [0, 64], sizes = [8, 595], strides = [1, 1]} : vector<8x859xbf16> to vector<8x595xbf16>
    %c40_45 = arith.constant 40 : index
    %c0_46 = arith.constant 0 : index
    %78 = vector.load %arg15[%c40_45, %c0_46] : memref<200x595xbf16, #tpu.memory_space<vmem>>, vector<8x595xbf16>
    tpu.vector_store %arg15[%c40_45, %c0_46], %77 {strides = array<i32>} : memref<200x595xbf16, #tpu.memory_space<vmem>>, vector<8x595xbf16>,
    %79 = vector.extract_strided_slice %66 {offsets = [0, 66], sizes = [8, 595], strides = [1, 1]} : vector<8x859xbf16> to vector<8x595xbf16>
    %c48_47 = arith.constant 48 : index
    %c0_48 = arith.constant 0 : index
    %80 = vector.load %arg15[%c48_47, %c0_48] : memref<200x595xbf16, #tpu.memory_space<vmem>>, vector<8x595xbf16>
    tpu.vector_store %arg15[%c48_47, %c0_48], %79 {strides = array<i32>} : memref<200x595xbf16, #tpu.memory_space<vmem>>, vector<8x595xbf16>,
    %81 = vector.extract_strided_slice %66 {offsets = [0, 68], sizes = [8, 595], strides = [1, 1]} : vector<8x859xbf16> to vector<8x595xbf16>
    %c56_49 = arith.constant 56 : index
    %c0_50 = arith.constant 0 : index
    %82 = vector.load %arg15[%c56_49, %c0_50] : memref<200x595xbf16, #tpu.memory_space<vmem>>, vector<8x595xbf16>
    tpu.vector_store %arg15[%c56_49, %c0_50], %81 {strides = array<i32>} : memref<200x595xbf16, #tpu.memory_space<vmem>>, vector<8x595xbf16>,
    %83 = vector.extract_strided_slice %66 {offsets = [0, 70], sizes = [8, 595], strides = [1, 1]} : vector<8x859xbf16> to vector<8x595xbf16>
    %c64_51 = arith.constant 64 : index
    %c0_52 = arith.constant 0 : index
    %84 = vector.load %arg15[%c64_51, %c0_52] : memref<200x595xbf16, #tpu.memory_space<vmem>>, vector<8x595xbf16>
    tpu.vector_store %arg15[%c64_51, %c0_52], %83 {strides = array<i32>} : memref<200x595xbf16, #tpu.memory_space<vmem>>, vector<8x595xbf16>,
    %85 = vector.extract_strided_slice %66 {offsets = [0, 72], sizes = [8, 595], strides = [1, 1]} : vector<8x859xbf16> to vector<8x595xbf16>
    %c72_53 = arith.constant 72 : index
    %c0_54 = arith.constant 0 : index
    %86 = vector.load %arg15[%c72_53, %c0_54] : memref<200x595xbf16, #tpu.memory_space<vmem>>, vector<8x595xbf16>
    tpu.vector_store %arg15[%c72_53, %c0_54], %85 {strides = array<i32>} : memref<200x595xbf16, #tpu.memory_space<vmem>>, vector<8x595xbf16>,
    %87 = vector.extract_strided_slice %66 {offsets = [0, 128], sizes = [8, 595], strides = [1, 1]} : vector<8x859xbf16> to vector<8x595xbf16>
    %c80_55 = arith.constant 80 : index
    %c0_56 = arith.constant 0 : index
    %88 = vector.load %arg15[%c80_55, %c0_56] : memref<200x595xbf16, #tpu.memory_space<vmem>>, vector<8x595xbf16>
    tpu.vector_store %arg15[%c80_55, %c0_56], %87 {strides = array<i32>} : memref<200x595xbf16, #tpu.memory_space<vmem>>, vector<8x595xbf16>,
    %89 = vector.extract_strided_slice %66 {offsets = [0, 130], sizes = [8, 595], strides = [1, 1]} : vector<8x859xbf16> to vector<8x595xbf16>
    %c88_57 = arith.constant 88 : index
    %c0_58 = arith.constant 0 : index
    %90 = vector.load %arg15[%c88_57, %c0_58] : memref<200x595xbf16, #tpu.memory_space<vmem>>, vector<8x595xbf16>
    tpu.vector_store %arg15[%c88_57, %c0_58], %89 {strides = array<i32>} : memref<200x595xbf16, #tpu.memory_space<vmem>>, vector<8x595xbf16>,
    %91 = vector.extract_strided_slice %66 {offsets = [0, 132], sizes = [8, 595], strides = [1, 1]} : vector<8x859xbf16> to vector<8x595xbf16>
    %c96_59 = arith.constant 96 : index
    %c0_60 = arith.constant 0 : index
    %92 = vector.load %arg15[%c96_59, %c0_60] : memref<200x595xbf16, #tpu.memory_space<vmem>>, vector<8x595xbf16>
    tpu.vector_store %arg15[%c96_59, %c0_60], %91 {strides = array<i32>} : memref<200x595xbf16, #tpu.memory_space<vmem>>, vector<8x595xbf16>,
    %93 = vector.extract_strided_slice %66 {offsets = [0, 134], sizes = [8, 595], strides = [1, 1]} : vector<8x859xbf16> to vector<8x595xbf16>
    %c104_61 = arith.constant 104 : index
    %c0_62 = arith.constant 0 : index
    %94 = vector.load %arg15[%c104_61, %c0_62] : memref<200x595xbf16, #tpu.memory_space<vmem>>, vector<8x595xbf16>
    tpu.vector_store %arg15[%c104_61, %c0_62], %93 {strides = array<i32>} : memref<200x595xbf16, #tpu.memory_space<vmem>>, vector<8x595xbf16>,
    %95 = vector.extract_strided_slice %66 {offsets = [0, 136], sizes = [8, 595], strides = [1, 1]} : vector<8x859xbf16> to vector<8x595xbf16>
    %c112_63 = arith.constant 112 : index
    %c0_64 = arith.constant 0 : index
    %96 = vector.load %arg15[%c112_63, %c0_64] : memref<200x595xbf16, #tpu.memory_space<vmem>>, vector<8x595xbf16>
    tpu.vector_store %arg15[%c112_63, %c0_64], %95 {strides = array<i32>} : memref<200x595xbf16, #tpu.memory_space<vmem>>, vector<8x595xbf16>,
    %97 = vector.extract_strided_slice %66 {offsets = [0, 192], sizes = [8, 595], strides = [1, 1]} : vector<8x859xbf16> to vector<8x595xbf16>
    %c120_65 = arith.constant 120 : index
    %c0_66 = arith.constant 0 : index
    %98 = vector.load %arg15[%c120_65, %c0_66] : memref<200x595xbf16, #tpu.memory_space<vmem>>, vector<8x595xbf16>
    tpu.vector_store %arg15[%c120_65, %c0_66], %97 {strides = array<i32>} : memref<200x595xbf16, #tpu.memory_space<vmem>>, vector<8x595xbf16>,
    %99 = vector.extract_strided_slice %66 {offsets = [0, 194], sizes = [8, 595], strides = [1, 1]} : vector<8x859xbf16> to vector<8x595xbf16>
    %c128_67 = arith.constant 128 : index
    %c0_68 = arith.constant 0 : index
    %100 = vector.load %arg15[%c128_67, %c0_68] : memref<200x595xbf16, #tpu.memory_space<vmem>>, vector<8x595xbf16>
    tpu.vector_store %arg15[%c128_67, %c0_68], %99 {strides = array<i32>} : memref<200x595xbf16, #tpu.memory_space<vmem>>, vector<8x595xbf16>,
    %101 = vector.extract_strided_slice %66 {offsets = [0, 196], sizes = [8, 595], strides = [1, 1]} : vector<8x859xbf16> to vector<8x595xbf16>
    %c136_69 = arith.constant 136 : index
    %c0_70 = arith.constant 0 : index
    %102 = vector.load %arg15[%c136_69, %c0_70] : memref<200x595xbf16, #tpu.memory_space<vmem>>, vector<8x595xbf16>
    tpu.vector_store %arg15[%c136_69, %c0_70], %101 {strides = array<i32>} : memref<200x595xbf16, #tpu.memory_space<vmem>>, vector<8x595xbf16>,
    %103 = vector.extract_strided_slice %66 {offsets = [0, 198], sizes = [8, 595], strides = [1, 1]} : vector<8x859xbf16> to vector<8x595xbf16>
    %c144_71 = arith.constant 144 : index
    %c0_72 = arith.constant 0 : index
    %104 = vector.load %arg15[%c144_71, %c0_72] : memref<200x595xbf16, #tpu.memory_space<vmem>>, vector<8x595xbf16>
    tpu.vector_store %arg15[%c144_71, %c0_72], %103 {strides = array<i32>} : memref<200x595xbf16, #tpu.memory_space<vmem>>, vector<8x595xbf16>,
    %105 = vector.extract_strided_slice %66 {offsets = [0, 200], sizes = [8, 595], strides = [1, 1]} : vector<8x859xbf16> to vector<8x595xbf16>
    %c152_73 = arith.constant 152 : index
    %c0_74 = arith.constant 0 : index
    %106 = vector.load %arg15[%c152_73, %c0_74] : memref<200x595xbf16, #tpu.memory_space<vmem>>, vector<8x595xbf16>
    tpu.vector_store %arg15[%c152_73, %c0_74], %105 {strides = array<i32>} : memref<200x595xbf16, #tpu.memory_space<vmem>>, vector<8x595xbf16>,
    %107 = vector.extract_strided_slice %66 {offsets = [0, 256], sizes = [8, 595], strides = [1, 1]} : vector<8x859xbf16> to vector<8x595xbf16>
    %c160_75 = arith.constant 160 : index
    %c0_76 = arith.constant 0 : index
    %108 = vector.load %arg15[%c160_75, %c0_76] : memref<200x595xbf16, #tpu.memory_space<vmem>>, vector<8x595xbf16>
    tpu.vector_store %arg15[%c160_75, %c0_76], %107 {strides = array<i32>} : memref<200x595xbf16, #tpu.memory_space<vmem>>, vector<8x595xbf16>,
    %109 = vector.extract_strided_slice %66 {offsets = [0, 258], sizes = [8, 595], strides = [1, 1]} : vector<8x859xbf16> to vector<8x595xbf16>
    %c168_77 = arith.constant 168 : index
    %c0_78 = arith.constant 0 : index
    %110 = vector.load %arg15[%c168_77, %c0_78] : memref<200x595xbf16, #tpu.memory_space<vmem>>, vector<8x595xbf16>
    tpu.vector_store %arg15[%c168_77, %c0_78], %109 {strides = array<i32>} : memref<200x595xbf16, #tpu.memory_space<vmem>>, vector<8x595xbf16>,
    %111 = vector.extract_strided_slice %66 {offsets = [0, 260], sizes = [8, 595], strides = [1, 1]} : vector<8x859xbf16> to vector<8x595xbf16>
    %c176_79 = arith.constant 176 : index
    %c0_80 = arith.constant 0 : index
    %112 = vector.load %arg15[%c176_79, %c0_80] : memref<200x595xbf16, #tpu.memory_space<vmem>>, vector<8x595xbf16>
    tpu.vector_store %arg15[%c176_79, %c0_80], %111 {strides = array<i32>} : memref<200x595xbf16, #tpu.memory_space<vmem>>, vector<8x595xbf16>,
    %113 = vector.extract_strided_slice %66 {offsets = [0, 262], sizes = [8, 595], strides = [1, 1]} : vector<8x859xbf16> to vector<8x595xbf16>
    %c184_81 = arith.constant 184 : index
    %c0_82 = arith.constant 0 : index
    %114 = vector.load %arg15[%c184_81, %c0_82] : memref<200x595xbf16, #tpu.memory_space<vmem>>, vector<8x595xbf16>
    tpu.vector_store %arg15[%c184_81, %c0_82], %113 {strides = array<i32>} : memref<200x595xbf16, #tpu.memory_space<vmem>>, vector<8x595xbf16>,
    %115 = vector.extract_strided_slice %66 {offsets = [0, 264], sizes = [8, 595], strides = [1, 1]} : vector<8x859xbf16> to vector<8x595xbf16>
    %c192_83 = arith.constant 192 : index
    %c0_84 = arith.constant 0 : index
    %116 = vector.load %arg15[%c192_83, %c0_84] : memref<200x595xbf16, #tpu.memory_space<vmem>>, vector<8x595xbf16>
    tpu.vector_store %arg15[%c192_83, %c0_84], %115 {strides = array<i32>} : memref<200x595xbf16, #tpu.memory_space<vmem>>, vector<8x595xbf16>,
    %c0_85 = arith.constant 0 : index
    %c0_86 = arith.constant 0 : index
    %117 = vector.load %arg4[%c0_85, %c0_86] : memref<16x200xbf16, #tpu.memory_space<vmem>>, vector<16x200xbf16>
    %c0_87 = arith.constant 0 : index
    %c0_88 = arith.constant 0 : index
    %118 = vector.load %arg15[%c0_87, %c0_88] : memref<200x595xbf16, #tpu.memory_space<vmem>>, vector<200x595xbf16>
    %cst_89 = arith.constant dense<0.000000e+00> : vector<16x595xf32>
    %119 = tpu.matmul %117, %118, %cst_89 {dimension_numbers = #tpu.dot_dimension_numbers<[1], [0], [0], [1], [0, 0, 1, 1], [], []>} : vector<16x200xbf16>, vector<200x595xbf16>, vector<16x595xf32> -> vector<16x595xf32>
    %c0_90 = arith.constant 0 : index
    %c0_91 = arith.constant 0 : index
    %120 = vector.load %arg5[%c0_90, %c0_91] : memref<16x1xf32, #tpu.memory_space<vmem>>, vector<16x1xf32>
    %121 = vector.broadcast %120 : vector<16x1xf32> to vector<16x595xf32>
    %122 = arith.addf %119, %121 : vector<16x595xf32>
    %cst_92 = arith.constant 0.000000e+00 : f32
    %123 = vector.broadcast %cst_92 : f32 to vector<16x595xf32>
    %124 = arith.maximumf %122, %123 : vector<16x595xf32>
    %125 = vector.extract_strided_slice %124 {offsets = [0, 0], sizes = [16, 593], strides = [1, 1]} : vector<16x595xf32> to vector<16x593xf32>
    %126 = vector.extract_strided_slice %124 {offsets = [0, 2], sizes = [16, 593], strides = [1, 1]} : vector<16x595xf32> to vector<16x593xf32>
    %127 = arith.maximumf %125, %126 : vector<16x593xf32>
    %128 = vector.extract_strided_slice %127 {offsets = [0, 0], sizes = [16, 529], strides = [1, 1]} : vector<16x593xf32> to vector<16x529xf32>
    %129 = vector.extract_strided_slice %127 {offsets = [0, 64], sizes = [16, 529], strides = [1, 1]} : vector<16x593xf32> to vector<16x529xf32>
    %130 = arith.maximumf %128, %129 : vector<16x529xf32>
    %131 = arith.truncf %130 : vector<16x529xf32> to vector<16x529xbf16>
    %c0_93 = arith.constant 0 : index
    %c0_94 = arith.constant 0 : index
    %132 = vector.load %arg6[%c0_93, %c0_94] : memref<529x25xbf16, #tpu.memory_space<vmem>>, vector<529x25xbf16>
    %cst_95 = arith.constant dense<0.000000e+00> : vector<16x25xf32>
    %133 = tpu.matmul %131, %132, %cst_95 {dimension_numbers = #tpu.dot_dimension_numbers<[1], [0], [0], [1], [0, 0, 1, 1], [], []>} : vector<16x529xbf16>, vector<529x25xbf16>, vector<16x25xf32> -> vector<16x25xf32>
    %134 = arith.truncf %133 : vector<16x25xf32> to vector<16x25xbf16>
    %135 = vector.extract_strided_slice %134 {offsets = [0, 0], sizes = [1, 25], strides = [1, 1]} : vector<16x25xbf16> to vector<1x25xbf16>
    %c0_96 = arith.constant 0 : index
    %c0_97 = arith.constant 0 : index
    %c0_98 = arith.constant 0 : index
    %136 = vector.load %arg7[%c0_96, %c0_97, %c0_98] : memref<16x25x120xbf16, #tpu.memory_space<vmem>>, vector<1x25x120xbf16>
    %137 = vector.shape_cast %136 : vector<1x25x120xbf16> to vector<25x120xbf16>
    %cst_99 = arith.constant dense<0.000000e+00> : vector<1x120xf32>
    %138 = tpu.matmul %135, %137, %cst_99 {dimension_numbers = #tpu.dot_dimension_numbers<[1], [0], [0], [1], [0, 0, 1, 1], [], []>} : vector<1x25xbf16>, vector<25x120xbf16>, vector<1x120xf32> -> vector<1x120xf32>
    %139 = vector.extract_strided_slice %134 {offsets = [1, 0], sizes = [1, 25], strides = [1, 1]} : vector<16x25xbf16> to vector<1x25xbf16>
    %c1 = arith.constant 1 : index
    %c0_100 = arith.constant 0 : index
    %c0_101 = arith.constant 0 : index
    %140 = vector.load %arg7[%c1, %c0_100, %c0_101] : memref<16x25x120xbf16, #tpu.memory_space<vmem>>, vector<1x25x120xbf16>
    %141 = vector.shape_cast %140 : vector<1x25x120xbf16> to vector<25x120xbf16>
    %cst_102 = arith.constant dense<0.000000e+00> : vector<1x120xf32>
    %142 = tpu.matmul %139, %141, %cst_102 {dimension_numbers = #tpu.dot_dimension_numbers<[1], [0], [0], [1], [0, 0, 1, 1], [], []>} : vector<1x25xbf16>, vector<25x120xbf16>, vector<1x120xf32> -> vector<1x120xf32>
    %143 = arith.addf %138, %142 : vector<1x120xf32>
    %144 = vector.extract_strided_slice %134 {offsets = [2, 0], sizes = [1, 25], strides = [1, 1]} : vector<16x25xbf16> to vector<1x25xbf16>
    %c2 = arith.constant 2 : index
    %c0_103 = arith.constant 0 : index
    %c0_104 = arith.constant 0 : index
    %145 = vector.load %arg7[%c2, %c0_103, %c0_104] : memref<16x25x120xbf16, #tpu.memory_space<vmem>>, vector<1x25x120xbf16>
    %146 = vector.shape_cast %145 : vector<1x25x120xbf16> to vector<25x120xbf16>
    %cst_105 = arith.constant dense<0.000000e+00> : vector<1x120xf32>
    %147 = tpu.matmul %144, %146, %cst_105 {dimension_numbers = #tpu.dot_dimension_numbers<[1], [0], [0], [1], [0, 0, 1, 1], [], []>} : vector<1x25xbf16>, vector<25x120xbf16>, vector<1x120xf32> -> vector<1x120xf32>
    %148 = arith.addf %143, %147 : vector<1x120xf32>
    %149 = vector.extract_strided_slice %134 {offsets = [3, 0], sizes = [1, 25], strides = [1, 1]} : vector<16x25xbf16> to vector<1x25xbf16>
    %c3 = arith.constant 3 : index
    %c0_106 = arith.constant 0 : index
    %c0_107 = arith.constant 0 : index
    %150 = vector.load %arg7[%c3, %c0_106, %c0_107] : memref<16x25x120xbf16, #tpu.memory_space<vmem>>, vector<1x25x120xbf16>
    %151 = vector.shape_cast %150 : vector<1x25x120xbf16> to vector<25x120xbf16>
    %cst_108 = arith.constant dense<0.000000e+00> : vector<1x120xf32>
    %152 = tpu.matmul %149, %151, %cst_108 {dimension_numbers = #tpu.dot_dimension_numbers<[1], [0], [0], [1], [0, 0, 1, 1], [], []>} : vector<1x25xbf16>, vector<25x120xbf16>, vector<1x120xf32> -> vector<1x120xf32>
    %153 = arith.addf %148, %152 : vector<1x120xf32>
    %154 = vector.extract_strided_slice %134 {offsets = [4, 0], sizes = [1, 25], strides = [1, 1]} : vector<16x25xbf16> to vector<1x25xbf16>
    %c4 = arith.constant 4 : index
    %c0_109 = arith.constant 0 : index
    %c0_110 = arith.constant 0 : index
    %155 = vector.load %arg7[%c4, %c0_109, %c0_110] : memref<16x25x120xbf16, #tpu.memory_space<vmem>>, vector<1x25x120xbf16>
    %156 = vector.shape_cast %155 : vector<1x25x120xbf16> to vector<25x120xbf16>
    %cst_111 = arith.constant dense<0.000000e+00> : vector<1x120xf32>
    %157 = tpu.matmul %154, %156, %cst_111 {dimension_numbers = #tpu.dot_dimension_numbers<[1], [0], [0], [1], [0, 0, 1, 1], [], []>} : vector<1x25xbf16>, vector<25x120xbf16>, vector<1x120xf32> -> vector<1x120xf32>
    %158 = arith.addf %153, %157 : vector<1x120xf32>
    %159 = vector.extract_strided_slice %134 {offsets = [5, 0], sizes = [1, 25], strides = [1, 1]} : vector<16x25xbf16> to vector<1x25xbf16>
    %c5 = arith.constant 5 : index
    %c0_112 = arith.constant 0 : index
    %c0_113 = arith.constant 0 : index
    %160 = vector.load %arg7[%c5, %c0_112, %c0_113] : memref<16x25x120xbf16, #tpu.memory_space<vmem>>, vector<1x25x120xbf16>
    %161 = vector.shape_cast %160 : vector<1x25x120xbf16> to vector<25x120xbf16>
    %cst_114 = arith.constant dense<0.000000e+00> : vector<1x120xf32>
    %162 = tpu.matmul %159, %161, %cst_114 {dimension_numbers = #tpu.dot_dimension_numbers<[1], [0], [0], [1], [0, 0, 1, 1], [], []>} : vector<1x25xbf16>, vector<25x120xbf16>, vector<1x120xf32> -> vector<1x120xf32>
    %163 = arith.addf %158, %162 : vector<1x120xf32>
    %164 = vector.extract_strided_slice %134 {offsets = [6, 0], sizes = [1, 25], strides = [1, 1]} : vector<16x25xbf16> to vector<1x25xbf16>
    %c6 = arith.constant 6 : index
    %c0_115 = arith.constant 0 : index
    %c0_116 = arith.constant 0 : index
    %165 = vector.load %arg7[%c6, %c0_115, %c0_116] : memref<16x25x120xbf16, #tpu.memory_space<vmem>>, vector<1x25x120xbf16>
    %166 = vector.shape_cast %165 : vector<1x25x120xbf16> to vector<25x120xbf16>
    %cst_117 = arith.constant dense<0.000000e+00> : vector<1x120xf32>
    %167 = tpu.matmul %164, %166, %cst_117 {dimension_numbers = #tpu.dot_dimension_numbers<[1], [0], [0], [1], [0, 0, 1, 1], [], []>} : vector<1x25xbf16>, vector<25x120xbf16>, vector<1x120xf32> -> vector<1x120xf32>
    %168 = arith.addf %163, %167 : vector<1x120xf32>
    %169 = vector.extract_strided_slice %134 {offsets = [7, 0], sizes = [1, 25], strides = [1, 1]} : vector<16x25xbf16> to vector<1x25xbf16>
    %c7 = arith.constant 7 : index
    %c0_118 = arith.constant 0 : index
    %c0_119 = arith.constant 0 : index
    %170 = vector.load %arg7[%c7, %c0_118, %c0_119] : memref<16x25x120xbf16, #tpu.memory_space<vmem>>, vector<1x25x120xbf16>
    %171 = vector.shape_cast %170 : vector<1x25x120xbf16> to vector<25x120xbf16>
    %cst_120 = arith.constant dense<0.000000e+00> : vector<1x120xf32>
    %172 = tpu.matmul %169, %171, %cst_120 {dimension_numbers = #tpu.dot_dimension_numbers<[1], [0], [0], [1], [0, 0, 1, 1], [], []>} : vector<1x25xbf16>, vector<25x120xbf16>, vector<1x120xf32> -> vector<1x120xf32>
    %173 = arith.addf %168, %172 : vector<1x120xf32>
    %174 = vector.extract_strided_slice %134 {offsets = [8, 0], sizes = [1, 25], strides = [1, 1]} : vector<16x25xbf16> to vector<1x25xbf16>
    %c8_121 = arith.constant 8 : index
    %c0_122 = arith.constant 0 : index
    %c0_123 = arith.constant 0 : index
    %175 = vector.load %arg7[%c8_121, %c0_122, %c0_123] : memref<16x25x120xbf16, #tpu.memory_space<vmem>>, vector<1x25x120xbf16>
    %176 = vector.shape_cast %175 : vector<1x25x120xbf16> to vector<25x120xbf16>
    %cst_124 = arith.constant dense<0.000000e+00> : vector<1x120xf32>
    %177 = tpu.matmul %174, %176, %cst_124 {dimension_numbers = #tpu.dot_dimension_numbers<[1], [0], [0], [1], [0, 0, 1, 1], [], []>} : vector<1x25xbf16>, vector<25x120xbf16>, vector<1x120xf32> -> vector<1x120xf32>
    %178 = arith.addf %173, %177 : vector<1x120xf32>
    %179 = vector.extract_strided_slice %134 {offsets = [9, 0], sizes = [1, 25], strides = [1, 1]} : vector<16x25xbf16> to vector<1x25xbf16>
    %c9 = arith.constant 9 : index
    %c0_125 = arith.constant 0 : index
    %c0_126 = arith.constant 0 : index
    %180 = vector.load %arg7[%c9, %c0_125, %c0_126] : memref<16x25x120xbf16, #tpu.memory_space<vmem>>, vector<1x25x120xbf16>
    %181 = vector.shape_cast %180 : vector<1x25x120xbf16> to vector<25x120xbf16>
    %cst_127 = arith.constant dense<0.000000e+00> : vector<1x120xf32>
    %182 = tpu.matmul %179, %181, %cst_127 {dimension_numbers = #tpu.dot_dimension_numbers<[1], [0], [0], [1], [0, 0, 1, 1], [], []>} : vector<1x25xbf16>, vector<25x120xbf16>, vector<1x120xf32> -> vector<1x120xf32>
    %183 = arith.addf %178, %182 : vector<1x120xf32>
    %184 = vector.extract_strided_slice %134 {offsets = [10, 0], sizes = [1, 25], strides = [1, 1]} : vector<16x25xbf16> to vector<1x25xbf16>
    %c10 = arith.constant 10 : index
    %c0_128 = arith.constant 0 : index
    %c0_129 = arith.constant 0 : index
    %185 = vector.load %arg7[%c10, %c0_128, %c0_129] : memref<16x25x120xbf16, #tpu.memory_space<vmem>>, vector<1x25x120xbf16>
    %186 = vector.shape_cast %185 : vector<1x25x120xbf16> to vector<25x120xbf16>
    %cst_130 = arith.constant dense<0.000000e+00> : vector<1x120xf32>
    %187 = tpu.matmul %184, %186, %cst_130 {dimension_numbers = #tpu.dot_dimension_numbers<[1], [0], [0], [1], [0, 0, 1, 1], [], []>} : vector<1x25xbf16>, vector<25x120xbf16>, vector<1x120xf32> -> vector<1x120xf32>
    %188 = arith.addf %183, %187 : vector<1x120xf32>
    %189 = vector.extract_strided_slice %134 {offsets = [11, 0], sizes = [1, 25], strides = [1, 1]} : vector<16x25xbf16> to vector<1x25xbf16>
    %c11 = arith.constant 11 : index
    %c0_131 = arith.constant 0 : index
    %c0_132 = arith.constant 0 : index
    %190 = vector.load %arg7[%c11, %c0_131, %c0_132] : memref<16x25x120xbf16, #tpu.memory_space<vmem>>, vector<1x25x120xbf16>
    %191 = vector.shape_cast %190 : vector<1x25x120xbf16> to vector<25x120xbf16>
    %cst_133 = arith.constant dense<0.000000e+00> : vector<1x120xf32>
    %192 = tpu.matmul %189, %191, %cst_133 {dimension_numbers = #tpu.dot_dimension_numbers<[1], [0], [0], [1], [0, 0, 1, 1], [], []>} : vector<1x25xbf16>, vector<25x120xbf16>, vector<1x120xf32> -> vector<1x120xf32>
    %193 = arith.addf %188, %192 : vector<1x120xf32>
    %194 = vector.extract_strided_slice %134 {offsets = [12, 0], sizes = [1, 25], strides = [1, 1]} : vector<16x25xbf16> to vector<1x25xbf16>
    %c12 = arith.constant 12 : index
    %c0_134 = arith.constant 0 : index
    %c0_135 = arith.constant 0 : index
    %195 = vector.load %arg7[%c12, %c0_134, %c0_135] : memref<16x25x120xbf16, #tpu.memory_space<vmem>>, vector<1x25x120xbf16>
    %196 = vector.shape_cast %195 : vector<1x25x120xbf16> to vector<25x120xbf16>
    %cst_136 = arith.constant dense<0.000000e+00> : vector<1x120xf32>
    %197 = tpu.matmul %194, %196, %cst_136 {dimension_numbers = #tpu.dot_dimension_numbers<[1], [0], [0], [1], [0, 0, 1, 1], [], []>} : vector<1x25xbf16>, vector<25x120xbf16>, vector<1x120xf32> -> vector<1x120xf32>
    %198 = arith.addf %193, %197 : vector<1x120xf32>
    %199 = vector.extract_strided_slice %134 {offsets = [13, 0], sizes = [1, 25], strides = [1, 1]} : vector<16x25xbf16> to vector<1x25xbf16>
    %c13 = arith.constant 13 : index
    %c0_137 = arith.constant 0 : index
    %c0_138 = arith.constant 0 : index
    %200 = vector.load %arg7[%c13, %c0_137, %c0_138] : memref<16x25x120xbf16, #tpu.memory_space<vmem>>, vector<1x25x120xbf16>
    %201 = vector.shape_cast %200 : vector<1x25x120xbf16> to vector<25x120xbf16>
    %cst_139 = arith.constant dense<0.000000e+00> : vector<1x120xf32>
    %202 = tpu.matmul %199, %201, %cst_139 {dimension_numbers = #tpu.dot_dimension_numbers<[1], [0], [0], [1], [0, 0, 1, 1], [], []>} : vector<1x25xbf16>, vector<25x120xbf16>, vector<1x120xf32> -> vector<1x120xf32>
    %203 = arith.addf %198, %202 : vector<1x120xf32>
    %204 = vector.extract_strided_slice %134 {offsets = [14, 0], sizes = [1, 25], strides = [1, 1]} : vector<16x25xbf16> to vector<1x25xbf16>
    %c14 = arith.constant 14 : index
    %c0_140 = arith.constant 0 : index
    %c0_141 = arith.constant 0 : index
    %205 = vector.load %arg7[%c14, %c0_140, %c0_141] : memref<16x25x120xbf16, #tpu.memory_space<vmem>>, vector<1x25x120xbf16>
    %206 = vector.shape_cast %205 : vector<1x25x120xbf16> to vector<25x120xbf16>
    %cst_142 = arith.constant dense<0.000000e+00> : vector<1x120xf32>
    %207 = tpu.matmul %204, %206, %cst_142 {dimension_numbers = #tpu.dot_dimension_numbers<[1], [0], [0], [1], [0, 0, 1, 1], [], []>} : vector<1x25xbf16>, vector<25x120xbf16>, vector<1x120xf32> -> vector<1x120xf32>
    %208 = arith.addf %203, %207 : vector<1x120xf32>
    %209 = vector.extract_strided_slice %134 {offsets = [15, 0], sizes = [1, 25], strides = [1, 1]} : vector<16x25xbf16> to vector<1x25xbf16>
    %c15 = arith.constant 15 : index
    %c0_143 = arith.constant 0 : index
    %c0_144 = arith.constant 0 : index
    %210 = vector.load %arg7[%c15, %c0_143, %c0_144] : memref<16x25x120xbf16, #tpu.memory_space<vmem>>, vector<1x25x120xbf16>
    %211 = vector.shape_cast %210 : vector<1x25x120xbf16> to vector<25x120xbf16>
    %cst_145 = arith.constant dense<0.000000e+00> : vector<1x120xf32>
    %212 = tpu.matmul %209, %211, %cst_145 {dimension_numbers = #tpu.dot_dimension_numbers<[1], [0], [0], [1], [0, 0, 1, 1], [], []>} : vector<1x25xbf16>, vector<25x120xbf16>, vector<1x120xf32> -> vector<1x120xf32>
    %213 = arith.addf %208, %212 : vector<1x120xf32>
    %c0_146 = arith.constant 0 : index
    %c0_147 = arith.constant 0 : index
    %214 = vector.load %arg8[%c0_146, %c0_147] : memref<1x120xf32, #tpu.memory_space<vmem>>, vector<1x120xf32>
    %215 = arith.addf %213, %214 : vector<1x120xf32>
    %cst_148 = arith.constant 0.000000e+00 : f32
    %216 = vector.broadcast %cst_148 : f32 to vector<1x120xf32>
    %217 = arith.maximumf %215, %216 : vector<1x120xf32>
    %218 = arith.truncf %217 : vector<1x120xf32> to vector<1x120xbf16>
    %c0_149 = arith.constant 0 : index
    %c0_150 = arith.constant 0 : index
    %219 = vector.load %arg9[%c0_149, %c0_150] : memref<120x84xbf16, #tpu.memory_space<vmem>>, vector<120x84xbf16>
    %cst_151 = arith.constant dense<0.000000e+00> : vector<1x84xf32>
    %220 = tpu.matmul %218, %219, %cst_151 {dimension_numbers = #tpu.dot_dimension_numbers<[1], [0], [0], [1], [0, 0, 1, 1], [], []>} : vector<1x120xbf16>, vector<120x84xbf16>, vector<1x84xf32> -> vector<1x84xf32>
    %c0_152 = arith.constant 0 : index
    %c0_153 = arith.constant 0 : index
    %221 = vector.load %arg10[%c0_152, %c0_153] : memref<1x84xf32, #tpu.memory_space<vmem>>, vector<1x84xf32>
    %222 = arith.addf %220, %221 : vector<1x84xf32>
    %cst_154 = arith.constant 0.000000e+00 : f32
    %223 = vector.broadcast %cst_154 : f32 to vector<1x84xf32>
    %224 = arith.maximumf %222, %223 : vector<1x84xf32>
    %225 = arith.truncf %224 : vector<1x84xf32> to vector<1x84xbf16>
    %c0_155 = arith.constant 0 : index
    %c0_156 = arith.constant 0 : index
    %226 = vector.load %arg11[%c0_155, %c0_156] : memref<84x10xbf16, #tpu.memory_space<vmem>>, vector<84x10xbf16>
    %cst_157 = arith.constant dense<0.000000e+00> : vector<1x10xf32>
    %227 = tpu.matmul %225, %226, %cst_157 {dimension_numbers = #tpu.dot_dimension_numbers<[1], [0], [0], [1], [0, 0, 1, 1], [], []>} : vector<1x84xbf16>, vector<84x10xbf16>, vector<1x10xf32> -> vector<1x10xf32>
    %c0_158 = arith.constant 0 : index
    %c0_159 = arith.constant 0 : index
    %228 = vector.load %arg12[%c0_158, %c0_159] : memref<1x10xf32, #tpu.memory_space<vmem>>, vector<1x10xf32>
    %229 = arith.addf %227, %228 : vector<1x10xf32>
    %c0_160 = arith.constant 0 : index
    %c0_161 = arith.constant 0 : index
    %c0_162 = arith.constant 0 : index
    %230 = vector.load %arg13[%c0_160, %c0_161, %c0_162] : memref<1x1x10xf32, #tpu.memory_space<vmem>>, vector<1x1x10xf32>
    %231 = vector.shape_cast %230 : vector<1x1x10xf32> to vector<1x10xf32>
    %232 = vector.shape_cast %229 : vector<1x10xf32> to vector<1x1x10xf32>
    tpu.vector_store %arg13[%c0_160, %c0_161, %c0_162], %232 {strides = array<i32>} : memref<1x1x10xf32, #tpu.memory_space<vmem>>, vector<1x1x10xf32>,
    return
  }
  func.func @transform_0(%arg0: i32) -> (i32, i32, i32) {
    %c0_i32 = arith.constant 0 : i32
    %c0_i32_0 = arith.constant 0 : i32
    %c0_i32_1 = arith.constant 0 : i32
    return %arg0, %c0_i32, %c0_i32_0 : i32, i32, i32
  }
  func.func @transform_1(%arg0: i32) -> (i32, i32) {
    %c0_i32 = arith.constant 0 : i32
    %c0_i32_0 = arith.constant 0 : i32
    %c0_i32_1 = arith.constant 0 : i32
    return %c0_i32, %c0_i32_0 : i32, i32
  }
  func.func @transform_2(%arg0: i32) -> (i32, i32) {
    %c0_i32 = arith.constant 0 : i32
    %c0_i32_0 = arith.constant 0 : i32
    %c0_i32_1 = arith.constant 0 : i32
    return %c0_i32, %c0_i32_0 : i32, i32
  }
  func.func @transform_3(%arg0: i32) -> (i32, i32) {
    %c0_i32 = arith.constant 0 : i32
    %c0_i32_0 = arith.constant 0 : i32
    %c0_i32_1 = arith.constant 0 : i32
    return %c0_i32, %c0_i32_0 : i32, i32
  }
  func.func @transform_4(%arg0: i32) -> (i32, i32) {
    %c0_i32 = arith.constant 0 : i32
    %c0_i32_0 = arith.constant 0 : i32
    %c0_i32_1 = arith.constant 0 : i32
    return %c0_i32, %c0_i32_0 : i32, i32
  }
  func.func @transform_5(%arg0: i32) -> (i32, i32) {
    %c0_i32 = arith.constant 0 : i32
    %c0_i32_0 = arith.constant 0 : i32
    %c0_i32_1 = arith.constant 0 : i32
    return %c0_i32, %c0_i32_0 : i32, i32
  }
  func.func @transform_6(%arg0: i32) -> (i32, i32, i32) {
    %c0_i32 = arith.constant 0 : i32
    %c0_i32_0 = arith.constant 0 : i32
    %c0_i32_1 = arith.constant 0 : i32
    %c0_i32_2 = arith.constant 0 : i32
    return %c0_i32, %c0_i32_0, %c0_i32_1 : i32, i32, i32
  }
  func.func @transform_7(%arg0: i32) -> (i32, i32) {
    %c0_i32 = arith.constant 0 : i32
    %c0_i32_0 = arith.constant 0 : i32
    %c0_i32_1 = arith.constant 0 : i32
    return %c0_i32, %c0_i32_0 : i32, i32
  }
  func.func @transform_8(%arg0: i32) -> (i32, i32) {
    %c0_i32 = arith.constant 0 : i32
    %c0_i32_0 = arith.constant 0 : i32
    %c0_i32_1 = arith.constant 0 : i32
    return %c0_i32, %c0_i32_0 : i32, i32
  }
  func.func @transform_9(%arg0: i32) -> (i32, i32) {
    %c0_i32 = arith.constant 0 : i32
    %c0_i32_0 = arith.constant 0 : i32
    %c0_i32_1 = arith.constant 0 : i32
    return %c0_i32, %c0_i32_0 : i32, i32
  }
  func.func @transform_10(%arg0: i32) -> (i32, i32) {
    %c0_i32 = arith.constant 0 : i32
    %c0_i32_0 = arith.constant 0 : i32
    %c0_i32_1 = arith.constant 0 : i32
    return %c0_i32, %c0_i32_0 : i32, i32
  }
  func.func @transform_11(%arg0: i32) -> (i32, i32) {
    %c0_i32 = arith.constant 0 : i32
    %c0_i32_0 = arith.constant 0 : i32
    %c0_i32_1 = arith.constant 0 : i32
    return %c0_i32, %c0_i32_0 : i32, i32
  }
  func.func @transform_12(%arg0: i32) -> (i32, i32, i32) {
    %c0_i32 = arith.constant 0 : i32
    %c0_i32_0 = arith.constant 0 : i32
    %c0_i32_1 = arith.constant 0 : i32
    return %arg0, %c0_i32, %c0_i32_0 : i32, i32, i32
  }
}

</mosaic_0001>

<llo_original>
// kernel: cnn_forward.1
$region0: #{cnn_forward.1}
  #allocation0 [shape = 'u32[]', space=smem, size = 0x4, offset = 0x4, fixed_abs, tag = 'smem constant byte address 0x4 - core index']
  #allocation1 [shape = 'u32[144,128]{1,0:T(1,128)}', space=vmem, size = 0x12000, scoped, tag = 'internal scratch']
  #allocation2 [shape = 'bf16[200,892]{1,0:T(8,128)(2,1)}', space=vmem, size = 0x57800, scoped, tag = 'scratch operand']
  #allocation3 [shape = 'bf16[200,595]{1,0:T(8,128)(2,1)}', space=vmem, size = 0x3e800, scoped, tag = 'scratch operand']
  %s0 = inlined_call_operand.vmem [shape: bf16[2,8,1024], index: 0, kind: input, shape index: {}]
  %s1 = inlined_call_operand.vmem [shape: bf16[8,200], index: 1, kind: input, shape index: {}]
  %s2 = inlined_call_operand.vmem [shape: f32[8,1], index: 2, kind: input, shape index: {}]
  %s3 = inlined_call_operand.vmem [shape: bf16[16,200], index: 3, kind: input, shape index: {}]
  %s4 = inlined_call_operand.vmem [shape: f32[16,1], index: 4, kind: input, shape index: {}]
  %s5 = inlined_call_operand.vmem [shape: bf16[529,25], index: 5, kind: input, shape index: {}]
  %s6 = inlined_call_operand.vmem [shape: bf16[16,25,120], index: 6, kind: input, shape index: {}]
  %s7 = inlined_call_operand.vmem [shape: f32[1,120], index: 7, kind: input, shape index: {}]
  %s8 = inlined_call_operand.vmem [shape: bf16[120,84], index: 8, kind: input, shape index: {}]
  %s9 = inlined_call_operand.vmem [shape: f32[1,84], index: 9, kind: input, shape index: {}]
  %s10 = inlined_call_operand.vmem [shape: bf16[84,10], index: 10, kind: input, shape index: {}]
  %s11 = inlined_call_operand.vmem [shape: f32[1,10], index: 11, kind: input, shape index: {}]
  %s12 = inlined_call_operand.hbm [shape: f32[2,1,10], index: 12, kind: output, shape index: {}]
  %s13 = sld [smem:[#allocation0]]
  $region81: #{cnn_forward.1} parent=0
    _
  %s15 = ssub.s32 1, %s13
  %s16 = scalar_select 0, %s15, %s13
  $region1: #{cnn_forward.1} parent=0
    #allocation4 [shape = 'u8[1024]{0}', space=vmem, size = 0x400, scoped, tag = 'output window, operand 0']
    #allocation5 [shape = 's32[2]{0}', space=sflag, size = 0x8, scoped, tag = 'scoped memory for cnn_forward.1']
    %17 = vsyncpa [#allocation5], 0
    %s18 = scalar_lea.sflag [#allocation5], 1
    %19 = vsyncpa %s18, 0
    loop: start=0, step=1, limit=4
    $region2: #{cnn_forward.1} parent=1 // loop_pre_header
      _
    $region3: #{cnn_forward.1} parent=1 // loop_header
      %s21 = sphi 0, %s25
      %p22 = scmp.ge.s32.totalorder %s21, 4
      %s31 = sphi 0, %s33
      %s34 = sphi 0, %s31
      %s35 = sphi 0, %s34
      %s51 = sphi 0, %s35
      %s55 = sphi 0, %s55
      %s57 = sphi 0, %s55
      %s58 = sphi 0, %s57
      %s72 = sphi 0, %s58
      %s76 = sphi 0, %s76
      %s78 = sphi 0, %s76
      %s79 = sphi 0, %s78
      %s93 = sphi 0, %s79
      %s97 = sphi 0, %s97
      %s99 = sphi 0, %s97
      %s100 = sphi 0, %s99
      %s114 = sphi 0, %s100
      %s118 = sphi 0, %s118
      %s120 = sphi 0, %s118
      %s121 = sphi 0, %s120
      %s135 = sphi 0, %s121
      %s139 = sphi 0, %s139
      %s141 = sphi 0, %s139
      %s142 = sphi 0, %s141
      %s156 = sphi 0, %s142
      %s160 = sphi 0, %s160
      %s162 = sphi 0, %s160
      %s163 = sphi 0, %s162
      %s177 = sphi 0, %s163
      %s181 = sphi 0, %s181
      %s183 = sphi 0, %s181
      %s184 = sphi 0, %s183
      %s198 = sphi 0, %s184
      %s202 = sphi 0, %s202
      %s204 = sphi 0, %s202
      %s205 = sphi 0, %s204
      %s219 = sphi 0, %s205
      %s223 = sphi 0, %s223
      %s225 = sphi 0, %s223
      %s226 = sphi 0, %s225
      %s240 = sphi 0, %s226
      %s244 = sphi 0, %s244
      %s246 = sphi 0, %s244
      %s247 = sphi 0, %s246
      %s261 = sphi 0, %s247
      %s265 = sphi 0, %s265
      %s267 = sphi 0, %s265
      %s268 = sphi 0, %s267
      %s282 = sphi 0, %s268
      %s288 = sphi 0, %s290
      %s291 = sphi 0, %s288
      %s292 = sphi 0, %s291
      %s308 = sphi 0, %s292
    $region4: #{cnn_forward.1} parent=1 // loop_header_branch
      %24 = sbr.rel (%p22) target = $region8
    $region5: #{cnn_forward.1} parent=1 // loop_body
      %s26 = ssub.s32 %s21, 1
      %s27 = ssub.s32 %s21, 2
      %s28 = sadd.s32 %s21, 1
      %s29 = ssub.s32 %s21, %s28
      %p30 = scmp.eq.s32.totalorder %s29, 0
      %s32 = sadd.s32 %s31, 1
      %s33 = scalar_select %p30, %s31, %s32
      %p36 = pneg %p30
      %p37 = scmp.eq.s32.totalorder %s21, 1
      %p38 = por %p36, %p37
      %p39 = scmp.ne.s32.totalorder %s31, %s34
      %p40 = scmp.eq.s32.totalorder %s21, 0
      %p41 = por %p39, %p40
      %p42 = scmp.ne.s32.totalorder %s31, %s34
      %p43 = scmp.eq.s32.totalorder %s26, 1
      %p44 = por %p42, %p43
      %p45 = scmp.ne.s32.totalorder %s34, %s35
      %p46 = scmp.eq.s32.totalorder %s26, 0
      %p47 = por %p45, %p46
      %p48 = scmp.ne.s32.totalorder %s34, %s35
      %p49 = scmp.eq.s32.totalorder %s27, 1
      %p50 = por %p48, %p49
      %p52 = scmp.ne.s32.totalorder %s35, %s51
      %p53 = scmp.eq.s32.totalorder %s27, 0
      %p54 = por %p52, %p53
      %s56 = sadd.s32 %s55, 1
      %p59 = scmp.eq.s32.totalorder %s21, 1
      %p60 = scmp.ne.s32.totalorder %s55, %s57
      %p61 = scmp.eq.s32.totalorder %s21, 0
      %p62 = por %p60, %p61
      %p63 = scmp.ne.s32.totalorder %s55, %s57
      %p64 = scmp.eq.s32.totalorder %s26, 1
      %p65 = por %p63, %p64
      %p66 = scmp.ne.s32.totalorder %s57, %s58
      %p67 = scmp.eq.s32.totalorder %s26, 0
      %p68 = por %p66, %p67
      %p69 = scmp.ne.s32.totalorder %s57, %s58
      %p70 = scmp.eq.s32.totalorder %s27, 1
      %p71 = por %p69, %p70
      %p73 = scmp.ne.s32.totalorder %s58, %s72
      %p74 = scmp.eq.s32.totalorder %s27, 0
      %p75 = por %p73, %p74
      %s77 = sadd.s32 %s76, 1
      %p80 = scmp.eq.s32.totalorder %s21, 1
      %p81 = scmp.ne.s32.totalorder %s76, %s78
      %p82 = scmp.eq.s32.totalorder %s21, 0
      %p83 = por %p81, %p82
      %p84 = scmp.ne.s32.totalorder %s76, %s78
      %p85 = scmp.eq.s32.totalorder %s26, 1
      %p86 = por %p84, %p85
      %p87 = scmp.ne.s32.totalorder %s78, %s79
      %p88 = scmp.eq.s32.totalorder %s26, 0
      %p89 = por %p87, %p88
      %p90 = scmp.ne.s32.totalorder %s78, %s79
      %p91 = scmp.eq.s32.totalorder %s27, 1
      %p92 = por %p90, %p91
      %p94 = scmp.ne.s32.totalorder %s79, %s93
      %p95 = scmp.eq.s32.totalorder %s27, 0
      %p96 = por %p94, %p95
      %s98 = sadd.s32 %s97, 1
      %p101 = scmp.eq.s32.totalorder %s21, 1
      %p102 = scmp.ne.s32.totalorder %s97, %s99
      %p103 = scmp.eq.s32.totalorder %s21, 0
      %p104 = por %p102, %p103
      %p105 = scmp.ne.s32.totalorder %s97, %s99
      %p106 = scmp.eq.s32.totalorder %s26, 1
      %p107 = por %p105, %p106
      %p108 = scmp.ne.s32.totalorder %s99, %s100
      %p109 = scmp.eq.s32.totalorder %s26, 0
      %p110 = por %p108, %p109
      %p111 = scmp.ne.s32.totalorder %s99, %s100
      %p112 = scmp.eq.s32.totalorder %s27, 1
      %p113 = por %p111, %p112
      %p115 = scmp.ne.s32.totalorder %s100, %s114
      %p116 = scmp.eq.s32.totalorder %s27, 0
      %p117 = por %p115, %p116
      %s119 = sadd.s32 %s118, 1
      %p122 = scmp.eq.s32.totalorder %s21, 1
      %p123 = scmp.ne.s32.totalorder %s118, %s120
      %p124 = scmp.eq.s32.totalorder %s21, 0
      %p125 = por %p123, %p124
      %p126 = scmp.ne.s32.totalorder %s118, %s120
      %p127 = scmp.eq.s32.totalorder %s26, 1
      %p128 = por %p126, %p127
      %p129 = scmp.ne.s32.totalorder %s120, %s121
      %p130 = scmp.eq.s32.totalorder %s26, 0
      %p131 = por %p129, %p130
      %p132 = scmp.ne.s32.totalorder %s120, %s121
      %p133 = scmp.eq.s32.totalorder %s27, 1
      %p134 = por %p132, %p133
      %p136 = scmp.ne.s32.totalorder %s121, %s135
      %p137 = scmp.eq.s32.totalorder %s27, 0
      %p138 = por %p136, %p137
      %s140 = sadd.s32 %s139, 1
      %p143 = scmp.eq.s32.totalorder %s21, 1
      %p144 = scmp.ne.s32.totalorder %s139, %s141
      %p145 = scmp.eq.s32.totalorder %s21, 0
      %p146 = por %p144, %p145
      %p147 = scmp.ne.s32.totalorder %s139, %s141
      %p148 = scmp.eq.s32.totalorder %s26, 1
      %p149 = por %p147, %p148
      %p150 = scmp.ne.s32.totalorder %s141, %s142
      %p151 = scmp.eq.s32.totalorder %s26, 0
      %p152 = por %p150, %p151
      %p153 = scmp.ne.s32.totalorder %s141, %s142
      %p154 = scmp.eq.s32.totalorder %s27, 1
      %p155 = por %p153, %p154
      %p157 = scmp.ne.s32.totalorder %s142, %s156
      %p158 = scmp.eq.s32.totalorder %s27, 0
      %p159 = por %p157, %p158
      %s161 = sadd.s32 %s160, 1
      %p164 = scmp.eq.s32.totalorder %s21, 1
      %p165 = scmp.ne.s32.totalorder %s160, %s162
      %p166 = scmp.eq.s32.totalorder %s21, 0
      %p167 = por %p165, %p166
      %p168 = scmp.ne.s32.totalorder %s160, %s162
      %p169 = scmp.eq.s32.totalorder %s26, 1
      %p170 = por %p168, %p169
      %p171 = scmp.ne.s32.totalorder %s162, %s163
      %p172 = scmp.eq.s32.totalorder %s26, 0
      %p173 = por %p171, %p172
      %p174 = scmp.ne.s32.totalorder %s162, %s163
      %p175 = scmp.eq.s32.totalorder %s27, 1
      %p176 = por %p174, %p175
      %p178 = scmp.ne.s32.totalorder %s163, %s177
      %p179 = scmp.eq.s32.totalorder %s27, 0
      %p180 = por %p178, %p179
      %s182 = sadd.s32 %s181, 1
      %p185 = scmp.eq.s32.totalorder %s21, 1
      %p186 = scmp.ne.s32.totalorder %s181, %s183
      %p187 = scmp.eq.s32.totalorder %s21, 0
      %p188 = por %p186, %p187
      %p189 = scmp.ne.s32.totalorder %s181, %s183
      %p190 = scmp.eq.s32.totalorder %s26, 1
      %p191 = por %p189, %p190
      %p192 = scmp.ne.s32.totalorder %s183, %s184
      %p193 = scmp.eq.s32.totalorder %s26, 0
      %p194 = por %p192, %p193
      %p195 = scmp.ne.s32.totalorder %s183, %s184
      %p196 = scmp.eq.s32.totalorder %s27, 1
      %p197 = por %p195, %p196
      %p199 = scmp.ne.s32.totalorder %s184, %s198
      %p200 = scmp.eq.s32.totalorder %s27, 0
      %p201 = por %p199, %p200
      %s203 = sadd.s32 %s202, 1
      %p206 = scmp.eq.s32.totalorder %s21, 1
      %p207 = scmp.ne.s32.totalorder %s202, %s204
      %p208 = scmp.eq.s32.totalorder %s21, 0
      %p209 = por %p207, %p208
      %p210 = scmp.ne.s32.totalorder %s202, %s204
      %p211 = scmp.eq.s32.totalorder %s26, 1
      %p212 = por %p210, %p211
      %p213 = scmp.ne.s32.totalorder %s204, %s205
      %p214 = scmp.eq.s32.totalorder %s26, 0
      %p215 = por %p213, %p214
      %p216 = scmp.ne.s32.totalorder %s204, %s205
      %p217 = scmp.eq.s32.totalorder %s27, 1
      %p218 = por %p216, %p217
      %p220 = scmp.ne.s32.totalorder %s205, %s219
      %p221 = scmp.eq.s32.totalorder %s27, 0
      %p222 = por %p220, %p221
      %s224 = sadd.s32 %s223, 1
      %p227 = scmp.eq.s32.totalorder %s21, 1
      %p228 = scmp.ne.s32.totalorder %s223, %s225
      %p229 = scmp.eq.s32.totalorder %s21, 0
      %p230 = por %p228, %p229
      %p231 = scmp.ne.s32.totalorder %s223, %s225
      %p232 = scmp.eq.s32.totalorder %s26, 1
      %p233 = por %p231, %p232
      %p234 = scmp.ne.s32.totalorder %s225, %s226
      %p235 = scmp.eq.s32.totalorder %s26, 0
      %p236 = por %p234, %p235
      %p237 = scmp.ne.s32.totalorder %s225, %s226
      %p238 = scmp.eq.s32.totalorder %s27, 1
      %p239 = por %p237, %p238
      %p241 = scmp.ne.s32.totalorder %s226, %s240
      %p242 = scmp.eq.s32.totalorder %s27, 0
      %p243 = por %p241, %p242
      %s245 = sadd.s32 %s244, 1
      %p248 = scmp.eq.s32.totalorder %s21, 1
      %p249 = scmp.ne.s32.totalorder %s244, %s246
      %p250 = scmp.eq.s32.totalorder %s21, 0
      %p251 = por %p249, %p250
      %p252 = scmp.ne.s32.totalorder %s244, %s246
      %p253 = scmp.eq.s32.totalorder %s26, 1
      %p254 = por %p252, %p253
      %p255 = scmp.ne.s32.totalorder %s246, %s247
      %p256 = scmp.eq.s32.totalorder %s26, 0
      %p257 = por %p255, %p256
      %p258 = scmp.ne.s32.totalorder %s246, %s247
      %p259 = scmp.eq.s32.totalorder %s27, 1
      %p260 = por %p258, %p259
      %p262 = scmp.ne.s32.totalorder %s247, %s261
      %p263 = scmp.eq.s32.totalorder %s27, 0
      %p264 = por %p262, %p263
      %s266 = sadd.s32 %s265, 1
      %p269 = scmp.eq.s32.totalorder %s21, 1
      %p270 = scmp.ne.s32.totalorder %s265, %s267
      %p271 = scmp.eq.s32.totalorder %s21, 0
      %p272 = por %p270, %p271
      %p273 = scmp.ne.s32.totalorder %s265, %s267
      %p274 = scmp.eq.s32.totalorder %s26, 1
      %p275 = por %p273, %p274
      %p276 = scmp.ne.s32.totalorder %s267, %s268
      %p277 = scmp.eq.s32.totalorder %s26, 0
      %p278 = por %p276, %p277
      %p279 = scmp.ne.s32.totalorder %s267, %s268
      %p280 = scmp.eq.s32.totalorder %s27, 1
      %p281 = por %p279, %p280
      %p283 = scmp.ne.s32.totalorder %s268, %s282
      %p284 = scmp.eq.s32.totalorder %s27, 0
      %p285 = por %p283, %p284
      %s286 = ssub.s32 %s21, %s28
      %p287 = scmp.eq.s32.totalorder %s286, 0
      %s289 = sadd.s32 %s288, 1
      %s290 = scalar_select %p287, %s288, %s289
      %p293 = pneg %p287
      %p294 = scmp.eq.s32.totalorder %s21, 1
      %p295 = por %p293, %p294
      %p296 = scmp.ne.s32.totalorder %s288, %s291
      %p297 = scmp.eq.s32.totalorder %s21, 0
      %p298 = por %p296, %p297
      %p299 = scmp.ne.s32.totalorder %s288, %s291
      %p300 = scmp.eq.s32.totalorder %s26, 1
      %p301 = por %p299, %p300
      %p302 = scmp.ne.s32.totalorder %s291, %s292
      %p303 = scmp.eq.s32.totalorder %s26, 0
      %p304 = por %p302, %p303
      %p305 = scmp.ne.s32.totalorder %s291, %s292
      %p306 = scmp.eq.s32.totalorder %s27, 1
      %p307 = por %p305, %p306
      %p309 = scmp.ne.s32.totalorder %s292, %s308
      %p310 = scmp.eq.s32.totalorder %s27, 0
      %p311 = por %p309, %p310
      %p312 = scmp.le.s32.totalorder 1, %s21
      %p313 = scmp.lt.s32.totalorder %s21, 3
      %p314 = pnand %p312, %p313
      %p315 = pneg %p314
      // Predicated region
      $region9: #{cnn_forward.1} parent=5 // pred_check
        _
      $region10: #{cnn_forward.1} parent=5 // pred_check_branch
        %317 = sbr.rel (%p314) target = $region12
      $region11: #{cnn_forward.1} parent=5 // pred_region
        %s318 = ssub.s32 %s21, 1
        // Predicated region
        $region13: #{cnn_forward.1} parent=11 // pred_check
          %p319 = pneg %p68
        $region14: #{cnn_forward.1} parent=11 // pred_check_branch
          %321 = sbr.rel (%p319) target = $region16
        $region15: #{cnn_forward.1} parent=11 // pred_region
          _
        $region16: #{cnn_forward.1} parent=11 // pred_fallthru
          _
        // Predicated region
        $region17: #{cnn_forward.1} parent=11 // pred_check
          %p322 = pneg %p89
        $region18: #{cnn_forward.1} parent=11 // pred_check_branch
          %324 = sbr.rel (%p322) target = $region20
        $region19: #{cnn_forward.1} parent=11 // pred_region
          _
        $region20: #{cnn_forward.1} parent=11 // pred_fallthru
          _
        // Predicated region
        $region21: #{cnn_forward.1} parent=11 // pred_check
          %p325 = pneg %p110
        $region22: #{cnn_forward.1} parent=11 // pred_check_branch
          %327 = sbr.rel (%p325) target = $region24
        $region23: #{cnn_forward.1} parent=11 // pred_region
          _
        $region24: #{cnn_forward.1} parent=11 // pred_fallthru
          _
        // Predicated region
        $region25: #{cnn_forward.1} parent=11 // pred_check
          %p328 = pneg %p131
        $region26: #{cnn_forward.1} parent=11 // pred_check_branch
          %330 = sbr.rel (%p328) target = $region28
        $region27: #{cnn_forward.1} parent=11 // pred_region
          _
        $region28: #{cnn_forward.1} parent=11 // pred_fallthru
          _
        // Predicated region
        $region29: #{cnn_forward.1} parent=11 // pred_check
          %p331 = pneg %p152
        $region30: #{cnn_forward.1} parent=11 // pred_check_branch
          %333 = sbr.rel (%p331) target = $region32
        $region31: #{cnn_forward.1} parent=11 // pred_region
          _
        $region32: #{cnn_forward.1} parent=11 // pred_fallthru
          _
        // Predicated region
        $region33: #{cnn_forward.1} parent=11 // pred_check
          %p334 = pneg %p173
        $region34: #{cnn_forward.1} parent=11 // pred_check_branch
          %336 = sbr.rel (%p334) target = $region36
        $region35: #{cnn_forward.1} parent=11 // pred_region
          _
        $region36: #{cnn_forward.1} parent=11 // pred_fallthru
          _
        // Predicated region
        $region37: #{cnn_forward.1} parent=11 // pred_check
          %p337 = pneg %p194
        $region38: #{cnn_forward.1} parent=11 // pred_check_branch
          %339 = sbr.rel (%p337) target = $region40
        $region39: #{cnn_forward.1} parent=11 // pred_region
          _
        $region40: #{cnn_forward.1} parent=11 // pred_fallthru
          _
        // Predicated region
        $region41: #{cnn_forward.1} parent=11 // pred_check
          %p340 = pneg %p215
        $region42: #{cnn_forward.1} parent=11 // pred_check_branch
          %342 = sbr.rel (%p340) target = $region44
        $region43: #{cnn_forward.1} parent=11 // pred_region
          _
        $region44: #{cnn_forward.1} parent=11 // pred_fallthru
          _
        // Predicated region
        $region45: #{cnn_forward.1} parent=11 // pred_check
          %p343 = pneg %p236
        $region46: #{cnn_forward.1} parent=11 // pred_check_branch
          %345 = sbr.rel (%p343) target = $region48
        $region47: #{cnn_forward.1} parent=11 // pred_region
          _
        $region48: #{cnn_forward.1} parent=11 // pred_fallthru
          _
        // Predicated region
        $region49: #{cnn_forward.1} parent=11 // pred_check
          %p346 = pneg %p257
        $region50: #{cnn_forward.1} parent=11 // pred_check_branch
          %348 = sbr.rel (%p346) target = $region52
        $region51: #{cnn_forward.1} parent=11 // pred_region
          _
        $region52: #{cnn_forward.1} parent=11 // pred_fallthru
          _
        // Predicated region
        $region53: #{cnn_forward.1} parent=11 // pred_check
          %p349 = pneg %p278
        $region54: #{cnn_forward.1} parent=11 // pred_check_branch
          %351 = sbr.rel (%p349) target = $region56
        $region55: #{cnn_forward.1} parent=11 // pred_region
          _
        $region56: #{cnn_forward.1} parent=11 // pred_fallthru
          _
      $region12: #{cnn_forward.1} parent=5 // pred_fallthru
        _
      %p352 = scmp.lt.s32.totalorder %s21, 2
      // Predicated region
      $region57: #{cnn_forward.1} parent=5 // pred_check
        %p353 = pneg %p352
      $region58: #{cnn_forward.1} parent=5 // pred_check_branch
        %355 = sbr.rel (%p353) target = $region60
      $region59: #{cnn_forward.1} parent=5 // pred_region
        // Predicated region
        $region61: #{cnn_forward.1} parent=59 // pred_check
          %p356 = pneg %p41
        $region62: #{cnn_forward.1} parent=59 // pred_check_branch
          %358 = sbr.rel (%p356) target = $region64
        $region63: #{cnn_forward.1} parent=59 // pred_region
          %p359 = scmp.lt.s32.totalorder %s21, 1
          %s360 = scalar_select %p359, %s21, 1
          %s361 = smul.addr %s360, 8
          %s362 = smul.addr %s361, 4
          %s363 = scalar_lea.vmem %s0, %s362
        $region64: #{cnn_forward.1} parent=59 // pred_fallthru
          _
      $region60: #{cnn_forward.1} parent=5 // pred_fallthru
        _
      %p364 = scmp.le.s32.totalorder 1, %s21
      %p365 = scmp.lt.s32.totalorder %s21, 3
      %p366 = pnand %p364, %p365
      %p367 = pneg %p366
      // Predicated region
      $region65: #{cnn_forward.1} parent=5 // pred_check
        _
      $region66: #{cnn_forward.1} parent=5 // pred_check_branch
        %369 = sbr.rel (%p366) target = $region68
      $region67: #{cnn_forward.1} parent=5 // pred_region
        %s370 = ssub.s32 %s21, 1
        %p371 = scmp.lt.s32.totalorder %s26, 1
        %s372 = scalar_select %p371, %s26, 1
        %s373 = smul.addr %s372, 8
        %s374 = smul.addr %s373, 4
        %s375 = scalar_lea.vmem %s0, %s374
        %p376 = pneg %p47
        %p377 = pneg %p44
        %p378 = pneg %p68
        %p379 = pneg %p65
        %p380 = pneg %p89
        %p381 = pneg %p86
        %p382 = pneg %p110
        %p383 = pneg %p107
        %p384 = pneg %p131
        %p385 = pneg %p128
        %p386 = pneg %p152
        %p387 = pneg %p149
        %p388 = pneg %p173
        %p389 = pneg %p170
        %p390 = pneg %p194
        %p391 = pneg %p191
        %p392 = pneg %p215
        %p393 = pneg %p212
        %p394 = pneg %p236
        %p395 = pneg %p233
        %p396 = pneg %p257
        %p397 = pneg %p254
        %p398 = pneg %p278
        %p399 = pneg %p275
        %p400 = pneg %p304
        %p401 = pneg %p301
        %s402 = sand.u32 %s291, 1
        %s403 = scalar_lea.sflag [#allocation5], %s402
        %s404 = sand.u32 %s291, 1
        %s405 = scalar_lea.vmem [#allocation4], %s404
        %p406 = scmp.lt.s32.totalorder %s26, 1
        %s407 = scalar_select %p406, %s26, 1
        %s408 = smul.addr %s407, 8
        %s409 = smul.addr %s408, 4
        %s410 = scalar_lea.vmem %s0, %s409
        %v412 = vld [vmem:[%s410] sm:$0xff]
        %v413 = vld [vmem:[%s410 + $0x8] sm:$0xff]
        %v414 = vld [vmem:[%s410 + $0x10] sm:$0xff]
        %v415 = vld [vmem:[%s410 + $0x18] sm:$0xff]
        %416 = vst [vmem:[#allocation2] sm:$0xff] %v412
        %417 = vst [vmem:[#allocation2 + $0x8] sm:$0xff] %v413
        %418 = vst [vmem:[#allocation2 + $0x10] sm:$0xff] %v414
        %vm419 = vcmask 1010688
        %420 = vst.msk [vmem:[#allocation2 + $0x18] sm:$0xf] %vm419, %v415
        %425 = vrot.lane.b32.xlu0 %v412, 127
        %v426 = vpop.permute.xlu0 %425
        %427 = vrot.lane.b32.xlu0 %v413, 127
        %v428 = vpop.permute.xlu0 %427
        %429 = vrot.lane.b32.xlu0 %v414, 127
        %v430 = vpop.permute.xlu0 %429
        %431 = vrot.lane.b32.xlu0 %v415, 127
        %v432 = vpop.permute.xlu0 %431
        %v433 = vrot.slane %v426, 4
        %v434 = vrot.slane %v428, 4
        %v435 = vrot.slane %v430, 4
        %v436 = vrot.slane %v432, 4
        %vm437 = vcmask 1043456
        %v438 = vsel %vm437, %v433, %v434
        %vm439 = vcmask 1039360
        %v440 = vsel %vm439, %v426, %v438
        %v441 = vsel %vm437, %v434, %v435
        %v442 = vsel %vm439, %v428, %v441
        %v443 = vsel %vm437, %v435, %v436
        %v444 = vsel %vm439, %v430, %v443
        %449 = vst [vmem:[#allocation2 + $0x1c] sm:$0xff] %v440
        %450 = vst [vmem:[#allocation2 + $0x24] sm:$0xff] %v442
        %451 = vst [vmem:[#allocation2 + $0x2c] sm:$0xff] %v444
        %452 = vst.msk [vmem:[#allocation2 + $0x34] sm:$0xf] %vm419, %v432
        %453 = vrot.lane.b32.xlu0 %v412, 126
        %v454 = vpop.permute.xlu0 %453
        %455 = vrot.lane.b32.xlu0 %v413, 126
        %v456 = vpop.permute.xlu0 %455
        %457 = vrot.lane.b32.xlu0 %v414, 126
        %v458 = vpop.permute.xlu0 %457
        %459 = vrot.lane.b32.xlu0 %v415, 126
        %v460 = vpop.permute.xlu0 %459
        %v461 = vrot.slane %v454, 4
        %v462 = vrot.slane %v456, 4
        %v463 = vrot.slane %v458, 4
        %v464 = vrot.slane %v460, 4
        %v465 = vsel %vm437, %v461, %v462
        %vm466 = vcmask 1031168
        %v467 = vsel %vm466, %v454, %v465
        %v468 = vsel %vm437, %v462, %v463
        %v469 = vsel %vm466, %v456, %v468
        %v470 = vsel %vm437, %v463, %v464
        %v471 = vsel %vm466, %v458, %v470
        %476 = vst [vmem:[#allocation2 + $0x38] sm:$0xff] %v467
        %477 = vst [vmem:[#allocation2 + $0x40] sm:$0xff] %v469
        %478 = vst [vmem:[#allocation2 + $0x48] sm:$0xff] %v471
        %479 = vst.msk [vmem:[#allocation2 + $0x50] sm:$0xf] %vm419, %v460
        %480 = vrot.lane.b32.xlu0 %v412, 125
        %v481 = vpop.permute.xlu0 %480
        %482 = vrot.lane.b32.xlu0 %v413, 125
        %v483 = vpop.permute.xlu0 %482
        %484 = vrot.lane.b32.xlu0 %v414, 125
        %v485 = vpop.permute.xlu0 %484
        %486 = vrot.lane.b32.xlu0 %v415, 125
        %v487 = vpop.permute.xlu0 %486
        %v488 = vrot.slane %v481, 4
        %v489 = vrot.slane %v483, 4
        %v490 = vrot.slane %v485, 4
        %v491 = vrot.slane %v487, 4
        %v492 = vsel %vm437, %v488, %v489
        %vm493 = vcmask 1022976
        %v494 = vsel %vm493, %v481, %v492
        %v495 = vsel %vm437, %v489, %v490
        %v496 = vsel %vm493, %v483, %v495
        %v497 = vsel %vm437, %v490, %v491
        %v498 = vsel %vm493, %v485, %v497
        %503 = vst [vmem:[#allocation2 + $0x54] sm:$0xff] %v494
        %504 = vst [vmem:[#allocation2 + $0x5c] sm:$0xff] %v496
        %505 = vst [vmem:[#allocation2 + $0x64] sm:$0xff] %v498
        %506 = vst.msk [vmem:[#allocation2 + $0x6c] sm:$0xf] %vm419, %v487
        %507 = vrot.lane.b32.xlu0 %v412, 124
        %v508 = vpop.permute.xlu0 %507
        %509 = vrot.lane.b32.xlu0 %v413, 124
        %v510 = vpop.permute.xlu0 %509
        %511 = vrot.lane.b32.xlu0 %v414, 124
        %v512 = vpop.permute.xlu0 %511
        %513 = vrot.lane.b32.xlu0 %v415, 124
        %v514 = vpop.permute.xlu0 %513
        %v515 = vrot.slane %v508, 4
        %v516 = vrot.slane %v510, 4
        %v517 = vrot.slane %v512, 4
        %v518 = vrot.slane %v514, 4
        %v519 = vsel %vm437, %v515, %v516
        %vm520 = vcmask 1014784
        %v521 = vsel %vm520, %v508, %v519
        %v522 = vsel %vm437, %v516, %v517
        %v523 = vsel %vm520, %v510, %v522
        %v524 = vsel %vm437, %v517, %v518
        %v525 = vsel %vm520, %v512, %v524
        %530 = vst [vmem:[#allocation2 + $0x70] sm:$0xff] %v521
        %531 = vst [vmem:[#allocation2 + $0x78] sm:$0xff] %v523
        %532 = vst [vmem:[#allocation2 + $0x80] sm:$0xff] %v525
        %533 = vst.msk [vmem:[#allocation2 + $0x88] sm:$0xf] %vm419, %v514
        %534 = vrot.lane.b32.xlu0 %v412, 96
        %v535 = vpop.permute.xlu0 %534
        %536 = vrot.lane.b32.xlu0 %v413, 96
        %v537 = vpop.permute.xlu0 %536
        %538 = vrot.lane.b32.xlu0 %v414, 96
        %v539 = vpop.permute.xlu0 %538
        %540 = vrot.lane.b32.xlu0 %v415, 96
        %v541 = vpop.permute.xlu0 %540
        %v542 = vrot.slane %v535, 4
        %v543 = vrot.slane %v537, 4
        %v544 = vrot.slane %v539, 4
        %v545 = vrot.slane %v541, 4
        %v546 = vsel %vm437, %v542, %v543
        %vm547 = vcmask 785408
        %v548 = vsel %vm547, %v535, %v546
        %v549 = vsel %vm437, %v543, %v544
        %v550 = vsel %vm547, %v537, %v549
        %v551 = vsel %vm437, %v544, %v545
        %v552 = vsel %vm547, %v539, %v551
        %v553 = vsel %vm547, %v541, %v545
        %558 = vst [vmem:[#allocation2 + $0x8c] sm:$0xff] %v548
        %559 = vst [vmem:[#allocation2 + $0x94] sm:$0xff] %v550
        %560 = vst [vmem:[#allocation2 + $0x9c] sm:$0xff] %v552
        %561 = vst.msk [vmem:[#allocation2 + $0xa4] sm:$0xf] %vm419, %v553
        %562 = vrot.lane.b32.xlu0 %v412, 95
        %v563 = vpop.permute.xlu0 %562
        %564 = vrot.lane.b32.xlu0 %v413, 95
        %v565 = vpop.permute.xlu0 %564
        %566 = vrot.lane.b32.xlu0 %v414, 95
        %v567 = vpop.permute.xlu0 %566
        %568 = vrot.lane.b32.xlu0 %v415, 95
        %v569 = vpop.permute.xlu0 %568
        %v570 = vrot.slane %v563, 4
        %v571 = vrot.slane %v565, 4
        %v572 = vrot.slane %v567, 4
        %v573 = vrot.slane %v569, 4
        %v574 = vsel %vm437, %v570, %v571
        %vm575 = vcmask 777216
        %v576 = vsel %vm575, %v563, %v574
        %v577 = vsel %vm437, %v571, %v572
        %v578 = vsel %vm575, %v565, %v577
        %v579 = vsel %vm437, %v572, %v573
        %v580 = vsel %vm575, %v567, %v579
        %v581 = vsel %vm575, %v569, %v573
        %586 = vst [vmem:[#allocation2 + $0xa8] sm:$0xff] %v576
        %587 = vst [vmem:[#allocation2 + $0xb0] sm:$0xff] %v578
        %588 = vst [vmem:[#allocation2 + $0xb8] sm:$0xff] %v580
        %589 = vst.msk [vmem:[#allocation2 + $0xc0] sm:$0xf] %vm419, %v581
        %590 = vrot.lane.b32.xlu0 %v412, 94
        %v591 = vpop.permute.xlu0 %590
        %592 = vrot.lane.b32.xlu0 %v413, 94
        %v593 = vpop.permute.xlu0 %592
        %594 = vrot.lane.b32.xlu0 %v414, 94
        %v595 = vpop.permute.xlu0 %594
        %596 = vrot.lane.b32.xlu0 %v415, 94
        %v597 = vpop.permute.xlu0 %596
        %v598 = vrot.slane %v591, 4
        %v599 = vrot.slane %v593, 4
        %v600 = vrot.slane %v595, 4
        %v601 = vrot.slane %v597, 4
        %v602 = vsel %vm437, %v598, %v599
        %vm603 = vcmask 769024
        %v604 = vsel %vm603, %v591, %v602
        %v605 = vsel %vm437, %v599, %v600
        %v606 = vsel %vm603, %v593, %v605
        %v607 = vsel %vm437, %v600, %v601
        %v608 = vsel %vm603, %v595, %v607
        %v609 = vsel %vm603, %v597, %v601
        %614 = vst [vmem:[#allocation2 + $0xc4] sm:$0xff] %v604
        %615 = vst [vmem:[#allocation2 + $0xcc] sm:$0xff] %v606
        %616 = vst [vmem:[#allocation2 + $0xd4] sm:$0xff] %v608
        %617 = vst.msk [vmem:[#allocation2 + $0xdc] sm:$0xf] %vm419, %v609
        %618 = vrot.lane.b32.xlu0 %v412, 93
        %v619 = vpop.permute.xlu0 %618
        %620 = vrot.lane.b32.xlu0 %v413, 93
        %v621 = vpop.permute.xlu0 %620
        %622 = vrot.lane.b32.xlu0 %v414, 93
        %v623 = vpop.permute.xlu0 %622
        %624 = vrot.lane.b32.xlu0 %v415, 93
        %v625 = vpop.permute.xlu0 %624
        %v626 = vrot.slane %v619, 4
        %v627 = vrot.slane %v621, 4
        %v628 = vrot.slane %v623, 4
        %v629 = vrot.slane %v625, 4
        %v630 = vsel %vm437, %v626, %v627
        %vm631 = vcmask 760832
        %v632 = vsel %vm631, %v619, %v630
        %v633 = vsel %vm437, %v627, %v628
        %v634 = vsel %vm631, %v621, %v633
        %v635 = vsel %vm437, %v628, %v629
        %v636 = vsel %vm631, %v623, %v635
        %v637 = vsel %vm631, %v625, %v629
        %642 = vst [vmem:[#allocation2 + $0xe0] sm:$0xff] %v632
        %643 = vst [vmem:[#allocation2 + $0xe8] sm:$0xff] %v634
        %644 = vst [vmem:[#allocation2 + $0xf0] sm:$0xff] %v636
        %645 = vst.msk [vmem:[#allocation2 + $0xf8] sm:$0xf] %vm419, %v637
        %646 = vrot.lane.b32.xlu0 %v412, 92
        %v647 = vpop.permute.xlu0 %646
        %648 = vrot.lane.b32.xlu0 %v413, 92
        %v649 = vpop.permute.xlu0 %648
        %650 = vrot.lane.b32.xlu0 %v414, 92
        %v651 = vpop.permute.xlu0 %650
        %652 = vrot.lane.b32.xlu0 %v415, 92
        %v653 = vpop.permute.xlu0 %652
        %v654 = vrot.slane %v647, 4
        %v655 = vrot.slane %v649, 4
        %v656 = vrot.slane %v651, 4
        %v657 = vrot.slane %v653, 4
        %v658 = vsel %vm437, %v654, %v655
        %vm659 = vcmask 752640
        %v660 = vsel %vm659, %v647, %v658
        %v661 = vsel %vm437, %v655, %v656
        %v662 = vsel %vm659, %v649, %v661
        %v663 = vsel %vm437, %v656, %v657
        %v664 = vsel %vm659, %v651, %v663
        %v665 = vsel %vm659, %v653, %v657
        %670 = vst [vmem:[#allocation2 + $0xfc] sm:$0xff] %v660
        %671 = vst [vmem:[#allocation2 + $0x104] sm:$0xff] %v662
        %672 = vst [vmem:[#allocation2 + $0x10c] sm:$0xff] %v664
        %673 = vst.msk [vmem:[#allocation2 + $0x114] sm:$0xf] %vm419, %v665
        %674 = vrot.lane.b32.xlu0 %v412, 64
        %v675 = vpop.permute.xlu0 %674
        %676 = vrot.lane.b32.xlu0 %v413, 64
        %v677 = vpop.permute.xlu0 %676
        %678 = vrot.lane.b32.xlu0 %v414, 64
        %v679 = vpop.permute.xlu0 %678
        %680 = vrot.lane.b32.xlu0 %v415, 64
        %v681 = vpop.permute.xlu0 %680
        %v682 = vrot.slane %v675, 4
        %v683 = vrot.slane %v677, 4
        %v684 = vrot.slane %v679, 4
        %v685 = vrot.slane %v681, 4
        %v686 = vsel %vm437, %v682, %v683
        %vm687 = vcmask 523264
        %v688 = vsel %vm687, %v675, %v686
        %v689 = vsel %vm437, %v683, %v684
        %v690 = vsel %vm687, %v677, %v689
        %v691 = vsel %vm437, %v684, %v685
        %v692 = vsel %vm687, %v679, %v691
        %v693 = vsel %vm687, %v681, %v685
        %698 = vst [vmem:[#allocation2 + $0x118] sm:$0xff] %v688
        %699 = vst [vmem:[#allocation2 + $0x120] sm:$0xff] %v690
        %700 = vst [vmem:[#allocation2 + $0x128] sm:$0xff] %v692
        %701 = vst.msk [vmem:[#allocation2 + $0x130] sm:$0xf] %vm419, %v693
        %702 = vrot.lane.b32.xlu0 %v412, 63
        %v703 = vpop.permute.xlu0 %702
        %704 = vrot.lane.b32.xlu0 %v413, 63
        %v705 = vpop.permute.xlu0 %704
        %706 = vrot.lane.b32.xlu0 %v414, 63
        %v707 = vpop.permute.xlu0 %706
        %708 = vrot.lane.b32.xlu0 %v415, 63
        %v709 = vpop.permute.xlu0 %708
        %v710 = vrot.slane %v703, 4
        %v711 = vrot.slane %v705, 4
        %v712 = vrot.slane %v707, 4
        %v713 = vrot.slane %v709, 4
        %v714 = vsel %vm437, %v710, %v711
        %vm715 = vcmask 515072
        %v716 = vsel %vm715, %v703, %v714
        %v717 = vsel %vm437, %v711, %v712
        %v718 = vsel %vm715, %v705, %v717
        %v719 = vsel %vm437, %v712, %v713
        %v720 = vsel %vm715, %v707, %v719
        %v721 = vsel %vm715, %v709, %v713
        %726 = vst [vmem:[#allocation2 + $0x134] sm:$0xff] %v716
        %727 = vst [vmem:[#allocation2 + $0x13c] sm:$0xff] %v718
        %728 = vst [vmem:[#allocation2 + $0x144] sm:$0xff] %v720
        %729 = vst.msk [vmem:[#allocation2 + $0x14c] sm:$0xf] %vm419, %v721
        %730 = vrot.lane.b32.xlu0 %v412, 62
        %v731 = vpop.permute.xlu0 %730
        %732 = vrot.lane.b32.xlu0 %v413, 62
        %v733 = vpop.permute.xlu0 %732
        %734 = vrot.lane.b32.xlu0 %v414, 62
        %v735 = vpop.permute.xlu0 %734
        %736 = vrot.lane.b32.xlu0 %v415, 62
        %v737 = vpop.permute.xlu0 %736
        %v738 = vrot.slane %v731, 4
        %v739 = vrot.slane %v733, 4
        %v740 = vrot.slane %v735, 4
        %v741 = vrot.slane %v737, 4
        %v742 = vsel %vm437, %v738, %v739
        %vm743 = vcmask 506880
        %v744 = vsel %vm743, %v731, %v742
        %v745 = vsel %vm437, %v739, %v740
        %v746 = vsel %vm743, %v733, %v745
        %v747 = vsel %vm437, %v740, %v741
        %v748 = vsel %vm743, %v735, %v747
        %v749 = vsel %vm743, %v737, %v741
        %754 = vst [vmem:[#allocation2 + $0x150] sm:$0xff] %v744
        %755 = vst [vmem:[#allocation2 + $0x158] sm:$0xff] %v746
        %756 = vst [vmem:[#allocation2 + $0x160] sm:$0xff] %v748
        %757 = vst.msk [vmem:[#allocation2 + $0x168] sm:$0xf] %vm419, %v749
        %758 = vrot.lane.b32.xlu0 %v412, 61
        %v759 = vpop.permute.xlu0 %758
        %760 = vrot.lane.b32.xlu0 %v413, 61
        %v761 = vpop.permute.xlu0 %760
        %762 = vrot.lane.b32.xlu0 %v414, 61
        %v763 = vpop.permute.xlu0 %762
        %764 = vrot.lane.b32.xlu0 %v415, 61
        %v765 = vpop.permute.xlu0 %764
        %v766 = vrot.slane %v759, 4
        %v767 = vrot.slane %v761, 4
        %v768 = vrot.slane %v763, 4
        %v769 = vrot.slane %v765, 4
        %v770 = vsel %vm437, %v766, %v767
        %vm771 = vcmask 498688
        %v772 = vsel %vm771, %v759, %v770
        %v773 = vsel %vm437, %v767, %v768
        %v774 = vsel %vm771, %v761, %v773
        %v775 = vsel %vm437, %v768, %v769
        %v776 = vsel %vm771, %v763, %v775
        %v777 = vsel %vm771, %v765, %v769
        %782 = vst [vmem:[#allocation2 + $0x16c] sm:$0xff] %v772
        %783 = vst [vmem:[#allocation2 + $0x174] sm:$0xff] %v774
        %784 = vst [vmem:[#allocation2 + $0x17c] sm:$0xff] %v776
        %785 = vst.msk [vmem:[#allocation2 + $0x184] sm:$0xf] %vm419, %v777
        %786 = vrot.lane.b32.xlu0 %v412, 60
        %v787 = vpop.permute.xlu0 %786
        %788 = vrot.lane.b32.xlu0 %v413, 60
        %v789 = vpop.permute.xlu0 %788
        %790 = vrot.lane.b32.xlu0 %v414, 60
        %v791 = vpop.permute.xlu0 %790
        %792 = vrot.lane.b32.xlu0 %v415, 60
        %v793 = vpop.permute.xlu0 %792
        %v794 = vrot.slane %v787, 4
        %v795 = vrot.slane %v789, 4
        %v796 = vrot.slane %v791, 4
        %v797 = vrot.slane %v793, 4
        %v798 = vsel %vm437, %v794, %v795
        %vm799 = vcmask 490496
        %v800 = vsel %vm799, %v787, %v798
        %v801 = vsel %vm437, %v795, %v796
        %v802 = vsel %vm799, %v789, %v801
        %v803 = vsel %vm437, %v796, %v797
        %v804 = vsel %vm799, %v791, %v803
        %v805 = vsel %vm799, %v793, %v797
        %810 = vst [vmem:[#allocation2 + $0x188] sm:$0xff] %v800
        %811 = vst [vmem:[#allocation2 + $0x190] sm:$0xff] %v802
        %812 = vst [vmem:[#allocation2 + $0x198] sm:$0xff] %v804
        %813 = vst.msk [vmem:[#allocation2 + $0x1a0] sm:$0xf] %vm419, %v805
        %814 = vrot.lane.b32.xlu0 %v412, 32
        %v815 = vpop.permute.xlu0 %814
        %816 = vrot.lane.b32.xlu0 %v413, 32
        %v817 = vpop.permute.xlu0 %816
        %818 = vrot.lane.b32.xlu0 %v414, 32
        %v819 = vpop.permute.xlu0 %818
        %820 = vrot.lane.b32.xlu0 %v415, 32
        %v821 = vpop.permute.xlu0 %820
        %v822 = vrot.slane %v815, 4
        %v823 = vrot.slane %v817, 4
        %v824 = vrot.slane %v819, 4
        %v825 = vrot.slane %v821, 4
        %v826 = vsel %vm437, %v822, %v823
        %vm827 = vcmask 261120
        %v828 = vsel %vm827, %v815, %v826
        %v829 = vsel %vm437, %v823, %v824
        %v830 = vsel %vm827, %v817, %v829
        %v831 = vsel %vm437, %v824, %v825
        %v832 = vsel %vm827, %v819, %v831
        %v833 = vsel %vm827, %v821, %v825
        %838 = vst [vmem:[#allocation2 + $0x1a4] sm:$0xff] %v828
        %839 = vst [vmem:[#allocation2 + $0x1ac] sm:$0xff] %v830
        %840 = vst [vmem:[#allocation2 + $0x1b4] sm:$0xff] %v832
        %841 = vst.msk [vmem:[#allocation2 + $0x1bc] sm:$0xf] %vm419, %v833
        %842 = vrot.lane.b32.xlu0 %v412, 31
        %v843 = vpop.permute.xlu0 %842
        %844 = vrot.lane.b32.xlu0 %v413, 31
        %v845 = vpop.permute.xlu0 %844
        %846 = vrot.lane.b32.xlu0 %v414, 31
        %v847 = vpop.permute.xlu0 %846
        %848 = vrot.lane.b32.xlu0 %v415, 31
        %v849 = vpop.permute.xlu0 %848
        %v850 = vrot.slane %v843, 4
        %v851 = vrot.slane %v845, 4
        %v852 = vrot.slane %v847, 4
        %v853 = vrot.slane %v849, 4
        %v854 = vsel %vm437, %v850, %v851
        %vm855 = vcmask 252928
        %v856 = vsel %vm855, %v843, %v854
        %v857 = vsel %vm437, %v851, %v852
        %v858 = vsel %vm855, %v845, %v857
        %v859 = vsel %vm437, %v852, %v853
        %v860 = vsel %vm855, %v847, %v859
        %v861 = vsel %vm855, %v849, %v853
        %866 = vst [vmem:[#allocation2 + $0x1c0] sm:$0xff] %v856
        %867 = vst [vmem:[#allocation2 + $0x1c8] sm:$0xff] %v858
        %868 = vst [vmem:[#allocation2 + $0x1d0] sm:$0xff] %v860
        %869 = vst.msk [vmem:[#allocation2 + $0x1d8] sm:$0xf] %vm419, %v861
        %870 = vrot.lane.b32.xlu0 %v412, 30
        %v871 = vpop.permute.xlu0 %870
        %872 = vrot.lane.b32.xlu0 %v413, 30
        %v873 = vpop.permute.xlu0 %872
        %874 = vrot.lane.b32.xlu0 %v414, 30
        %v875 = vpop.permute.xlu0 %874
        %876 = vrot.lane.b32.xlu0 %v415, 30
        %v877 = vpop.permute.xlu0 %876
        %v878 = vrot.slane %v871, 4
        %v879 = vrot.slane %v873, 4
        %v880 = vrot.slane %v875, 4
        %v881 = vrot.slane %v877, 4
        %v882 = vsel %vm437, %v878, %v879
        %vm883 = vcmask 244736
        %v884 = vsel %vm883, %v871, %v882
        %v885 = vsel %vm437, %v879, %v880
        %v886 = vsel %vm883, %v873, %v885
        %v887 = vsel %vm437, %v880, %v881
        %v888 = vsel %vm883, %v875, %v887
        %v889 = vsel %vm883, %v877, %v881
        %894 = vst [vmem:[#allocation2 + $0x1dc] sm:$0xff] %v884
        %895 = vst [vmem:[#allocation2 + $0x1e4] sm:$0xff] %v886
        %896 = vst [vmem:[#allocation2 + $0x1ec] sm:$0xff] %v888
        %897 = vst.msk [vmem:[#allocation2 + $0x1f4] sm:$0xf] %vm419, %v889
        %898 = vrot.lane.b32.xlu0 %v412, 29
        %v899 = vpop.permute.xlu0 %898
        %900 = vrot.lane.b32.xlu0 %v413, 29
        %v901 = vpop.permute.xlu0 %900
        %902 = vrot.lane.b32.xlu0 %v414, 29
        %v903 = vpop.permute.xlu0 %902
        %904 = vrot.lane.b32.xlu0 %v415, 29
        %v905 = vpop.permute.xlu0 %904
        %v906 = vrot.slane %v899, 4
        %v907 = vrot.slane %v901, 4
        %v908 = vrot.slane %v903, 4
        %v909 = vrot.slane %v905, 4
        %v910 = vsel %vm437, %v906, %v907
        %vm911 = vcmask 236544
        %v912 = vsel %vm911, %v899, %v910
        %v913 = vsel %vm437, %v907, %v908
        %v914 = vsel %vm911, %v901, %v913
        %v915 = vsel %vm437, %v908, %v909
        %v916 = vsel %vm911, %v903, %v915
        %v917 = vsel %vm911, %v905, %v909
        %922 = vst [vmem:[#allocation2 + $0x1f8] sm:$0xff] %v912
        %923 = vst [vmem:[#allocation2 + $0x200] sm:$0xff] %v914
        %924 = vst [vmem:[#allocation2 + $0x208] sm:$0xff] %v916
        %925 = vst.msk [vmem:[#allocation2 + $0x210] sm:$0xf] %vm419, %v917
        %926 = vrot.lane.b32.xlu0 %v412, 28
        %v927 = vpop.permute.xlu0 %926
        %928 = vrot.lane.b32.xlu0 %v413, 28
        %v929 = vpop.permute.xlu0 %928
        %930 = vrot.lane.b32.xlu0 %v414, 28
        %v931 = vpop.permute.xlu0 %930
        %932 = vrot.lane.b32.xlu0 %v415, 28
        %v933 = vpop.permute.xlu0 %932
        %v934 = vrot.slane %v927, 4
        %v935 = vrot.slane %v929, 4
        %v936 = vrot.slane %v931, 4
        %v937 = vrot.slane %v933, 4
        %v938 = vsel %vm437, %v934, %v935
        %vm939 = vcmask 228352
        %v940 = vsel %vm939, %v927, %v938
        %v941 = vsel %vm437, %v935, %v936
        %v942 = vsel %vm939, %v929, %v941
        %v943 = vsel %vm437, %v936, %v937
        %v944 = vsel %vm939, %v931, %v943
        %v945 = vsel %vm939, %v933, %v937
        %950 = vst [vmem:[#allocation2 + $0x214] sm:$0xff] %v940
        %951 = vst [vmem:[#allocation2 + $0x21c] sm:$0xff] %v942
        %952 = vst [vmem:[#allocation2 + $0x224] sm:$0xff] %v944
        %953 = vst.msk [vmem:[#allocation2 + $0x22c] sm:$0xf] %vm419, %v945
        %v954 = vrot.slane %v412, 4
        %v955 = vrot.slane %v413, 4
        %v956 = vrot.slane %v414, 4
        %v957 = vrot.slane %v415, 4
        %v958 = vsel %vm437, %v954, %v955
        %v959 = vsel %vm437, %v955, %v956
        %v960 = vsel %vm437, %v956, %v957
        %965 = vst [vmem:[#allocation2 + $0x230] sm:$0xff] %v958
        %966 = vst [vmem:[#allocation2 + $0x238] sm:$0xff] %v959
        %967 = vst [vmem:[#allocation2 + $0x240] sm:$0xff] %v960
        %968 = vst.msk [vmem:[#allocation2 + $0x248] sm:$0xf] %vm419, %v957
        %v969 = vsel %vm439, %v438, %v428
        %v970 = vsel %vm439, %v441, %v430
        %v971 = vsel %vm439, %v443, %v432
        %976 = vst [vmem:[#allocation2 + $0x24c] sm:$0xff] %v969
        %977 = vst [vmem:[#allocation2 + $0x254] sm:$0xff] %v970
        %978 = vst [vmem:[#allocation2 + $0x25c] sm:$0xff] %v971
        %979 = vst.msk [vmem:[#allocation2 + $0x264] sm:$0xf] %vm419, %v436
        %v980 = vsel %vm466, %v465, %v456
        %v981 = vsel %vm466, %v468, %v458
        %v982 = vsel %vm466, %v470, %v460
        %987 = vst [vmem:[#allocation2 + $0x268] sm:$0xff] %v980
        %988 = vst [vmem:[#allocation2 + $0x270] sm:$0xff] %v981
        %989 = vst [vmem:[#allocation2 + $0x278] sm:$0xff] %v982
        %990 = vst.msk [vmem:[#allocation2 + $0x280] sm:$0xf] %vm419, %v464
        %v991 = vsel %vm493, %v492, %v483
        %v992 = vsel %vm493, %v495, %v485
        %v993 = vsel %vm493, %v497, %v487
        %998 = vst [vmem:[#allocation2 + $0x284] sm:$0xff] %v991
        %999 = vst [vmem:[#allocation2 + $0x28c] sm:$0xff] %v992
        %1000 = vst [vmem:[#allocation2 + $0x294] sm:$0xff] %v993
        %1001 = vst.msk [vmem:[#allocation2 + $0x29c] sm:$0xf] %vm419, %v491
        %v1002 = vsel %vm520, %v519, %v510
        %v1003 = vsel %vm520, %v522, %v512
        %v1004 = vsel %vm520, %v524, %v514
        %1009 = vst [vmem:[#allocation2 + $0x2a0] sm:$0xff] %v1002
        %1010 = vst [vmem:[#allocation2 + $0x2a8] sm:$0xff] %v1003
        %1011 = vst [vmem:[#allocation2 + $0x2b0] sm:$0xff] %v1004
        %1012 = vst.msk [vmem:[#allocation2 + $0x2b8] sm:$0xf] %vm419, %v518
        %v1013 = vld [vmem:[%s1] sm:$0xff]
        %v1014 = vld [vmem:[#allocation2] sm:$0xff]
        %v1015 = vld [vmem:[#allocation2 + $0x8] sm:$0xff]
        %v1016 = vld [vmem:[#allocation2 + $0x10] sm:$0xff]
        %v1017 = vld [vmem:[#allocation2 + $0x18] sm:$0xf]
        %v1018 = vld [vmem:[#allocation2 + $0x1c] sm:$0xff]
        %v1019 = vld [vmem:[#allocation2 + $0x24] sm:$0xff]
        %v1020 = vld [vmem:[#allocation2 + $0x2c] sm:$0xff]
        %v1021 = vld [vmem:[#allocation2 + $0x34] sm:$0xf]
        %v1022 = vld [vmem:[#allocation2 + $0x38] sm:$0xff]
        %v1023 = vld [vmem:[#allocation2 + $0x40] sm:$0xff]
        %v1024 = vld [vmem:[#allocation2 + $0x48] sm:$0xff]
        %v1025 = vld [vmem:[#allocation2 + $0x50] sm:$0xf]
        %v1026 = vld [vmem:[#allocation2 + $0x54] sm:$0xff]
        %v1027 = vld [vmem:[#allocation2 + $0x5c] sm:$0xff]
        %v1028 = vld [vmem:[#allocation2 + $0x64] sm:$0xff]
        %v1029 = vld [vmem:[#allocation2 + $0x6c] sm:$0xf]
        %v1030 = vld [vmem:[#allocation2 + $0x70] sm:$0xff]
        %v1031 = vld [vmem:[#allocation2 + $0x78] sm:$0xff]
        %v1032 = vld [vmem:[#allocation2 + $0x80] sm:$0xff]
        %v1033 = vld [vmem:[#allocation2 + $0x88] sm:$0xf]
        %v1034 = vld [vmem:[#allocation2 + $0x8c] sm:$0xff]
        %v1035 = vld [vmem:[#allocation2 + $0x94] sm:$0xff]
        %v1036 = vld [vmem:[#allocation2 + $0x9c] sm:$0xff]
        %v1037 = vld [vmem:[#allocation2 + $0xa4] sm:$0xf]
        %v1038 = vld [vmem:[#allocation2 + $0xa8] sm:$0xff]
        %v1039 = vld [vmem:[#allocation2 + $0xb0] sm:$0xff]
        %v1040 = vld [vmem:[#allocation2 + $0xb8] sm:$0xff]
        %v1041 = vld [vmem:[#allocation2 + $0xc0] sm:$0xf]
        %v1042 = vld [vmem:[#allocation2 + $0xc4] sm:$0xff]
        %v1043 = vld [vmem:[#allocation2 + $0xcc] sm:$0xff]
        %v1044 = vld [vmem:[#allocation2 + $0xd4] sm:$0xff]
        %v1045 = vld [vmem:[#allocation2 + $0xdc] sm:$0xf]
        %v1046 = vld [vmem:[#allocation2 + $0xe0] sm:$0xff]
        %v1047 = vld [vmem:[#allocation2 + $0xe8] sm:$0xff]
        %v1048 = vld [vmem:[#allocation2 + $0xf0] sm:$0xff]
        %v1049 = vld [vmem:[#allocation2 + $0xf8] sm:$0xf]
        %v1050 = vld [vmem:[#allocation2 + $0xfc] sm:$0xff]
        %v1051 = vld [vmem:[#allocation2 + $0x104] sm:$0xff]
        %v1052 = vld [vmem:[#allocation2 + $0x10c] sm:$0xff]
        %v1053 = vld [vmem:[#allocation2 + $0x114] sm:$0xf]
        %v1054 = vld [vmem:[#allocation2 + $0x118] sm:$0xff]
        %v1055 = vld [vmem:[#allocation2 + $0x120] sm:$0xff]
        %v1056 = vld [vmem:[#allocation2 + $0x128] sm:$0xff]
        %v1057 = vld [vmem:[#allocation2 + $0x130] sm:$0xf]
        %v1058 = vld [vmem:[#allocation2 + $0x134] sm:$0xff]
        %v1059 = vld [vmem:[#allocation2 + $0x13c] sm:$0xff]
        %v1060 = vld [vmem:[#allocation2 + $0x144] sm:$0xff]
        %v1061 = vld [vmem:[#allocation2 + $0x14c] sm:$0xf]
        %v1062 = vld [vmem:[#allocation2 + $0x150] sm:$0xff]
        %v1063 = vld [vmem:[#allocation2 + $0x158] sm:$0xff]
        %v1064 = vld [vmem:[#allocation2 + $0x160] sm:$0xff]
        %v1065 = vld [vmem:[#allocation2 + $0x168] sm:$0xf]
        %v1066 = vld [vmem:[#allocation2 + $0x16c] sm:$0xff]
        %v1067 = vld [vmem:[#allocation2 + $0x174] sm:$0xff]
        %v1068 = vld [vmem:[#allocation2 + $0x17c] sm:$0xff]
        %v1069 = vld [vmem:[#allocation2 + $0x184] sm:$0xf]
        %v1070 = vld [vmem:[#allocation2 + $0x188] sm:$0xff]
        %v1071 = vld [vmem:[#allocation2 + $0x190] sm:$0xff]
        %v1072 = vld [vmem:[#allocation2 + $0x198] sm:$0xff]
        %v1073 = vld [vmem:[#allocation2 + $0x1a0] sm:$0xf]
        %v1074 = vld [vmem:[#allocation2 + $0x1a4] sm:$0xff]
        %v1075 = vld [vmem:[#allocation2 + $0x1ac] sm:$0xff]
        %v1076 = vld [vmem:[#allocation2 + $0x1b4] sm:$0xff]
        %v1077 = vld [vmem:[#allocation2 + $0x1bc] sm:$0xf]
        %v1078 = vld [vmem:[#allocation2 + $0x1c0] sm:$0xff]
        %v1079 = vld [vmem:[#allocation2 + $0x1c8] sm:$0xff]
        %v1080 = vld [vmem:[#allocation2 + $0x1d0] sm:$0xff]
        %v1081 = vld [vmem:[#allocation2 + $0x1d8] sm:$0xf]
        %v1082 = vld [vmem:[#allocation2 + $0x1dc] sm:$0xff]
        %v1083 = vld [vmem:[#allocation2 + $0x1e4] sm:$0xff]
        %v1084 = vld [vmem:[#allocation2 + $0x1ec] sm:$0xff]
        %v1085 = vld [vmem:[#allocation2 + $0x1f4] sm:$0xf]
        %v1086 = vld [vmem:[#allocation2 + $0x1f8] sm:$0xff]
        %v1087 = vld [vmem:[#allocation2 + $0x200] sm:$0xff]
        %v1088 = vld [vmem:[#allocation2 + $0x208] sm:$0xff]
        %v1089 = vld [vmem:[#allocation2 + $0x210] sm:$0xf]
        %v1090 = vld [vmem:[#allocation2 + $0x214] sm:$0xff]
        %v1091 = vld [vmem:[#allocation2 + $0x21c] sm:$0xff]
        %v1092 = vld [vmem:[#allocation2 + $0x224] sm:$0xff]
        %v1093 = vld [vmem:[#allocation2 + $0x22c] sm:$0xf]
        %v1094 = vld [vmem:[#allocation2 + $0x230] sm:$0xff]
        %v1095 = vld [vmem:[#allocation2 + $0x238] sm:$0xff]
        %v1096 = vld [vmem:[#allocation2 + $0x240] sm:$0xff]
        %v1097 = vld [vmem:[#allocation2 + $0x248] sm:$0xf]
        %v1098 = vld [vmem:[#allocation2 + $0x24c] sm:$0xff]
        %v1099 = vld [vmem:[#allocation2 + $0x254] sm:$0xff]
        %v1100 = vld [vmem:[#allocation2 + $0x25c] sm:$0xff]
        %v1101 = vld [vmem:[#allocation2 + $0x264] sm:$0xf]
        %v1102 = vld [vmem:[#allocation2 + $0x268] sm:$0xff]
        %v1103 = vld [vmem:[#allocation2 + $0x270] sm:$0xff]
        %v1104 = vld [vmem:[#allocation2 + $0x278] sm:$0xff]
        %v1105 = vld [vmem:[#allocation2 + $0x280] sm:$0xf]
        %v1106 = vld [vmem:[#allocation2 + $0x284] sm:$0xff]
        %v1107 = vld [vmem:[#allocation2 + $0x28c] sm:$0xff]
        %v1108 = vld [vmem:[#allocation2 + $0x294] sm:$0xff]
        %v1109 = vld [vmem:[#allocation2 + $0x29c] sm:$0xf]
        %v1110 = vld [vmem:[#allocation2 + $0x2a0] sm:$0xff]
        %v1111 = vld [vmem:[#allocation2 + $0x2a8] sm:$0xff]
        %v1112 = vld [vmem:[#allocation2 + $0x2b0] sm:$0xff]
        %v1113 = vld [vmem:[#allocation2 + $0x2b8] sm:$0xf]
        %v1114 = vld [vmem:[%s2] sm:$0xff]
        %1116 = vset.pattern.permute.xlu0 0
        %1117 = vperm.xlu0 %1116, %v1114
        %v1118 = vpop.permute.xlu0 %1117
        %v1121 = vunpack.c.l.b16 %v1013
        %v1122 = vunpack.c.h.b16 %v1013
        %v1123 = vpack.c.b16 %v1121, %v1121
        %v1124 = vpack.c.b16 %v1122, %v1122
        %v1226 = vunpack.c.l.b16 %v1014
        %v1227 = vunpack.c.h.b16 %v1014
        %v1228 = vunpack.c.l.b16 %v1015
        %v1229 = vunpack.c.h.b16 %v1015
        %v1230 = vunpack.c.l.b16 %v1016
        %v1231 = vunpack.c.h.b16 %v1016
        %v1232 = vunpack.c.l.b16 %v1017
        %v1233 = vunpack.c.l.b16 %v1018
        %v1234 = vunpack.c.h.b16 %v1018
        %v1235 = vunpack.c.l.b16 %v1019
        %v1236 = vunpack.c.h.b16 %v1019
        %v1237 = vunpack.c.l.b16 %v1020
        %v1238 = vunpack.c.h.b16 %v1020
        %v1239 = vunpack.c.l.b16 %v1021
        %v1240 = vunpack.c.l.b16 %v1022
        %v1241 = vunpack.c.h.b16 %v1022
        %v1242 = vunpack.c.l.b16 %v1023
        %v1243 = vunpack.c.h.b16 %v1023
        %v1244 = vunpack.c.l.b16 %v1024
        %v1245 = vunpack.c.h.b16 %v1024
        %v1246 = vunpack.c.l.b16 %v1025
        %v1247 = vunpack.c.l.b16 %v1026
        %v1248 = vunpack.c.h.b16 %v1026
        %v1249 = vunpack.c.l.b16 %v1027
        %v1250 = vunpack.c.h.b16 %v1027
        %v1251 = vunpack.c.l.b16 %v1028
        %v1252 = vunpack.c.h.b16 %v1028
        %v1253 = vunpack.c.l.b16 %v1029
        %v1254 = vunpack.c.l.b16 %v1030
        %v1255 = vunpack.c.h.b16 %v1030
        %v1256 = vunpack.c.l.b16 %v1031
        %v1257 = vunpack.c.h.b16 %v1031
        %v1258 = vunpack.c.l.b16 %v1032
        %v1259 = vunpack.c.h.b16 %v1032
        %v1260 = vunpack.c.l.b16 %v1033
        %v1261 = vunpack.c.l.b16 %v1034
        %v1262 = vunpack.c.h.b16 %v1034
        %v1263 = vunpack.c.l.b16 %v1035
        %v1264 = vunpack.c.h.b16 %v1035
        %v1265 = vunpack.c.l.b16 %v1036
        %v1266 = vunpack.c.h.b16 %v1036
        %v1267 = vunpack.c.l.b16 %v1037
        %v1268 = vunpack.c.l.b16 %v1038
        %v1269 = vunpack.c.h.b16 %v1038
        %v1270 = vunpack.c.l.b16 %v1039
        %v1271 = vunpack.c.h.b16 %v1039
        %v1272 = vunpack.c.l.b16 %v1040
        %v1273 = vunpack.c.h.b16 %v1040
        %v1274 = vunpack.c.l.b16 %v1041
        %v1275 = vunpack.c.l.b16 %v1042
        %v1276 = vunpack.c.h.b16 %v1042
        %v1277 = vunpack.c.l.b16 %v1043
        %v1278 = vunpack.c.h.b16 %v1043
        %v1279 = vunpack.c.l.b16 %v1044
        %v1280 = vunpack.c.h.b16 %v1044
        %v1281 = vunpack.c.l.b16 %v1045
        %v1282 = vunpack.c.l.b16 %v1046
        %v1283 = vunpack.c.h.b16 %v1046
        %v1284 = vunpack.c.l.b16 %v1047
        %v1285 = vunpack.c.h.b16 %v1047
        %v1286 = vunpack.c.l.b16 %v1048
        %v1287 = vunpack.c.h.b16 %v1048
        %v1288 = vunpack.c.l.b16 %v1049
        %v1289 = vunpack.c.l.b16 %v1050
        %v1290 = vunpack.c.h.b16 %v1050
        %v1291 = vunpack.c.l.b16 %v1051
        %v1292 = vunpack.c.h.b16 %v1051
        %v1293 = vunpack.c.l.b16 %v1052
        %v1294 = vunpack.c.h.b16 %v1052
        %v1295 = vunpack.c.l.b16 %v1053
        %v1296 = vunpack.c.l.b16 %v1054
        %v1297 = vunpack.c.h.b16 %v1054
        %v1298 = vunpack.c.l.b16 %v1055
        %v1299 = vunpack.c.h.b16 %v1055
        %v1300 = vunpack.c.l.b16 %v1056
        %v1301 = vunpack.c.h.b16 %v1056
        %v1302 = vunpack.c.l.b16 %v1057
        %v1303 = vunpack.c.l.b16 %v1058
        %v1304 = vunpack.c.h.b16 %v1058
        %v1305 = vunpack.c.l.b16 %v1059
        %v1306 = vunpack.c.h.b16 %v1059
        %v1307 = vunpack.c.l.b16 %v1060
        %v1308 = vunpack.c.h.b16 %v1060
        %v1309 = vunpack.c.l.b16 %v1061
        %v1310 = vunpack.c.l.b16 %v1062
        %v1311 = vunpack.c.h.b16 %v1062
        %v1312 = vunpack.c.l.b16 %v1063
        %v1313 = vunpack.c.h.b16 %v1063
        %v1314 = vunpack.c.l.b16 %v1064
        %v1315 = vunpack.c.h.b16 %v1064
        %v1316 = vunpack.c.l.b16 %v1065
        %v1317 = vunpack.c.l.b16 %v1066
        %v1318 = vunpack.c.h.b16 %v1066
        %v1319 = vunpack.c.l.b16 %v1067
        %v1320 = vunpack.c.h.b16 %v1067
        %v1321 = vunpack.c.l.b16 %v1068
        %v1322 = vunpack.c.h.b16 %v1068
        %v1323 = vunpack.c.l.b16 %v1069
        %v1324 = vunpack.c.l.b16 %v1070
        %v1325 = vunpack.c.h.b16 %v1070
        %v1326 = vunpack.c.l.b16 %v1071
        %v1327 = vunpack.c.h.b16 %v1071
        %v1328 = vunpack.c.l.b16 %v1072
        %v1329 = vunpack.c.h.b16 %v1072
        %v1330 = vunpack.c.l.b16 %v1073
        %v1331 = vunpack.c.l.b16 %v1074
        %v1332 = vunpack.c.h.b16 %v1074
        %v1333 = vunpack.c.l.b16 %v1075
        %v1334 = vunpack.c.h.b16 %v1075
        %v1335 = vunpack.c.l.b16 %v1076
        %v1336 = vunpack.c.h.b16 %v1076
        %v1337 = vunpack.c.l.b16 %v1077
        %v1338 = vunpack.c.l.b16 %v1078
        %v1339 = vunpack.c.h.b16 %v1078
        %v1340 = vunpack.c.l.b16 %v1079
        %v1341 = vunpack.c.h.b16 %v1079
        %v1342 = vunpack.c.l.b16 %v1080
        %v1343 = vunpack.c.h.b16 %v1080
        %v1344 = vunpack.c.l.b16 %v1081
        %v1345 = vunpack.c.l.b16 %v1082
        %v1346 = vunpack.c.h.b16 %v1082
        %v1347 = vunpack.c.l.b16 %v1083
        %v1348 = vunpack.c.h.b16 %v1083
        %v1349 = vunpack.c.l.b16 %v1084
        %v1350 = vunpack.c.h.b16 %v1084
        %v1351 = vunpack.c.l.b16 %v1085
        %v1352 = vunpack.c.l.b16 %v1086
        %v1353 = vunpack.c.h.b16 %v1086
        %v1354 = vunpack.c.l.b16 %v1087
        %v1355 = vunpack.c.h.b16 %v1087
        %v1356 = vunpack.c.l.b16 %v1088
        %v1357 = vunpack.c.h.b16 %v1088
        %v1358 = vunpack.c.l.b16 %v1089
        %v1359 = vunpack.c.l.b16 %v1090
        %v1360 = vunpack.c.h.b16 %v1090
        %v1361 = vunpack.c.l.b16 %v1091
        %v1362 = vunpack.c.h.b16 %v1091
        %v1363 = vunpack.c.l.b16 %v1092
        %v1364 = vunpack.c.h.b16 %v1092
        %v1365 = vunpack.c.l.b16 %v1093
        %v1366 = vunpack.c.l.b16 %v1094
        %v1367 = vunpack.c.h.b16 %v1094
        %v1368 = vunpack.c.l.b16 %v1095
        %v1369 = vunpack.c.h.b16 %v1095
        %v1370 = vunpack.c.l.b16 %v1096
        %v1371 = vunpack.c.h.b16 %v1096
        %v1372 = vunpack.c.l.b16 %v1097
        %v1373 = vunpack.c.l.b16 %v1098
        %v1374 = vunpack.c.h.b16 %v1098
        %v1375 = vunpack.c.l.b16 %v1099
        %v1376 = vunpack.c.h.b16 %v1099
        %v1377 = vunpack.c.l.b16 %v1100
        %v1378 = vunpack.c.h.b16 %v1100
        %v1379 = vunpack.c.l.b16 %v1101
        %v1380 = vunpack.c.l.b16 %v1102
        %v1381 = vunpack.c.h.b16 %v1102
        %v1382 = vunpack.c.l.b16 %v1103
        %v1383 = vunpack.c.h.b16 %v1103
        %v1384 = vunpack.c.l.b16 %v1104
        %v1385 = vunpack.c.h.b16 %v1104
        %v1386 = vunpack.c.l.b16 %v1105
        %v1387 = vunpack.c.l.b16 %v1106
        %v1388 = vunpack.c.h.b16 %v1106
        %v1389 = vunpack.c.l.b16 %v1107
        %v1390 = vunpack.c.h.b16 %v1107
        %v1391 = vunpack.c.l.b16 %v1108
        %v1392 = vunpack.c.h.b16 %v1108
        %v1393 = vunpack.c.l.b16 %v1109
        %v1394 = vunpack.c.l.b16 %v1110
        %v1395 = vunpack.c.h.b16 %v1110
        %v1396 = vunpack.c.l.b16 %v1111
        %v1397 = vunpack.c.h.b16 %v1111
        %v1398 = vunpack.c.l.b16 %v1112
        %v1399 = vunpack.c.h.b16 %v1112
        %v1400 = vunpack.c.l.b16 %v1113
        %v1401 = vpack.c.b16 %v1233, %v1226
        %v1402 = vpack.c.b16 %v1234, %v1227
        %v1403 = vpack.c.b16 %v1235, %v1228
        %v1404 = vpack.c.b16 %v1236, %v1229
        %v1405 = vpack.c.b16 %v1237, %v1230
        %v1406 = vpack.c.b16 %v1238, %v1231
        %v1407 = vpack.c.b16 %v1239, %v1232
        %v1408 = vpack.c.b16 %v1247, %v1240
        %v1409 = vpack.c.b16 %v1248, %v1241
        %v1410 = vpack.c.b16 %v1249, %v1242
        %v1411 = vpack.c.b16 %v1250, %v1243
        %v1412 = vpack.c.b16 %v1251, %v1244
        %v1413 = vpack.c.b16 %v1252, %v1245
        %v1414 = vpack.c.b16 %v1253, %v1246
        %v1415 = vpack.c.b16 %v1261, %v1254
        %v1416 = vpack.c.b16 %v1262, %v1255
        %v1417 = vpack.c.b16 %v1263, %v1256
        %v1418 = vpack.c.b16 %v1264, %v1257
        %v1419 = vpack.c.b16 %v1265, %v1258
        %v1420 = vpack.c.b16 %v1266, %v1259
        %v1421 = vpack.c.b16 %v1267, %v1260
        %v1422 = vpack.c.b16 %v1275, %v1268
        %v1423 = vpack.c.b16 %v1276, %v1269
        %v1424 = vpack.c.b16 %v1277, %v1270
        %v1425 = vpack.c.b16 %v1278, %v1271
        %v1426 = vpack.c.b16 %v1279, %v1272
        %v1427 = vpack.c.b16 %v1280, %v1273
        %v1428 = vpack.c.b16 %v1281, %v1274
        %v1429 = vpack.c.b16 %v1289, %v1282
        %v1430 = vpack.c.b16 %v1290, %v1283
        %v1431 = vpack.c.b16 %v1291, %v1284
        %v1432 = vpack.c.b16 %v1292, %v1285
        %v1433 = vpack.c.b16 %v1293, %v1286
        %v1434 = vpack.c.b16 %v1294, %v1287
        %v1435 = vpack.c.b16 %v1295, %v1288
        %v1436 = vpack.c.b16 %v1303, %v1296
        %v1437 = vpack.c.b16 %v1304, %v1297
        %v1438 = vpack.c.b16 %v1305, %v1298
        %v1439 = vpack.c.b16 %v1306, %v1299
        %v1440 = vpack.c.b16 %v1307, %v1300
        %v1441 = vpack.c.b16 %v1308, %v1301
        %v1442 = vpack.c.b16 %v1309, %v1302
        %v1443 = vpack.c.b16 %v1317, %v1310
        %v1444 = vpack.c.b16 %v1318, %v1311
        %v1445 = vpack.c.b16 %v1319, %v1312
        %v1446 = vpack.c.b16 %v1320, %v1313
        %v1447 = vpack.c.b16 %v1321, %v1314
        %v1448 = vpack.c.b16 %v1322, %v1315
        %v1449 = vpack.c.b16 %v1323, %v1316
        %v1450 = vpack.c.b16 %v1331, %v1324
        %v1451 = vpack.c.b16 %v1332, %v1325
        %v1452 = vpack.c.b16 %v1333, %v1326
        %v1453 = vpack.c.b16 %v1334, %v1327
        %v1454 = vpack.c.b16 %v1335, %v1328
        %v1455 = vpack.c.b16 %v1336, %v1329
        %v1456 = vpack.c.b16 %v1337, %v1330
        %v1457 = vpack.c.b16 %v1345, %v1338
        %v1458 = vpack.c.b16 %v1346, %v1339
        %v1459 = vpack.c.b16 %v1347, %v1340
        %v1460 = vpack.c.b16 %v1348, %v1341
        %v1461 = vpack.c.b16 %v1349, %v1342
        %v1462 = vpack.c.b16 %v1350, %v1343
        %v1463 = vpack.c.b16 %v1351, %v1344
        %v1464 = vpack.c.b16 %v1359, %v1352
        %v1465 = vpack.c.b16 %v1360, %v1353
        %v1466 = vpack.c.b16 %v1361, %v1354
        %v1467 = vpack.c.b16 %v1362, %v1355
        %v1468 = vpack.c.b16 %v1363, %v1356
        %v1469 = vpack.c.b16 %v1364, %v1357
        %v1470 = vpack.c.b16 %v1365, %v1358
        %v1471 = vpack.c.b16 %v1373, %v1366
        %v1472 = vpack.c.b16 %v1374, %v1367
        %v1473 = vpack.c.b16 %v1375, %v1368
        %v1474 = vpack.c.b16 %v1376, %v1369
        %v1475 = vpack.c.b16 %v1377, %v1370
        %v1476 = vpack.c.b16 %v1378, %v1371
        %v1477 = vpack.c.b16 %v1379, %v1372
        %v1478 = vpack.c.b16 %v1387, %v1380
        %v1479 = vpack.c.b16 %v1388, %v1381
        %v1480 = vpack.c.b16 %v1389, %v1382
        %v1481 = vpack.c.b16 %v1390, %v1383
        %v1482 = vpack.c.b16 %v1391, %v1384
        %v1483 = vpack.c.b16 %v1392, %v1385
        %v1484 = vpack.c.b16 %v1393, %v1386
        %v1485 = vpack.c.b16 %v1394, %v1394
        %v1486 = vpack.c.b16 %v1395, %v1395
        %v1487 = vpack.c.b16 %v1396, %v1396
        %v1488 = vpack.c.b16 %v1397, %v1397
        %v1489 = vpack.c.b16 %v1398, %v1398
        %v1490 = vpack.c.b16 %v1399, %v1399
        %v1491 = vpack.c.b16 %v1400, %v1400
        %vm1576 = vcmask 588800
        %v1578 = vsel %vm1576, %v1124, 0
        %vm1580 = vcmask 1043456
        %v1582 = vsel %vm1580, %v1485, 0
        %v1585 = vsel %vm1580, %v1486, 0
        %v1588 = vsel %vm1580, %v1487, 0
        %v1591 = vsel %vm1580, %v1488, 0
        %v1594 = vsel %vm1580, %v1489, 0
        %v1597 = vsel %vm1580, %v1490, 0
        %v1600 = vsel %vm1580, %v1491, 0
        %1602 = vmatprep.subr.bf16.mxu0 %v1451
        %1603 = vmatpush1.bf16.msra.mxu0 %v1450
        %1604 = vmatprep.subr.bf16.mxu0 %v1444
        %1605 = vmatpush1.bf16.msra.mxu0 %v1443
        %1606 = vmatprep.subr.bf16.mxu0 %v1437
        %1607 = vmatpush1.bf16.msra.mxu0 %v1436
        %1608 = vmatprep.subr.bf16.mxu0 %v1430
        %1609 = vmatpush1.bf16.msra.mxu0 %v1429
        %1610 = vmatprep.subr.bf16.mxu0 %v1423
        %1611 = vmatpush1.bf16.msra.mxu0 %v1422
        %1612 = vmatprep.subr.bf16.mxu0 %v1416
        %1613 = vmatpush1.bf16.msra.mxu0 %v1415
        %1614 = vmatprep.subr.bf16.mxu0 %v1409
        %1615 = vmatpush1.bf16.msra.mxu0 %v1408
        %1616 = vmatprep.subr.bf16.mxu0 %v1402
        %1617 = vmatpush1.bf16.msra.mxu0 %v1401
        %1618 = vmatprep.subr.bf16.mxu0 0
        %1619 = vmatpush2.bf16.msra.mxu0 0
        %1620 = vmatprep.subr.bf16.mxu0 0
        %1621 = vmatpush2.bf16.msra.mxu0 0
        %1622 = vmatprep.subr.bf16.mxu0 0
        %1623 = vmatpush2.bf16.msra.mxu0 0
        %1624 = vmatprep.subr.bf16.mxu0 %v1585
        %1625 = vmatpush2.bf16.msra.mxu0 %v1582
        %1626 = vmatprep.subr.bf16.mxu0 %v1479
        %1627 = vmatpush2.bf16.msra.mxu0 %v1478
        %1628 = vmatprep.subr.bf16.mxu0 %v1472
        %1629 = vmatpush2.bf16.msra.mxu0 %v1471
        %1630 = vmatprep.subr.bf16.mxu0 %v1465
        %1631 = vmatpush2.bf16.msra.mxu0 %v1464
        %1632 = vmatprep.subr.bf16.mxu0 %v1458
        %1633 = vmatpush2.bf16.msra.mxu0 %v1457
        %1634 = vmatprep.mubr.bf16.mxu0 %v1578
        %1635 = vmatmul.mubr.bf16.gmra.mxu0 %v1123
        %v1636 = vpop.f32.mrf.mxu0
        %v1637 = vadd.f32 %v1118, %v1636
        %v1638 = vpop.f32.mrf.mxu0
        %v1639 = vadd.f32 %v1118, %v1638
        %v1640 = vpop.f32.mrf.mxu0
        %v1641 = vpop.f32.mrf.mxu0
        %1642 = vdwg.mxu0
        %1643 = vmatprep.subr.bf16.mxu0 %v1453
        %1644 = vmatpush1.bf16.msra.mxu0 %v1452
        %1645 = vmatprep.subr.bf16.mxu0 %v1446
        %1646 = vmatpush1.bf16.msra.mxu0 %v1445
        %1647 = vmatprep.subr.bf16.mxu0 %v1439
        %1648 = vmatpush1.bf16.msra.mxu0 %v1438
        %1649 = vmatprep.subr.bf16.mxu0 %v1432
        %1650 = vmatpush1.bf16.msra.mxu0 %v1431
        %1651 = vmatprep.subr.bf16.mxu0 %v1425
        %1652 = vmatpush1.bf16.msra.mxu0 %v1424
        %1653 = vmatprep.subr.bf16.mxu0 %v1418
        %1654 = vmatpush1.bf16.msra.mxu0 %v1417
        %1655 = vmatprep.subr.bf16.mxu0 %v1411
        %1656 = vmatpush1.bf16.msra.mxu0 %v1410
        %1657 = vmatprep.subr.bf16.mxu0 %v1404
        %1658 = vmatpush1.bf16.msra.mxu0 %v1403
        %1659 = vmatprep.subr.bf16.mxu0 0
        %1660 = vmatpush2.bf16.msra.mxu0 0
        %1661 = vmatprep.subr.bf16.mxu0 0
        %1662 = vmatpush2.bf16.msra.mxu0 0
        %1663 = vmatprep.subr.bf16.mxu0 0
        %1664 = vmatpush2.bf16.msra.mxu0 0
        %1665 = vmatprep.subr.bf16.mxu0 %v1591
        %1666 = vmatpush2.bf16.msra.mxu0 %v1588
        %1667 = vmatprep.subr.bf16.mxu0 %v1481
        %1668 = vmatpush2.bf16.msra.mxu0 %v1480
        %1669 = vmatprep.subr.bf16.mxu0 %v1474
        %1670 = vmatpush2.bf16.msra.mxu0 %v1473
        %1671 = vmatprep.subr.bf16.mxu0 %v1467
        %1672 = vmatpush2.bf16.msra.mxu0 %v1466
        %1673 = vmatprep.subr.bf16.mxu0 %v1460
        %1674 = vmatpush2.bf16.msra.mxu0 %v1459
        %1675 = vmatprep.mubr.bf16.mxu0 %v1578
        %1676 = vmatmul.mubr.bf16.gmra.mxu0 %v1123
        %v1677 = vpop.f32.mrf.mxu0
        %v1678 = vadd.f32 %v1118, %v1677
        %v1679 = vpop.f32.mrf.mxu0
        %v1680 = vadd.f32 %v1118, %v1679
        %v1681 = vpop.f32.mrf.mxu0
        %v1682 = vpop.f32.mrf.mxu0
        %1683 = vdwg.mxu0
        %1684 = vmatprep.subr.bf16.mxu0 %v1455
        %1685 = vmatpush1.bf16.msra.mxu0 %v1454
        %1686 = vmatprep.subr.bf16.mxu0 %v1448
        %1687 = vmatpush1.bf16.msra.mxu0 %v1447
        %1688 = vmatprep.subr.bf16.mxu0 %v1441
        %1689 = vmatpush1.bf16.msra.mxu0 %v1440
        %1690 = vmatprep.subr.bf16.mxu0 %v1434
        %1691 = vmatpush1.bf16.msra.mxu0 %v1433
        %1692 = vmatprep.subr.bf16.mxu0 %v1427
        %1693 = vmatpush1.bf16.msra.mxu0 %v1426
        %1694 = vmatprep.subr.bf16.mxu0 %v1420
        %1695 = vmatpush1.bf16.msra.mxu0 %v1419
        %1696 = vmatprep.subr.bf16.mxu0 %v1413
        %1697 = vmatpush1.bf16.msra.mxu0 %v1412
        %1698 = vmatprep.subr.bf16.mxu0 %v1406
        %1699 = vmatpush1.bf16.msra.mxu0 %v1405
        %1700 = vmatprep.subr.bf16.mxu0 0
        %1701 = vmatpush2.bf16.msra.mxu0 0
        %1702 = vmatprep.subr.bf16.mxu0 0
        %1703 = vmatpush2.bf16.msra.mxu0 0
        %1704 = vmatprep.subr.bf16.mxu0 0
        %1705 = vmatpush2.bf16.msra.mxu0 0
        %1706 = vmatprep.subr.bf16.mxu0 %v1597
        %1707 = vmatpush2.bf16.msra.mxu0 %v1594
        %1708 = vmatprep.subr.bf16.mxu0 %v1483
        %1709 = vmatpush2.bf16.msra.mxu0 %v1482
        %1710 = vmatprep.subr.bf16.mxu0 %v1476
        %1711 = vmatpush2.bf16.msra.mxu0 %v1475
        %1712 = vmatprep.subr.bf16.mxu0 %v1469
        %1713 = vmatpush2.bf16.msra.mxu0 %v1468
        %1714 = vmatprep.subr.bf16.mxu0 %v1462
        %1715 = vmatpush2.bf16.msra.mxu0 %v1461
        %1716 = vmatprep.mubr.bf16.mxu0 %v1578
        %1717 = vmatmul.mubr.bf16.gmra.mxu0 %v1123
        %v1718 = vpop.f32.mrf.mxu0
        %v1719 = vadd.f32 %v1118, %v1718
        %v1720 = vpop.f32.mrf.mxu0
        %v1721 = vadd.f32 %v1118, %v1720
        %v1722 = vpop.f32.mrf.mxu0
        %v1723 = vpop.f32.mrf.mxu0
        %1724 = vdwg.mxu0
        %1725 = vmatprep.subr.bf16.mxu0 0
        %1726 = vmatpush1.bf16.msra.mxu0 %v1456
        %1727 = vmatprep.subr.bf16.mxu0 0
        %1728 = vmatpush1.bf16.msra.mxu0 %v1449
        %1729 = vmatprep.subr.bf16.mxu0 0
        %1730 = vmatpush1.bf16.msra.mxu0 %v1442
        %1731 = vmatprep.subr.bf16.mxu0 0
        %1732 = vmatpush1.bf16.msra.mxu0 %v1435
        %1733 = vmatprep.subr.bf16.mxu0 0
        %1734 = vmatpush1.bf16.msra.mxu0 %v1428
        %1735 = vmatprep.subr.bf16.mxu0 0
        %1736 = vmatpush1.bf16.msra.mxu0 %v1421
        %1737 = vmatprep.subr.bf16.mxu0 0
        %1738 = vmatpush1.bf16.msra.mxu0 %v1414
        %1739 = vmatprep.subr.bf16.mxu0 0
        %1740 = vmatpush1.bf16.msra.mxu0 %v1407
        %1741 = vmatprep.subr.bf16.mxu0 0
        %1742 = vmatpush2.bf16.msra.mxu0 0
        %1743 = vmatprep.subr.bf16.mxu0 0
        %1744 = vmatpush2.bf16.msra.mxu0 0
        %1745 = vmatprep.subr.bf16.mxu0 0
        %1746 = vmatpush2.bf16.msra.mxu0 0
        %1747 = vmatprep.subr.bf16.mxu0 0
        %1748 = vmatpush2.bf16.msra.mxu0 %v1600
        %1749 = vmatprep.subr.bf16.mxu0 0
        %1750 = vmatpush2.bf16.msra.mxu0 %v1484
        %1751 = vmatprep.subr.bf16.mxu0 0
        %1752 = vmatpush2.bf16.msra.mxu0 %v1477
        %1753 = vmatprep.subr.bf16.mxu0 0
        %1754 = vmatpush2.bf16.msra.mxu0 %v1470
        %1755 = vmatprep.subr.bf16.mxu0 0
        %1756 = vmatpush2.bf16.msra.mxu0 %v1463
        %1757 = vmatprep.mubr.bf16.mxu0 %v1578
        %1758 = vmatmul.mubr.bf16.gmra.mxu0 %v1123
        %v1759 = vpop.f32.mrf.mxu0
        %v1760 = vadd.f32 %v1118, %v1759
        %v1761 = vpop.f32.mrf.mxu0
        %v1762 = vpop.f32.mrf.mxu0
        %v1763 = vpop.f32.mrf.mxu0
        %1764 = vdwg.mxu0
        %v1765 = vmax.f32 %v1637, 0.0
        %v1766 = vmax.f32 %v1639, 0.0
        %v1767 = vmax.f32 %v1678, 0.0
        %v1768 = vmax.f32 %v1680, 0.0
        %v1769 = vmax.f32 %v1719, 0.0
        %v1770 = vmax.f32 %v1721, 0.0
        %v1771 = vmax.f32 %v1760, 0.0
        %1779 = vrot.lane.b32.xlu0 %v1765, 127
        %v1780 = vpop.permute.xlu0 %1779
        %1781 = vrot.lane.b32.xlu0 %v1766, 127
        %v1782 = vpop.permute.xlu0 %1781
        %1783 = vrot.lane.b32.xlu0 %v1767, 127
        %v1784 = vpop.permute.xlu0 %1783
        %1785 = vrot.lane.b32.xlu0 %v1768, 127
        %v1786 = vpop.permute.xlu0 %1785
        %1787 = vrot.lane.b32.xlu0 %v1769, 127
        %v1788 = vpop.permute.xlu0 %1787
        %1789 = vrot.lane.b32.xlu0 %v1770, 127
        %v1790 = vpop.permute.xlu0 %1789
        %1791 = vrot.lane.b32.xlu0 %v1771, 127
        %v1792 = vpop.permute.xlu0 %1791
        %vm1793 = vcmask 1039360
        %v1794 = vsel %vm1793, %v1780, %v1782
        %v1795 = vsel %vm1793, %v1782, %v1784
        %v1796 = vsel %vm1793, %v1784, %v1786
        %v1797 = vsel %vm1793, %v1786, %v1788
        %v1798 = vsel %vm1793, %v1788, %v1790
        %v1799 = vsel %vm1793, %v1790, %v1792
        %v1807 = vmax.f32 %v1765, %v1794
        %v1808 = vmax.f32 %v1766, %v1795
        %v1809 = vmax.f32 %v1767, %v1796
        %v1810 = vmax.f32 %v1768, %v1797
        %v1811 = vmax.f32 %v1769, %v1798
        %v1812 = vmax.f32 %v1770, %v1799
        %v1813 = vmax.f32 %v1771, %v1792
        %1821 = vrot.lane.b32.xlu0 %v1807, 96
        %v1822 = vpop.permute.xlu0 %1821
        %1823 = vrot.lane.b32.xlu0 %v1808, 96
        %v1824 = vpop.permute.xlu0 %1823
        %1825 = vrot.lane.b32.xlu0 %v1809, 96
        %v1826 = vpop.permute.xlu0 %1825
        %1827 = vrot.lane.b32.xlu0 %v1810, 96
        %v1828 = vpop.permute.xlu0 %1827
        %1829 = vrot.lane.b32.xlu0 %v1811, 96
        %v1830 = vpop.permute.xlu0 %1829
        %1831 = vrot.lane.b32.xlu0 %v1812, 96
        %v1832 = vpop.permute.xlu0 %1831
        %1833 = vrot.lane.b32.xlu0 %v1813, 96
        %v1834 = vpop.permute.xlu0 %1833
        %vm1835 = vcmask 785408
        %v1836 = vsel %vm1835, %v1822, %v1824
        %v1837 = vsel %vm1835, %v1824, %v1826
        %v1838 = vsel %vm1835, %v1826, %v1828
        %v1839 = vsel %vm1835, %v1828, %v1830
        %v1840 = vsel %vm1835, %v1830, %v1832
        %v1841 = vsel %vm1835, %v1832, %v1834
        %v1849 = vmax.f32 %v1807, %v1836
        %v1850 = vmax.f32 %v1808, %v1837
        %v1851 = vmax.f32 %v1809, %v1838
        %v1852 = vmax.f32 %v1810, %v1839
        %v1853 = vmax.f32 %v1811, %v1840
        %v1854 = vmax.f32 %v1812, %v1841
        %v1855 = vmax.f32 %v1813, %v1834
        %v1856 = vpack.c.bf16 %v1849, %v1849
        %v1857 = vpack.c.bf16 %v1850, %v1850
        %v1858 = vpack.c.bf16 %v1851, %v1851
        %v1859 = vpack.c.bf16 %v1852, %v1852
        %v1860 = vpack.c.bf16 %v1853, %v1853
        %v1861 = vpack.c.bf16 %v1854, %v1854
        %v1862 = vpack.c.bf16 %v1855, %v1855
        %v1868 = vunpack.c.l.b16 %v1856
        %v1869 = vunpack.c.l.b16 %v1857
        %v1870 = vunpack.c.l.b16 %v1858
        %v1871 = vunpack.c.l.b16 %v1859
        %v1872 = vunpack.c.l.b16 %v1860
        %v1873 = vpack.c.b16 %v1869, %v1868
        %v1874 = vpack.c.b16 %v1871, %v1870
        %v1875 = vpack.c.b16 %v1872, %v1872
        %1879 = vst [vmem:[#allocation3] sm:$0xff] %v1873
        %1880 = vst [vmem:[#allocation3 + $0x8] sm:$0xff] %v1874
        %vm1881 = vcmask 674816
        %1882 = vst.msk [vmem:[#allocation3 + $0x10] sm:$0xf] %vm1881, %v1875
        %1883 = vrot.lane.b32.xlu0 %v1873, 126
        %v1884 = vpop.permute.xlu0 %1883
        %1885 = vrot.lane.b32.xlu0 %v1874, 126
        %v1886 = vpop.permute.xlu0 %1885
        %1887 = vrot.lane.b32.xlu0 %v1875, 126
        %v1888 = vpop.permute.xlu0 %1887
        %v1889 = vrot.slane %v1884, 4
        %v1890 = vrot.slane %v1886, 4
        %v1891 = vrot.slane %v1888, 4
        %v1892 = vsel %vm437, %v1889, %v1890
        %v1893 = vsel %vm466, %v1884, %v1892
        %v1894 = vsel %vm437, %v1890, %v1891
        %v1895 = vsel %vm466, %v1886, %v1894
        %1899 = vst [vmem:[#allocation3 + $0x14] sm:$0xff] %v1893
        %1900 = vst [vmem:[#allocation3 + $0x1c] sm:$0xff] %v1895
        %1901 = vst.msk [vmem:[#allocation3 + $0x24] sm:$0xf] %vm1881, %v1888
        %1902 = vrot.lane.b32.xlu0 %v1873, 124
        %v1903 = vpop.permute.xlu0 %1902
        %1904 = vrot.lane.b32.xlu0 %v1874, 124
        %v1905 = vpop.permute.xlu0 %1904
        %1906 = vrot.lane.b32.xlu0 %v1875, 124
        %v1907 = vpop.permute.xlu0 %1906
        %v1908 = vrot.slane %v1903, 4
        %v1909 = vrot.slane %v1905, 4
        %v1910 = vrot.slane %v1907, 4
        %v1911 = vsel %vm437, %v1908, %v1909
        %v1912 = vsel %vm520, %v1903, %v1911
        %v1913 = vsel %vm437, %v1909, %v1910
        %v1914 = vsel %vm520, %v1905, %v1913
        %1918 = vst [vmem:[#allocation3 + $0x28] sm:$0xff] %v1912
        %1919 = vst [vmem:[#allocation3 + $0x30] sm:$0xff] %v1914
        %1920 = vst.msk [vmem:[#allocation3 + $0x38] sm:$0xf] %vm1881, %v1907
        %1921 = vrot.lane.b32.xlu0 %v1873, 122
        %v1922 = vpop.permute.xlu0 %1921
        %1923 = vrot.lane.b32.xlu0 %v1874, 122
        %v1924 = vpop.permute.xlu0 %1923
        %1925 = vrot.lane.b32.xlu0 %v1875, 122
        %v1926 = vpop.permute.xlu0 %1925
        %v1927 = vrot.slane %v1922, 4
        %v1928 = vrot.slane %v1924, 4
        %v1929 = vrot.slane %v1926, 4
        %v1930 = vsel %vm437, %v1927, %v1928
        %vm1931 = vcmask 998400
        %v1932 = vsel %vm1931, %v1922, %v1930
        %v1933 = vsel %vm437, %v1928, %v1929
        %v1934 = vsel %vm1931, %v1924, %v1933
        %1938 = vst [vmem:[#allocation3 + $0x3c] sm:$0xff] %v1932
        %1939 = vst [vmem:[#allocation3 + $0x44] sm:$0xff] %v1934
        %1940 = vst.msk [vmem:[#allocation3 + $0x4c] sm:$0xf] %vm1881, %v1926
        %1941 = vrot.lane.b32.xlu0 %v1873, 120
        %v1942 = vpop.permute.xlu0 %1941
        %1943 = vrot.lane.b32.xlu0 %v1874, 120
        %v1944 = vpop.permute.xlu0 %1943
        %1945 = vrot.lane.b32.xlu0 %v1875, 120
        %v1946 = vpop.permute.xlu0 %1945
        %v1947 = vrot.slane %v1942, 4
        %v1948 = vrot.slane %v1944, 4
        %v1949 = vrot.slane %v1946, 4
        %v1950 = vsel %vm437, %v1947, %v1948
        %vm1951 = vcmask 982016
        %v1952 = vsel %vm1951, %v1942, %v1950
        %v1953 = vsel %vm437, %v1948, %v1949
        %v1954 = vsel %vm1951, %v1944, %v1953
        %1958 = vst [vmem:[#allocation3 + $0x50] sm:$0xff] %v1952
        %1959 = vst [vmem:[#allocation3 + $0x58] sm:$0xff] %v1954
        %1960 = vst.msk [vmem:[#allocation3 + $0x60] sm:$0xf] %vm1881, %v1946
        %v1962 = vunpack.c.l.b16 %v1861
        %v1963 = vpack.c.b16 %v1962, %v1872
        %1964 = vrot.lane.b32.xlu0 %v1873, 64
        %v1965 = vpop.permute.xlu0 %1964
        %1966 = vrot.lane.b32.xlu0 %v1874, 64
        %v1967 = vpop.permute.xlu0 %1966
        %1968 = vrot.lane.b32.xlu0 %v1963, 64
        %v1969 = vpop.permute.xlu0 %1968
        %v1970 = vrot.slane %v1965, 4
        %v1971 = vrot.slane %v1967, 4
        %v1972 = vrot.slane %v1969, 4
        %v1973 = vsel %vm437, %v1970, %v1971
        %v1974 = vsel %vm687, %v1965, %v1973
        %v1975 = vsel %vm437, %v1971, %v1972
        %v1976 = vsel %vm687, %v1967, %v1975
        %v1977 = vsel %vm687, %v1969, %v1972
        %1981 = vst [vmem:[#allocation3 + $0x64] sm:$0xff] %v1974
        %1982 = vst [vmem:[#allocation3 + $0x6c] sm:$0xff] %v1976
        %1983 = vst.msk [vmem:[#allocation3 + $0x74] sm:$0xf] %vm1881, %v1977
        %1984 = vrot.lane.b32.xlu0 %v1873, 62
        %v1985 = vpop.permute.xlu0 %1984
        %1986 = vrot.lane.b32.xlu0 %v1874, 62
        %v1987 = vpop.permute.xlu0 %1986
        %1988 = vrot.lane.b32.xlu0 %v1963, 62
        %v1989 = vpop.permute.xlu0 %1988
        %v1990 = vrot.slane %v1985, 4
        %v1991 = vrot.slane %v1987, 4
        %v1992 = vrot.slane %v1989, 4
        %v1993 = vsel %vm437, %v1990, %v1991
        %v1994 = vsel %vm743, %v1985, %v1993
        %v1995 = vsel %vm437, %v1991, %v1992
        %v1996 = vsel %vm743, %v1987, %v1995
        %v1997 = vsel %vm743, %v1989, %v1992
        %2001 = vst [vmem:[#allocation3 + $0x78] sm:$0xff] %v1994
        %2002 = vst [vmem:[#allocation3 + $0x80] sm:$0xff] %v1996
        %2003 = vst.msk [vmem:[#allocation3 + $0x88] sm:$0xf] %vm1881, %v1997
        %2004 = vrot.lane.b32.xlu0 %v1873, 60
        %v2005 = vpop.permute.xlu0 %2004
        %2006 = vrot.lane.b32.xlu0 %v1874, 60
        %v2007 = vpop.permute.xlu0 %2006
        %2008 = vrot.lane.b32.xlu0 %v1963, 60
        %v2009 = vpop.permute.xlu0 %2008
        %v2010 = vrot.slane %v2005, 4
        %v2011 = vrot.slane %v2007, 4
        %v2012 = vrot.slane %v2009, 4
        %v2013 = vsel %vm437, %v2010, %v2011
        %v2014 = vsel %vm799, %v2005, %v2013
        %v2015 = vsel %vm437, %v2011, %v2012
        %v2016 = vsel %vm799, %v2007, %v2015
        %v2017 = vsel %vm799, %v2009, %v2012
        %2021 = vst [vmem:[#allocation3 + $0x8c] sm:$0xff] %v2014
        %2022 = vst [vmem:[#allocation3 + $0x94] sm:$0xff] %v2016
        %2023 = vst.msk [vmem:[#allocation3 + $0x9c] sm:$0xf] %vm1881, %v2017
        %2024 = vrot.lane.b32.xlu0 %v1873, 58
        %v2025 = vpop.permute.xlu0 %2024
        %2026 = vrot.lane.b32.xlu0 %v1874, 58
        %v2027 = vpop.permute.xlu0 %2026
        %2028 = vrot.lane.b32.xlu0 %v1963, 58
        %v2029 = vpop.permute.xlu0 %2028
        %v2030 = vrot.slane %v2025, 4
        %v2031 = vrot.slane %v2027, 4
        %v2032 = vrot.slane %v2029, 4
        %v2033 = vsel %vm437, %v2030, %v2031
        %vm2034 = vcmask 474112
        %v2035 = vsel %vm2034, %v2025, %v2033
        %v2036 = vsel %vm437, %v2031, %v2032
        %v2037 = vsel %vm2034, %v2027, %v2036
        %v2038 = vsel %vm2034, %v2029, %v2032
        %2042 = vst [vmem:[#allocation3 + $0xa0] sm:$0xff] %v2035
        %2043 = vst [vmem:[#allocation3 + $0xa8] sm:$0xff] %v2037
        %2044 = vst.msk [vmem:[#allocation3 + $0xb0] sm:$0xf] %vm1881, %v2038
        %2045 = vrot.lane.b32.xlu0 %v1873, 56
        %v2046 = vpop.permute.xlu0 %2045
        %2047 = vrot.lane.b32.xlu0 %v1874, 56
        %v2048 = vpop.permute.xlu0 %2047
        %2049 = vrot.lane.b32.xlu0 %v1963, 56
        %v2050 = vpop.permute.xlu0 %2049
        %v2051 = vrot.slane %v2046, 4
        %v2052 = vrot.slane %v2048, 4
        %v2053 = vrot.slane %v2050, 4
        %v2054 = vsel %vm437, %v2051, %v2052
        %vm2055 = vcmask 457728
        %v2056 = vsel %vm2055, %v2046, %v2054
        %v2057 = vsel %vm437, %v2052, %v2053
        %v2058 = vsel %vm2055, %v2048, %v2057
        %v2059 = vsel %vm2055, %v2050, %v2053
        %2063 = vst [vmem:[#allocation3 + $0xb4] sm:$0xff] %v2056
        %2064 = vst [vmem:[#allocation3 + $0xbc] sm:$0xff] %v2058
        %2065 = vst.msk [vmem:[#allocation3 + $0xc4] sm:$0xf] %vm1881, %v2059
        %v2066 = vpack.c.b16 %v1870, %v1869
        %v2067 = vpack.c.b16 %v1872, %v1871
        %v2068 = vpack.c.b16 %v1962, %v1962
        %2072 = vst [vmem:[#allocation3 + $0xc8] sm:$0xff] %v2066
        %2073 = vst [vmem:[#allocation3 + $0xd0] sm:$0xff] %v2067
        %2074 = vst.msk [vmem:[#allocation3 + $0xd8] sm:$0xf] %vm1881, %v2068
        %2075 = vrot.lane.b32.xlu0 %v2066, 126
        %v2076 = vpop.permute.xlu0 %2075
        %2077 = vrot.lane.b32.xlu0 %v2067, 126
        %v2078 = vpop.permute.xlu0 %2077
        %2079 = vrot.lane.b32.xlu0 %v2068, 126
        %v2080 = vpop.permute.xlu0 %2079
        %v2081 = vrot.slane %v2076, 4
        %v2082 = vrot.slane %v2078, 4
        %v2083 = vrot.slane %v2080, 4
        %v2084 = vsel %vm437, %v2081, %v2082
        %v2085 = vsel %vm466, %v2076, %v2084
        %v2086 = vsel %vm437, %v2082, %v2083
        %v2087 = vsel %vm466, %v2078, %v2086
        %2091 = vst [vmem:[#allocation3 + $0xdc] sm:$0xff] %v2085
        %2092 = vst [vmem:[#allocation3 + $0xe4] sm:$0xff] %v2087
        %2093 = vst.msk [vmem:[#allocation3 + $0xec] sm:$0xf] %vm1881, %v2080
        %2094 = vrot.lane.b32.xlu0 %v2066, 124
        %v2095 = vpop.permute.xlu0 %2094
        %2096 = vrot.lane.b32.xlu0 %v2067, 124
        %v2097 = vpop.permute.xlu0 %2096
        %2098 = vrot.lane.b32.xlu0 %v2068, 124
        %v2099 = vpop.permute.xlu0 %2098
        %v2100 = vrot.slane %v2095, 4
        %v2101 = vrot.slane %v2097, 4
        %v2102 = vrot.slane %v2099, 4
        %v2103 = vsel %vm437, %v2100, %v2101
        %v2104 = vsel %vm520, %v2095, %v2103
        %v2105 = vsel %vm437, %v2101, %v2102
        %v2106 = vsel %vm520, %v2097, %v2105
        %2110 = vst [vmem:[#allocation3 + $0xf0] sm:$0xff] %v2104
        %2111 = vst [vmem:[#allocation3 + $0xf8] sm:$0xff] %v2106
        %2112 = vst.msk [vmem:[#allocation3 + $0x100] sm:$0xf] %vm1881, %v2099
        %2113 = vrot.lane.b32.xlu0 %v2066, 122
        %v2114 = vpop.permute.xlu0 %2113
        %2115 = vrot.lane.b32.xlu0 %v2067, 122
        %v2116 = vpop.permute.xlu0 %2115
        %2117 = vrot.lane.b32.xlu0 %v2068, 122
        %v2118 = vpop.permute.xlu0 %2117
        %v2119 = vrot.slane %v2114, 4
        %v2120 = vrot.slane %v2116, 4
        %v2121 = vrot.slane %v2118, 4
        %v2122 = vsel %vm437, %v2119, %v2120
        %v2123 = vsel %vm1931, %v2114, %v2122
        %v2124 = vsel %vm437, %v2120, %v2121
        %v2125 = vsel %vm1931, %v2116, %v2124
        %2129 = vst [vmem:[#allocation3 + $0x104] sm:$0xff] %v2123
        %2130 = vst [vmem:[#allocation3 + $0x10c] sm:$0xff] %v2125
        %2131 = vst.msk [vmem:[#allocation3 + $0x114] sm:$0xf] %vm1881, %v2118
        %2132 = vrot.lane.b32.xlu0 %v2066, 120
        %v2133 = vpop.permute.xlu0 %2132
        %2134 = vrot.lane.b32.xlu0 %v2067, 120
        %v2135 = vpop.permute.xlu0 %2134
        %2136 = vrot.lane.b32.xlu0 %v2068, 120
        %v2137 = vpop.permute.xlu0 %2136
        %v2138 = vrot.slane %v2133, 4
        %v2139 = vrot.slane %v2135, 4
        %v2140 = vrot.slane %v2137, 4
        %v2141 = vsel %vm437, %v2138, %v2139
        %v2142 = vsel %vm1951, %v2133, %v2141
        %v2143 = vsel %vm437, %v2139, %v2140
        %v2144 = vsel %vm1951, %v2135, %v2143
        %2148 = vst [vmem:[#allocation3 + $0x118] sm:$0xff] %v2142
        %2149 = vst [vmem:[#allocation3 + $0x120] sm:$0xff] %v2144
        %2150 = vst.msk [vmem:[#allocation3 + $0x128] sm:$0xf] %vm1881, %v2137
        %v2152 = vunpack.c.l.b16 %v1862
        %v2153 = vpack.c.b16 %v2152, %v1962
        %2154 = vrot.lane.b32.xlu0 %v2066, 64
        %v2155 = vpop.permute.xlu0 %2154
        %2156 = vrot.lane.b32.xlu0 %v2067, 64
        %v2157 = vpop.permute.xlu0 %2156
        %2158 = vrot.lane.b32.xlu0 %v2153, 64
        %v2159 = vpop.permute.xlu0 %2158
        %v2160 = vrot.slane %v2155, 4
        %v2161 = vrot.slane %v2157, 4
        %v2162 = vrot.slane %v2159, 4
        %v2163 = vsel %vm437, %v2160, %v2161
        %v2164 = vsel %vm687, %v2155, %v2163
        %v2165 = vsel %vm437, %v2161, %v2162
        %v2166 = vsel %vm687, %v2157, %v2165
        %v2167 = vsel %vm687, %v2159, %v2162
        %2171 = vst [vmem:[#allocation3 + $0x12c] sm:$0xff] %v2164
        %2172 = vst [vmem:[#allocation3 + $0x134] sm:$0xff] %v2166
        %2173 = vst.msk [vmem:[#allocation3 + $0x13c] sm:$0xf] %vm1881, %v2167
        %2174 = vrot.lane.b32.xlu0 %v2066, 62
        %v2175 = vpop.permute.xlu0 %2174
        %2176 = vrot.lane.b32.xlu0 %v2067, 62
        %v2177 = vpop.permute.xlu0 %2176
        %2178 = vrot.lane.b32.xlu0 %v2153, 62
        %v2179 = vpop.permute.xlu0 %2178
        %v2180 = vrot.slane %v2175, 4
        %v2181 = vrot.slane %v2177, 4
        %v2182 = vrot.slane %v2179, 4
        %v2183 = vsel %vm437, %v2180, %v2181
        %v2184 = vsel %vm743, %v2175, %v2183
        %v2185 = vsel %vm437, %v2181, %v2182
        %v2186 = vsel %vm743, %v2177, %v2185
        %v2187 = vsel %vm743, %v2179, %v2182
        %2191 = vst [vmem:[#allocation3 + $0x140] sm:$0xff] %v2184
        %2192 = vst [vmem:[#allocation3 + $0x148] sm:$0xff] %v2186
        %2193 = vst.msk [vmem:[#allocation3 + $0x150] sm:$0xf] %vm1881, %v2187
        %2194 = vrot.lane.b32.xlu0 %v2066, 60
        %v2195 = vpop.permute.xlu0 %2194
        %2196 = vrot.lane.b32.xlu0 %v2067, 60
        %v2197 = vpop.permute.xlu0 %2196
        %2198 = vrot.lane.b32.xlu0 %v2153, 60
        %v2199 = vpop.permute.xlu0 %2198
        %v2200 = vrot.slane %v2195, 4
        %v2201 = vrot.slane %v2197, 4
        %v2202 = vrot.slane %v2199, 4
        %v2203 = vsel %vm437, %v2200, %v2201
        %v2204 = vsel %vm799, %v2195, %v2203
        %v2205 = vsel %vm437, %v2201, %v2202
        %v2206 = vsel %vm799, %v2197, %v2205
        %v2207 = vsel %vm799, %v2199, %v2202
        %2211 = vst [vmem:[#allocation3 + $0x154] sm:$0xff] %v2204
        %2212 = vst [vmem:[#allocation3 + $0x15c] sm:$0xff] %v2206
        %2213 = vst.msk [vmem:[#allocation3 + $0x164] sm:$0xf] %vm1881, %v2207
        %2214 = vrot.lane.b32.xlu0 %v2066, 58
        %v2215 = vpop.permute.xlu0 %2214
        %2216 = vrot.lane.b32.xlu0 %v2067, 58
        %v2217 = vpop.permute.xlu0 %2216
        %2218 = vrot.lane.b32.xlu0 %v2153, 58
        %v2219 = vpop.permute.xlu0 %2218
        %v2220 = vrot.slane %v2215, 4
        %v2221 = vrot.slane %v2217, 4
        %v2222 = vrot.slane %v2219, 4
        %v2223 = vsel %vm437, %v2220, %v2221
        %v2224 = vsel %vm2034, %v2215, %v2223
        %v2225 = vsel %vm437, %v2221, %v2222
        %v2226 = vsel %vm2034, %v2217, %v2225
        %v2227 = vsel %vm2034, %v2219, %v2222
        %2231 = vst [vmem:[#allocation3 + $0x168] sm:$0xff] %v2224
        %2232 = vst [vmem:[#allocation3 + $0x170] sm:$0xff] %v2226
        %2233 = vst.msk [vmem:[#allocation3 + $0x178] sm:$0xf] %vm1881, %v2227
        %2234 = vrot.lane.b32.xlu0 %v2066, 56
        %v2235 = vpop.permute.xlu0 %2234
        %2236 = vrot.lane.b32.xlu0 %v2067, 56
        %v2237 = vpop.permute.xlu0 %2236
        %2238 = vrot.lane.b32.xlu0 %v2153, 56
        %v2239 = vpop.permute.xlu0 %2238
        %v2240 = vrot.slane %v2235, 4
        %v2241 = vrot.slane %v2237, 4
        %v2242 = vrot.slane %v2239, 4
        %v2243 = vsel %vm437, %v2240, %v2241
        %v2244 = vsel %vm2055, %v2235, %v2243
        %v2245 = vsel %vm437, %v2241, %v2242
        %v2246 = vsel %vm2055, %v2237, %v2245
        %v2247 = vsel %vm2055, %v2239, %v2242
        %2251 = vst [vmem:[#allocation3 + $0x17c] sm:$0xff] %v2244
        %2252 = vst [vmem:[#allocation3 + $0x184] sm:$0xff] %v2246
        %2253 = vst.msk [vmem:[#allocation3 + $0x18c] sm:$0xf] %vm1881, %v2247
        %v2254 = vpack.c.b16 %v2152, %v2152
        %2257 = vst [vmem:[#allocation3 + $0x190] sm:$0xff] %v1874
        %2258 = vst [vmem:[#allocation3 + $0x198] sm:$0xff] %v1963
        %2259 = vst.msk [vmem:[#allocation3 + $0x1a0] sm:$0xf] %vm1881, %v2254
        %2260 = vrot.lane.b32.xlu0 %v1963, 126
        %v2261 = vpop.permute.xlu0 %2260
        %2262 = vrot.lane.b32.xlu0 %v2254, 126
        %v2263 = vpop.permute.xlu0 %2262
        %v2264 = vrot.slane %v2261, 4
        %v2265 = vrot.slane %v2263, 4
        %v2266 = vsel %vm437, %v1890, %v2264
        %v2267 = vsel %vm466, %v1886, %v2266
        %v2268 = vsel %vm437, %v2264, %v2265
        %v2269 = vsel %vm466, %v2261, %v2268
        %2273 = vst [vmem:[#allocation3 + $0x1a4] sm:$0xff] %v2267
        %2274 = vst [vmem:[#allocation3 + $0x1ac] sm:$0xff] %v2269
        %2275 = vst.msk [vmem:[#allocation3 + $0x1b4] sm:$0xf] %vm1881, %v2263
        %2276 = vrot.lane.b32.xlu0 %v1963, 124
        %v2277 = vpop.permute.xlu0 %2276
        %2278 = vrot.lane.b32.xlu0 %v2254, 124
        %v2279 = vpop.permute.xlu0 %2278
        %v2280 = vrot.slane %v2277, 4
        %v2281 = vrot.slane %v2279, 4
        %v2282 = vsel %vm437, %v1909, %v2280
        %v2283 = vsel %vm520, %v1905, %v2282
        %v2284 = vsel %vm437, %v2280, %v2281
        %v2285 = vsel %vm520, %v2277, %v2284
        %2289 = vst [vmem:[#allocation3 + $0x1b8] sm:$0xff] %v2283
        %2290 = vst [vmem:[#allocation3 + $0x1c0] sm:$0xff] %v2285
        %2291 = vst.msk [vmem:[#allocation3 + $0x1c8] sm:$0xf] %vm1881, %v2279
        %2292 = vrot.lane.b32.xlu0 %v1963, 122
        %v2293 = vpop.permute.xlu0 %2292
        %2294 = vrot.lane.b32.xlu0 %v2254, 122
        %v2295 = vpop.permute.xlu0 %2294
        %v2296 = vrot.slane %v2293, 4
        %v2297 = vrot.slane %v2295, 4
        %v2298 = vsel %vm437, %v1928, %v2296
        %v2299 = vsel %vm1931, %v1924, %v2298
        %v2300 = vsel %vm437, %v2296, %v2297
        %v2301 = vsel %vm1931, %v2293, %v2300
        %2305 = vst [vmem:[#allocation3 + $0x1cc] sm:$0xff] %v2299
        %2306 = vst [vmem:[#allocation3 + $0x1d4] sm:$0xff] %v2301
        %2307 = vst.msk [vmem:[#allocation3 + $0x1dc] sm:$0xf] %vm1881, %v2295
        %2308 = vrot.lane.b32.xlu0 %v1963, 120
        %v2309 = vpop.permute.xlu0 %2308
        %2310 = vrot.lane.b32.xlu0 %v2254, 120
        %v2311 = vpop.permute.xlu0 %2310
        %v2312 = vrot.slane %v2309, 4
        %v2313 = vrot.slane %v2311, 4
        %v2314 = vsel %vm437, %v1948, %v2312
        %v2315 = vsel %vm1951, %v1944, %v2314
        %v2316 = vsel %vm437, %v2312, %v2313
        %v2317 = vsel %vm1951, %v2309, %v2316
        %2321 = vst [vmem:[#allocation3 + $0x1e0] sm:$0xff] %v2315
        %2322 = vst [vmem:[#allocation3 + $0x1e8] sm:$0xff] %v2317
        %2323 = vst.msk [vmem:[#allocation3 + $0x1f0] sm:$0xf] %vm1881, %v2311
        %v2324 = vld [vmem:[%s3] sm:$0xff]
        %v2325 = vld [vmem:[%s3 + $0x8] sm:$0xff]
        %v2326 = vld [vmem:[#allocation3] sm:$0xff]
        %v2327 = vld [vmem:[#allocation3 + $0x8] sm:$0xff]
        %v2328 = vld [vmem:[#allocation3 + $0x10] sm:$0xf]
        %v2329 = vld [vmem:[#allocation3 + $0x14] sm:$0xff]
        %v2330 = vld [vmem:[#allocation3 + $0x1c] sm:$0xff]
        %v2331 = vld [vmem:[#allocation3 + $0x24] sm:$0xf]
        %v2332 = vld [vmem:[#allocation3 + $0x28] sm:$0xff]
        %v2333 = vld [vmem:[#allocation3 + $0x30] sm:$0xff]
        %v2334 = vld [vmem:[#allocation3 + $0x38] sm:$0xf]
        %v2335 = vld [vmem:[#allocation3 + $0x3c] sm:$0xff]
        %v2336 = vld [vmem:[#allocation3 + $0x44] sm:$0xff]
        %v2337 = vld [vmem:[#allocation3 + $0x4c] sm:$0xf]
        %v2338 = vld [vmem:[#allocation3 + $0x50] sm:$0xff]
        %v2339 = vld [vmem:[#allocation3 + $0x58] sm:$0xff]
        %v2340 = vld [vmem:[#allocation3 + $0x60] sm:$0xf]
        %v2341 = vld [vmem:[#allocation3 + $0x64] sm:$0xff]
        %v2342 = vld [vmem:[#allocation3 + $0x6c] sm:$0xff]
        %v2343 = vld [vmem:[#allocation3 + $0x74] sm:$0xf]
        %v2344 = vld [vmem:[#allocation3 + $0x78] sm:$0xff]
        %v2345 = vld [vmem:[#allocation3 + $0x80] sm:$0xff]
        %v2346 = vld [vmem:[#allocation3 + $0x88] sm:$0xf]
        %v2347 = vld [vmem:[#allocation3 + $0x8c] sm:$0xff]
        %v2348 = vld [vmem:[#allocation3 + $0x94] sm:$0xff]
        %v2349 = vld [vmem:[#allocation3 + $0x9c] sm:$0xf]
        %v2350 = vld [vmem:[#allocation3 + $0xa0] sm:$0xff]
        %v2351 = vld [vmem:[#allocation3 + $0xa8] sm:$0xff]
        %v2352 = vld [vmem:[#allocation3 + $0xb0] sm:$0xf]
        %v2353 = vld [vmem:[#allocation3 + $0xb4] sm:$0xff]
        %v2354 = vld [vmem:[#allocation3 + $0xbc] sm:$0xff]
        %v2355 = vld [vmem:[#allocation3 + $0xc4] sm:$0xf]
        %v2356 = vld [vmem:[#allocation3 + $0xc8] sm:$0xff]
        %v2357 = vld [vmem:[#allocation3 + $0xd0] sm:$0xff]
        %v2358 = vld [vmem:[#allocation3 + $0xd8] sm:$0xf]
        %v2359 = vld [vmem:[#allocation3 + $0xdc] sm:$0xff]
        %v2360 = vld [vmem:[#allocation3 + $0xe4] sm:$0xff]
        %v2361 = vld [vmem:[#allocation3 + $0xec] sm:$0xf]
        %v2362 = vld [vmem:[#allocation3 + $0xf0] sm:$0xff]
        %v2363 = vld [vmem:[#allocation3 + $0xf8] sm:$0xff]
        %v2364 = vld [vmem:[#allocation3 + $0x100] sm:$0xf]
        %v2365 = vld [vmem:[#allocation3 + $0x104] sm:$0xff]
        %v2366 = vld [vmem:[#allocation3 + $0x10c] sm:$0xff]
        %v2367 = vld [vmem:[#allocation3 + $0x114] sm:$0xf]
        %v2368 = vld [vmem:[#allocation3 + $0x118] sm:$0xff]
        %v2369 = vld [vmem:[#allocation3 + $0x120] sm:$0xff]
        %v2370 = vld [vmem:[#allocation3 + $0x128] sm:$0xf]
        %v2371 = vld [vmem:[#allocation3 + $0x12c] sm:$0xff]
        %v2372 = vld [vmem:[#allocation3 + $0x134] sm:$0xff]
        %v2373 = vld [vmem:[#allocation3 + $0x13c] sm:$0xf]
        %v2374 = vld [vmem:[#allocation3 + $0x140] sm:$0xff]
        %v2375 = vld [vmem:[#allocation3 + $0x148] sm:$0xff]
        %v2376 = vld [vmem:[#allocation3 + $0x150] sm:$0xf]
        %v2377 = vld [vmem:[#allocation3 + $0x154] sm:$0xff]
        %v2378 = vld [vmem:[#allocation3 + $0x15c] sm:$0xff]
        %v2379 = vld [vmem:[#allocation3 + $0x164] sm:$0xf]
        %v2380 = vld [vmem:[#allocation3 + $0x168] sm:$0xff]
        %v2381 = vld [vmem:[#allocation3 + $0x170] sm:$0xff]
        %v2382 = vld [vmem:[#allocation3 + $0x178] sm:$0xf]
        %v2383 = vld [vmem:[#allocation3 + $0x17c] sm:$0xff]
        %v2384 = vld [vmem:[#allocation3 + $0x184] sm:$0xff]
        %v2385 = vld [vmem:[#allocation3 + $0x18c] sm:$0xf]
        %v2386 = vld [vmem:[#allocation3 + $0x190] sm:$0xff]
        %v2387 = vld [vmem:[#allocation3 + $0x198] sm:$0xff]
        %v2388 = vld [vmem:[#allocation3 + $0x1a0] sm:$0xf]
        %v2389 = vld [vmem:[#allocation3 + $0x1a4] sm:$0xff]
        %v2390 = vld [vmem:[#allocation3 + $0x1ac] sm:$0xff]
        %v2391 = vld [vmem:[#allocation3 + $0x1b4] sm:$0xf]
        %v2392 = vld [vmem:[#allocation3 + $0x1b8] sm:$0xff]
        %v2393 = vld [vmem:[#allocation3 + $0x1c0] sm:$0xff]
        %v2394 = vld [vmem:[#allocation3 + $0x1c8] sm:$0xf]
        %v2395 = vld [vmem:[#allocation3 + $0x1cc] sm:$0xff]
        %v2396 = vld [vmem:[#allocation3 + $0x1d4] sm:$0xff]
        %v2397 = vld [vmem:[#allocation3 + $0x1dc] sm:$0xf]
        %v2398 = vld [vmem:[#allocation3 + $0x1e0] sm:$0xff]
        %v2399 = vld [vmem:[#allocation3 + $0x1e8] sm:$0xff]
        %v2400 = vld [vmem:[#allocation3 + $0x1f0] sm:$0xf]
        %v2401 = vld [vmem:[%s4] sm:$0xff]
        %v2402 = vld [vmem:[%s4 + $0x8] sm:$0xff]
        %2404 = vset.pattern.permute.xlu0 0
        %2405 = vperm.xlu0 %2404, %v2401
        %v2406 = vpop.permute.xlu0 %2405
        %2409 = vset.pattern.permute.xlu0 0
        %2410 = vperm.xlu0 %2409, %v2402
        %v2411 = vpop.permute.xlu0 %2410
        %v2415 = vunpack.c.l.b16 %v2324
        %v2416 = vunpack.c.h.b16 %v2324
        %v2417 = vunpack.c.l.b16 %v2325
        %v2418 = vunpack.c.h.b16 %v2325
        %v2419 = vpack.c.b16 %v2417, %v2415
        %v2420 = vpack.c.b16 %v2418, %v2416
        %v2497 = vunpack.c.l.b16 %v2326
        %v2498 = vunpack.c.h.b16 %v2326
        %v2499 = vunpack.c.l.b16 %v2327
        %v2500 = vunpack.c.h.b16 %v2327
        %v2501 = vunpack.c.l.b16 %v2328
        %v2502 = vunpack.c.l.b16 %v2329
        %v2503 = vunpack.c.h.b16 %v2329
        %v2504 = vunpack.c.l.b16 %v2330
        %v2505 = vunpack.c.h.b16 %v2330
        %v2506 = vunpack.c.l.b16 %v2331
        %v2507 = vunpack.c.l.b16 %v2332
        %v2508 = vunpack.c.h.b16 %v2332
        %v2509 = vunpack.c.l.b16 %v2333
        %v2510 = vunpack.c.h.b16 %v2333
        %v2511 = vunpack.c.l.b16 %v2334
        %v2512 = vunpack.c.l.b16 %v2335
        %v2513 = vunpack.c.h.b16 %v2335
        %v2514 = vunpack.c.l.b16 %v2336
        %v2515 = vunpack.c.h.b16 %v2336
        %v2516 = vunpack.c.l.b16 %v2337
        %v2517 = vunpack.c.l.b16 %v2338
        %v2518 = vunpack.c.h.b16 %v2338
        %v2519 = vunpack.c.l.b16 %v2339
        %v2520 = vunpack.c.h.b16 %v2339
        %v2521 = vunpack.c.l.b16 %v2340
        %v2522 = vunpack.c.l.b16 %v2341
        %v2523 = vunpack.c.h.b16 %v2341
        %v2524 = vunpack.c.l.b16 %v2342
        %v2525 = vunpack.c.h.b16 %v2342
        %v2526 = vunpack.c.l.b16 %v2343
        %v2527 = vunpack.c.l.b16 %v2344
        %v2528 = vunpack.c.h.b16 %v2344
        %v2529 = vunpack.c.l.b16 %v2345
        %v2530 = vunpack.c.h.b16 %v2345
        %v2531 = vunpack.c.l.b16 %v2346
        %v2532 = vunpack.c.l.b16 %v2347
        %v2533 = vunpack.c.h.b16 %v2347
        %v2534 = vunpack.c.l.b16 %v2348
        %v2535 = vunpack.c.h.b16 %v2348
        %v2536 = vunpack.c.l.b16 %v2349
        %v2537 = vunpack.c.l.b16 %v2350
        %v2538 = vunpack.c.h.b16 %v2350
        %v2539 = vunpack.c.l.b16 %v2351
        %v2540 = vunpack.c.h.b16 %v2351
        %v2541 = vunpack.c.l.b16 %v2352
        %v2542 = vunpack.c.l.b16 %v2353
        %v2543 = vunpack.c.h.b16 %v2353
        %v2544 = vunpack.c.l.b16 %v2354
        %v2545 = vunpack.c.h.b16 %v2354
        %v2546 = vunpack.c.l.b16 %v2355
        %v2547 = vunpack.c.l.b16 %v2356
        %v2548 = vunpack.c.h.b16 %v2356
        %v2549 = vunpack.c.l.b16 %v2357
        %v2550 = vunpack.c.h.b16 %v2357
        %v2551 = vunpack.c.l.b16 %v2358
        %v2552 = vunpack.c.l.b16 %v2359
        %v2553 = vunpack.c.h.b16 %v2359
        %v2554 = vunpack.c.l.b16 %v2360
        %v2555 = vunpack.c.h.b16 %v2360
        %v2556 = vunpack.c.l.b16 %v2361
        %v2557 = vunpack.c.l.b16 %v2362
        %v2558 = vunpack.c.h.b16 %v2362
        %v2559 = vunpack.c.l.b16 %v2363
        %v2560 = vunpack.c.h.b16 %v2363
        %v2561 = vunpack.c.l.b16 %v2364
        %v2562 = vunpack.c.l.b16 %v2365
        %v2563 = vunpack.c.h.b16 %v2365
        %v2564 = vunpack.c.l.b16 %v2366
        %v2565 = vunpack.c.h.b16 %v2366
        %v2566 = vunpack.c.l.b16 %v2367
        %v2567 = vunpack.c.l.b16 %v2368
        %v2568 = vunpack.c.h.b16 %v2368
        %v2569 = vunpack.c.l.b16 %v2369
        %v2570 = vunpack.c.h.b16 %v2369
        %v2571 = vunpack.c.l.b16 %v2370
        %v2572 = vunpack.c.l.b16 %v2371
        %v2573 = vunpack.c.h.b16 %v2371
        %v2574 = vunpack.c.l.b16 %v2372
        %v2575 = vunpack.c.h.b16 %v2372
        %v2576 = vunpack.c.l.b16 %v2373
        %v2577 = vunpack.c.l.b16 %v2374
        %v2578 = vunpack.c.h.b16 %v2374
        %v2579 = vunpack.c.l.b16 %v2375
        %v2580 = vunpack.c.h.b16 %v2375
        %v2581 = vunpack.c.l.b16 %v2376
        %v2582 = vunpack.c.l.b16 %v2377
        %v2583 = vunpack.c.h.b16 %v2377
        %v2584 = vunpack.c.l.b16 %v2378
        %v2585 = vunpack.c.h.b16 %v2378
        %v2586 = vunpack.c.l.b16 %v2379
        %v2587 = vunpack.c.l.b16 %v2380
        %v2588 = vunpack.c.h.b16 %v2380
        %v2589 = vunpack.c.l.b16 %v2381
        %v2590 = vunpack.c.h.b16 %v2381
        %v2591 = vunpack.c.l.b16 %v2382
        %v2592 = vunpack.c.l.b16 %v2383
        %v2593 = vunpack.c.h.b16 %v2383
        %v2594 = vunpack.c.l.b16 %v2384
        %v2595 = vunpack.c.h.b16 %v2384
        %v2596 = vunpack.c.l.b16 %v2385
        %v2597 = vunpack.c.l.b16 %v2386
        %v2598 = vunpack.c.h.b16 %v2386
        %v2599 = vunpack.c.l.b16 %v2387
        %v2600 = vunpack.c.h.b16 %v2387
        %v2601 = vunpack.c.l.b16 %v2388
        %v2602 = vunpack.c.l.b16 %v2389
        %v2603 = vunpack.c.h.b16 %v2389
        %v2604 = vunpack.c.l.b16 %v2390
        %v2605 = vunpack.c.h.b16 %v2390
        %v2606 = vunpack.c.l.b16 %v2391
        %v2607 = vunpack.c.l.b16 %v2392
        %v2608 = vunpack.c.h.b16 %v2392
        %v2609 = vunpack.c.l.b16 %v2393
        %v2610 = vunpack.c.h.b16 %v2393
        %v2611 = vunpack.c.l.b16 %v2394
        %v2612 = vunpack.c.l.b16 %v2395
        %v2613 = vunpack.c.h.b16 %v2395
        %v2614 = vunpack.c.l.b16 %v2396
        %v2615 = vunpack.c.h.b16 %v2396
        %v2616 = vunpack.c.l.b16 %v2397
        %v2617 = vunpack.c.l.b16 %v2398
        %v2618 = vunpack.c.h.b16 %v2398
        %v2619 = vunpack.c.l.b16 %v2399
        %v2620 = vunpack.c.h.b16 %v2399
        %v2621 = vunpack.c.l.b16 %v2400
        %v2622 = vpack.c.b16 %v2502, %v2497
        %v2623 = vpack.c.b16 %v2503, %v2498
        %v2624 = vpack.c.b16 %v2504, %v2499
        %v2625 = vpack.c.b16 %v2505, %v2500
        %v2626 = vpack.c.b16 %v2506, %v2501
        %v2627 = vpack.c.b16 %v2512, %v2507
        %v2628 = vpack.c.b16 %v2513, %v2508
        %v2629 = vpack.c.b16 %v2514, %v2509
        %v2630 = vpack.c.b16 %v2515, %v2510
        %v2631 = vpack.c.b16 %v2516, %v2511
        %v2632 = vpack.c.b16 %v2522, %v2517
        %v2633 = vpack.c.b16 %v2523, %v2518
        %v2634 = vpack.c.b16 %v2524, %v2519
        %v2635 = vpack.c.b16 %v2525, %v2520
        %v2636 = vpack.c.b16 %v2526, %v2521
        %v2637 = vpack.c.b16 %v2532, %v2527
        %v2638 = vpack.c.b16 %v2533, %v2528
        %v2639 = vpack.c.b16 %v2534, %v2529
        %v2640 = vpack.c.b16 %v2535, %v2530
        %v2641 = vpack.c.b16 %v2536, %v2531
        %v2642 = vpack.c.b16 %v2542, %v2537
        %v2643 = vpack.c.b16 %v2543, %v2538
        %v2644 = vpack.c.b16 %v2544, %v2539
        %v2645 = vpack.c.b16 %v2545, %v2540
        %v2646 = vpack.c.b16 %v2546, %v2541
        %v2647 = vpack.c.b16 %v2552, %v2547
        %v2648 = vpack.c.b16 %v2553, %v2548
        %v2649 = vpack.c.b16 %v2554, %v2549
        %v2650 = vpack.c.b16 %v2555, %v2550
        %v2651 = vpack.c.b16 %v2556, %v2551
        %v2652 = vpack.c.b16 %v2562, %v2557
        %v2653 = vpack.c.b16 %v2563, %v2558
        %v2654 = vpack.c.b16 %v2564, %v2559
        %v2655 = vpack.c.b16 %v2565, %v2560
        %v2656 = vpack.c.b16 %v2566, %v2561
        %v2657 = vpack.c.b16 %v2572, %v2567
        %v2658 = vpack.c.b16 %v2573, %v2568
        %v2659 = vpack.c.b16 %v2574, %v2569
        %v2660 = vpack.c.b16 %v2575, %v2570
        %v2661 = vpack.c.b16 %v2576, %v2571
        %v2662 = vpack.c.b16 %v2582, %v2577
        %v2663 = vpack.c.b16 %v2583, %v2578
        %v2664 = vpack.c.b16 %v2584, %v2579
        %v2665 = vpack.c.b16 %v2585, %v2580
        %v2666 = vpack.c.b16 %v2586, %v2581
        %v2667 = vpack.c.b16 %v2592, %v2587
        %v2668 = vpack.c.b16 %v2593, %v2588
        %v2669 = vpack.c.b16 %v2594, %v2589
        %v2670 = vpack.c.b16 %v2595, %v2590
        %v2671 = vpack.c.b16 %v2596, %v2591
        %v2672 = vpack.c.b16 %v2602, %v2597
        %v2673 = vpack.c.b16 %v2603, %v2598
        %v2674 = vpack.c.b16 %v2604, %v2599
        %v2675 = vpack.c.b16 %v2605, %v2600
        %v2676 = vpack.c.b16 %v2606, %v2601
        %v2677 = vpack.c.b16 %v2612, %v2607
        %v2678 = vpack.c.b16 %v2613, %v2608
        %v2679 = vpack.c.b16 %v2614, %v2609
        %v2680 = vpack.c.b16 %v2615, %v2610
        %v2681 = vpack.c.b16 %v2616, %v2611
        %v2682 = vpack.c.b16 %v2617, %v2617
        %v2683 = vpack.c.b16 %v2618, %v2618
        %v2684 = vpack.c.b16 %v2619, %v2619
        %v2685 = vpack.c.b16 %v2620, %v2620
        %v2686 = vpack.c.b16 %v2621, %v2621
        %v2748 = vsel %vm1576, %v2420, 0
        %v2751 = vsel %vm1580, %v2682, 0
        %v2754 = vsel %vm1580, %v2683, 0
        %v2757 = vsel %vm1580, %v2684, 0
        %v2760 = vsel %vm1580, %v2685, 0
        %v2763 = vsel %vm1580, %v2686, 0
        %2765 = vmatprep.subr.bf16.mxu0 %v2658
        %2766 = vmatpush1.bf16.msra.mxu0 %v2657
        %2767 = vmatprep.subr.bf16.mxu0 %v2653
        %2768 = vmatpush1.bf16.msra.mxu0 %v2652
        %2769 = vmatprep.subr.bf16.mxu0 %v2648
        %2770 = vmatpush1.bf16.msra.mxu0 %v2647
        %2771 = vmatprep.subr.bf16.mxu0 %v2643
        %2772 = vmatpush1.bf16.msra.mxu0 %v2642
        %2773 = vmatprep.subr.bf16.mxu0 %v2638
        %2774 = vmatpush1.bf16.msra.mxu0 %v2637
        %2775 = vmatprep.subr.bf16.mxu0 %v2633
        %2776 = vmatpush1.bf16.msra.mxu0 %v2632
        %2777 = vmatprep.subr.bf16.mxu0 %v2628
        %2778 = vmatpush1.bf16.msra.mxu0 %v2627
        %2779 = vmatprep.subr.bf16.mxu0 %v2623
        %2780 = vmatpush1.bf16.msra.mxu0 %v2622
        %2781 = vmatprep.subr.bf16.mxu0 0
        %2782 = vmatpush2.bf16.msra.mxu0 0
        %2783 = vmatprep.subr.bf16.mxu0 0
        %2784 = vmatpush2.bf16.msra.mxu0 0
        %2785 = vmatprep.subr.bf16.mxu0 0
        %2786 = vmatpush2.bf16.msra.mxu0 0
        %2787 = vmatprep.subr.bf16.mxu0 %v2754
        %2788 = vmatpush2.bf16.msra.mxu0 %v2751
        %2789 = vmatprep.subr.bf16.mxu0 %v2678
        %2790 = vmatpush2.bf16.msra.mxu0 %v2677
        %2791 = vmatprep.subr.bf16.mxu0 %v2673
        %2792 = vmatpush2.bf16.msra.mxu0 %v2672
        %2793 = vmatprep.subr.bf16.mxu0 %v2668
        %2794 = vmatpush2.bf16.msra.mxu0 %v2667
        %2795 = vmatprep.subr.bf16.mxu0 %v2663
        %2796 = vmatpush2.bf16.msra.mxu0 %v2662
        %2797 = vmatprep.mubr.bf16.mxu0 %v2748
        %2798 = vmatmul.mubr.bf16.gmra.mxu0 %v2419
        %v2799 = vpop.f32.mrf.mxu0
        %v2800 = vadd.f32 %v2406, %v2799
        %v2801 = vpop.f32.mrf.mxu0
        %v2802 = vadd.f32 %v2406, %v2801
        %v2803 = vpop.f32.mrf.mxu0
        %v2804 = vadd.f32 %v2411, %v2803
        %v2805 = vpop.f32.mrf.mxu0
        %v2806 = vadd.f32 %v2411, %v2805
        %2807 = vdwg.mxu0
        %2808 = vmatprep.subr.bf16.mxu0 %v2660
        %2809 = vmatpush1.bf16.msra.mxu0 %v2659
        %2810 = vmatprep.subr.bf16.mxu0 %v2655
        %2811 = vmatpush1.bf16.msra.mxu0 %v2654
        %2812 = vmatprep.subr.bf16.mxu0 %v2650
        %2813 = vmatpush1.bf16.msra.mxu0 %v2649
        %2814 = vmatprep.subr.bf16.mxu0 %v2645
        %2815 = vmatpush1.bf16.msra.mxu0 %v2644
        %2816 = vmatprep.subr.bf16.mxu0 %v2640
        %2817 = vmatpush1.bf16.msra.mxu0 %v2639
        %2818 = vmatprep.subr.bf16.mxu0 %v2635
        %2819 = vmatpush1.bf16.msra.mxu0 %v2634
        %2820 = vmatprep.subr.bf16.mxu0 %v2630
        %2821 = vmatpush1.bf16.msra.mxu0 %v2629
        %2822 = vmatprep.subr.bf16.mxu0 %v2625
        %2823 = vmatpush1.bf16.msra.mxu0 %v2624
        %2824 = vmatprep.subr.bf16.mxu0 0
        %2825 = vmatpush2.bf16.msra.mxu0 0
        %2826 = vmatprep.subr.bf16.mxu0 0
        %2827 = vmatpush2.bf16.msra.mxu0 0
        %2828 = vmatprep.subr.bf16.mxu0 0
        %2829 = vmatpush2.bf16.msra.mxu0 0
        %2830 = vmatprep.subr.bf16.mxu0 %v2760
        %2831 = vmatpush2.bf16.msra.mxu0 %v2757
        %2832 = vmatprep.subr.bf16.mxu0 %v2680
        %2833 = vmatpush2.bf16.msra.mxu0 %v2679
        %2834 = vmatprep.subr.bf16.mxu0 %v2675
        %2835 = vmatpush2.bf16.msra.mxu0 %v2674
        %2836 = vmatprep.subr.bf16.mxu0 %v2670
        %2837 = vmatpush2.bf16.msra.mxu0 %v2669
        %2838 = vmatprep.subr.bf16.mxu0 %v2665
        %2839 = vmatpush2.bf16.msra.mxu0 %v2664
        %2840 = vmatprep.mubr.bf16.mxu0 %v2748
        %2841 = vmatmul.mubr.bf16.gmra.mxu0 %v2419
        %v2842 = vpop.f32.mrf.mxu0
        %v2843 = vadd.f32 %v2406, %v2842
        %v2844 = vpop.f32.mrf.mxu0
        %v2845 = vadd.f32 %v2406, %v2844
        %v2846 = vpop.f32.mrf.mxu0
        %v2847 = vadd.f32 %v2411, %v2846
        %v2848 = vpop.f32.mrf.mxu0
        %v2849 = vadd.f32 %v2411, %v2848
        %2850 = vdwg.mxu0
        %2851 = vmatprep.subr.bf16.mxu0 0
        %2852 = vmatpush1.bf16.msra.mxu0 %v2661
        %2853 = vmatprep.subr.bf16.mxu0 0
        %2854 = vmatpush1.bf16.msra.mxu0 %v2656
        %2855 = vmatprep.subr.bf16.mxu0 0
        %2856 = vmatpush1.bf16.msra.mxu0 %v2651
        %2857 = vmatprep.subr.bf16.mxu0 0
        %2858 = vmatpush1.bf16.msra.mxu0 %v2646
        %2859 = vmatprep.subr.bf16.mxu0 0
        %2860 = vmatpush1.bf16.msra.mxu0 %v2641
        %2861 = vmatprep.subr.bf16.mxu0 0
        %2862 = vmatpush1.bf16.msra.mxu0 %v2636
        %2863 = vmatprep.subr.bf16.mxu0 0
        %2864 = vmatpush1.bf16.msra.mxu0 %v2631
        %2865 = vmatprep.subr.bf16.mxu0 0
        %2866 = vmatpush1.bf16.msra.mxu0 %v2626
        %2867 = vmatprep.subr.bf16.mxu0 0
        %2868 = vmatpush2.bf16.msra.mxu0 0
        %2869 = vmatprep.subr.bf16.mxu0 0
        %2870 = vmatpush2.bf16.msra.mxu0 0
        %2871 = vmatprep.subr.bf16.mxu0 0
        %2872 = vmatpush2.bf16.msra.mxu0 0
        %2873 = vmatprep.subr.bf16.mxu0 0
        %2874 = vmatpush2.bf16.msra.mxu0 %v2763
        %2875 = vmatprep.subr.bf16.mxu0 0
        %2876 = vmatpush2.bf16.msra.mxu0 %v2681
        %2877 = vmatprep.subr.bf16.mxu0 0
        %2878 = vmatpush2.bf16.msra.mxu0 %v2676
        %2879 = vmatprep.subr.bf16.mxu0 0
        %2880 = vmatpush2.bf16.msra.mxu0 %v2671
        %2881 = vmatprep.subr.bf16.mxu0 0
        %2882 = vmatpush2.bf16.msra.mxu0 %v2666
        %2883 = vmatprep.mubr.bf16.mxu0 %v2748
        %2884 = vmatmul.mubr.bf16.gmra.mxu0 %v2419
        %v2885 = vpop.f32.mrf.mxu0
        %v2886 = vadd.f32 %v2406, %v2885
        %v2887 = vpop.f32.mrf.mxu0
        %v2888 = vpop.f32.mrf.mxu0
        %v2889 = vadd.f32 %v2411, %v2888
        %v2890 = vpop.f32.mrf.mxu0
        %2891 = vdwg.mxu0
        %v2892 = vmax.f32 %v2800, 0.0
        %v2893 = vmax.f32 %v2802, 0.0
        %v2894 = vmax.f32 %v2843, 0.0
        %v2895 = vmax.f32 %v2845, 0.0
        %v2896 = vmax.f32 %v2886, 0.0
        %v2897 = vmax.f32 %v2804, 0.0
        %v2898 = vmax.f32 %v2806, 0.0
        %v2899 = vmax.f32 %v2847, 0.0
        %v2900 = vmax.f32 %v2849, 0.0
        %v2901 = vmax.f32 %v2889, 0.0
        %2912 = vrot.lane.b32.xlu0 %v2892, 126
        %v2913 = vpop.permute.xlu0 %2912
        %2914 = vrot.lane.b32.xlu0 %v2893, 126
        %v2915 = vpop.permute.xlu0 %2914
        %2916 = vrot.lane.b32.xlu0 %v2894, 126
        %v2917 = vpop.permute.xlu0 %2916
        %2918 = vrot.lane.b32.xlu0 %v2895, 126
        %v2919 = vpop.permute.xlu0 %2918
        %2920 = vrot.lane.b32.xlu0 %v2896, 126
        %v2921 = vpop.permute.xlu0 %2920
        %2922 = vrot.lane.b32.xlu0 %v2897, 126
        %v2923 = vpop.permute.xlu0 %2922
        %2924 = vrot.lane.b32.xlu0 %v2898, 126
        %v2925 = vpop.permute.xlu0 %2924
        %2926 = vrot.lane.b32.xlu0 %v2899, 126
        %v2927 = vpop.permute.xlu0 %2926
        %2928 = vrot.lane.b32.xlu0 %v2900, 126
        %v2929 = vpop.permute.xlu0 %2928
        %2930 = vrot.lane.b32.xlu0 %v2901, 126
        %v2931 = vpop.permute.xlu0 %2930
        %vm2932 = vcmask 1031168
        %v2933 = vsel %vm2932, %v2913, %v2915
        %v2934 = vsel %vm2932, %v2915, %v2917
        %v2935 = vsel %vm2932, %v2917, %v2919
        %v2936 = vsel %vm2932, %v2919, %v2921
        %v2937 = vsel %vm2932, %v2923, %v2925
        %v2938 = vsel %vm2932, %v2925, %v2927
        %v2939 = vsel %vm2932, %v2927, %v2929
        %v2940 = vsel %vm2932, %v2929, %v2931
        %v2951 = vmax.f32 %v2892, %v2933
        %v2952 = vmax.f32 %v2893, %v2934
        %v2953 = vmax.f32 %v2894, %v2935
        %v2954 = vmax.f32 %v2895, %v2936
        %v2955 = vmax.f32 %v2896, %v2921
        %v2956 = vmax.f32 %v2897, %v2937
        %v2957 = vmax.f32 %v2898, %v2938
        %v2958 = vmax.f32 %v2899, %v2939
        %v2959 = vmax.f32 %v2900, %v2940
        %v2960 = vmax.f32 %v2901, %v2931
        %2971 = vrot.lane.b32.xlu0 %v2951, 64
        %v2972 = vpop.permute.xlu0 %2971
        %2973 = vrot.lane.b32.xlu0 %v2952, 64
        %v2974 = vpop.permute.xlu0 %2973
        %2975 = vrot.lane.b32.xlu0 %v2953, 64
        %v2976 = vpop.permute.xlu0 %2975
        %2977 = vrot.lane.b32.xlu0 %v2954, 64
        %v2978 = vpop.permute.xlu0 %2977
        %2979 = vrot.lane.b32.xlu0 %v2955, 64
        %v2980 = vpop.permute.xlu0 %2979
        %2981 = vrot.lane.b32.xlu0 %v2956, 64
        %v2982 = vpop.permute.xlu0 %2981
        %2983 = vrot.lane.b32.xlu0 %v2957, 64
        %v2984 = vpop.permute.xlu0 %2983
        %2985 = vrot.lane.b32.xlu0 %v2958, 64
        %v2986 = vpop.permute.xlu0 %2985
        %2987 = vrot.lane.b32.xlu0 %v2959, 64
        %v2988 = vpop.permute.xlu0 %2987
        %2989 = vrot.lane.b32.xlu0 %v2960, 64
        %v2990 = vpop.permute.xlu0 %2989
        %vm2991 = vcmask 523264
        %v2992 = vsel %vm2991, %v2972, %v2974
        %v2993 = vsel %vm2991, %v2974, %v2976
        %v2994 = vsel %vm2991, %v2976, %v2978
        %v2995 = vsel %vm2991, %v2978, %v2980
        %v2996 = vsel %vm2991, %v2982, %v2984
        %v2997 = vsel %vm2991, %v2984, %v2986
        %v2998 = vsel %vm2991, %v2986, %v2988
        %v2999 = vsel %vm2991, %v2988, %v2990
        %v3010 = vmax.f32 %v2951, %v2992
        %v3011 = vmax.f32 %v2952, %v2993
        %v3012 = vmax.f32 %v2953, %v2994
        %v3013 = vmax.f32 %v2954, %v2995
        %v3014 = vmax.f32 %v2955, %v2980
        %v3015 = vmax.f32 %v2956, %v2996
        %v3016 = vmax.f32 %v2957, %v2997
        %v3017 = vmax.f32 %v2958, %v2998
        %v3018 = vmax.f32 %v2959, %v2999
        %v3019 = vmax.f32 %v2960, %v2990
        %v3020 = vpack.c.bf16 %v3015, %v3010
        %v3021 = vpack.c.bf16 %v3016, %v3011
        %v3022 = vpack.c.bf16 %v3017, %v3012
        %v3023 = vpack.c.bf16 %v3018, %v3013
        %v3024 = vpack.c.bf16 %v3019, %v3014
        %v3025 = vld [vmem:[%s5] sm:$0xf]
        %v3026 = vld [vmem:[%s5 + $0x4] sm:$0xf]
        %v3027 = vld [vmem:[%s5 + $0x8] sm:$0xf]
        %v3028 = vld [vmem:[%s5 + $0xc] sm:$0xf]
        %v3029 = vld [vmem:[%s5 + $0x10] sm:$0xf]
        %v3030 = vld [vmem:[%s5 + $0x14] sm:$0xf]
        %v3031 = vld [vmem:[%s5 + $0x18] sm:$0xf]
        %v3032 = vld [vmem:[%s5 + $0x1c] sm:$0xf]
        %v3033 = vld [vmem:[%s5 + $0x20] sm:$0xf]
        %v3034 = vld [vmem:[%s5 + $0x24] sm:$0xf]
        %v3035 = vld [vmem:[%s5 + $0x28] sm:$0xf]
        %v3036 = vld [vmem:[%s5 + $0x2c] sm:$0xf]
        %v3037 = vld [vmem:[%s5 + $0x30] sm:$0xf]
        %v3038 = vld [vmem:[%s5 + $0x34] sm:$0xf]
        %v3039 = vld [vmem:[%s5 + $0x38] sm:$0xf]
        %v3040 = vld [vmem:[%s5 + $0x3c] sm:$0xf]
        %v3041 = vld [vmem:[%s5 + $0x40] sm:$0xf]
        %v3042 = vld [vmem:[%s5 + $0x44] sm:$0xf]
        %v3043 = vld [vmem:[%s5 + $0x48] sm:$0xf]
        %v3044 = vld [vmem:[%s5 + $0x4c] sm:$0xf]
        %v3045 = vld [vmem:[%s5 + $0x50] sm:$0xf]
        %v3046 = vld [vmem:[%s5 + $0x54] sm:$0xf]
        %v3047 = vld [vmem:[%s5 + $0x58] sm:$0xf]
        %v3048 = vld [vmem:[%s5 + $0x5c] sm:$0xf]
        %v3049 = vld [vmem:[%s5 + $0x60] sm:$0xf]
        %v3050 = vld [vmem:[%s5 + $0x64] sm:$0xf]
        %v3051 = vld [vmem:[%s5 + $0x68] sm:$0xf]
        %v3052 = vld [vmem:[%s5 + $0x6c] sm:$0xf]
        %v3053 = vld [vmem:[%s5 + $0x70] sm:$0xf]
        %v3054 = vld [vmem:[%s5 + $0x74] sm:$0xf]
        %v3055 = vld [vmem:[%s5 + $0x78] sm:$0xf]
        %v3056 = vld [vmem:[%s5 + $0x7c] sm:$0xf]
        %v3057 = vld [vmem:[%s5 + $0x80] sm:$0xf]
        %v3058 = vld [vmem:[%s5 + $0x84] sm:$0xf]
        %v3059 = vld [vmem:[%s5 + $0x88] sm:$0xf]
        %v3060 = vld [vmem:[%s5 + $0x8c] sm:$0xf]
        %v3061 = vld [vmem:[%s5 + $0x90] sm:$0xf]
        %v3062 = vld [vmem:[%s5 + $0x94] sm:$0xf]
        %v3063 = vld [vmem:[%s5 + $0x98] sm:$0xf]
        %v3064 = vld [vmem:[%s5 + $0x9c] sm:$0xf]
        %v3065 = vld [vmem:[%s5 + $0xa0] sm:$0xf]
        %v3066 = vld [vmem:[%s5 + $0xa4] sm:$0xf]
        %v3067 = vld [vmem:[%s5 + $0xa8] sm:$0xf]
        %v3068 = vld [vmem:[%s5 + $0xac] sm:$0xf]
        %v3069 = vld [vmem:[%s5 + $0xb0] sm:$0xf]
        %v3070 = vld [vmem:[%s5 + $0xb4] sm:$0xf]
        %v3071 = vld [vmem:[%s5 + $0xb8] sm:$0xf]
        %v3072 = vld [vmem:[%s5 + $0xbc] sm:$0xf]
        %v3073 = vld [vmem:[%s5 + $0xc0] sm:$0xf]
        %v3074 = vld [vmem:[%s5 + $0xc4] sm:$0xf]
        %v3075 = vld [vmem:[%s5 + $0xc8] sm:$0xf]
        %v3076 = vld [vmem:[%s5 + $0xcc] sm:$0xf]
        %v3077 = vld [vmem:[%s5 + $0xd0] sm:$0xf]
        %v3078 = vld [vmem:[%s5 + $0xd4] sm:$0xf]
        %v3079 = vld [vmem:[%s5 + $0xd8] sm:$0xf]
        %v3080 = vld [vmem:[%s5 + $0xdc] sm:$0xf]
        %v3081 = vld [vmem:[%s5 + $0xe0] sm:$0xf]
        %v3082 = vld [vmem:[%s5 + $0xe4] sm:$0xf]
        %v3083 = vld [vmem:[%s5 + $0xe8] sm:$0xf]
        %v3084 = vld [vmem:[%s5 + $0xec] sm:$0xf]
        %v3085 = vld [vmem:[%s5 + $0xf0] sm:$0xf]
        %v3086 = vld [vmem:[%s5 + $0xf4] sm:$0xf]
        %v3087 = vld [vmem:[%s5 + $0xf8] sm:$0xf]
        %v3088 = vld [vmem:[%s5 + $0xfc] sm:$0xf]
        %v3089 = vld [vmem:[%s5 + $0x100] sm:$0xf]
        %v3090 = vld [vmem:[%s5 + $0x104] sm:$0xf]
        %v3091 = vld [vmem:[%s5 + $0x108] sm:$0x1]
        %v3159 = vunpack.c.l.b16 %v3025
        %v3160 = vunpack.c.l.b16 %v3026
        %v3161 = vunpack.c.l.b16 %v3027
        %v3162 = vunpack.c.l.b16 %v3028
        %v3163 = vunpack.c.l.b16 %v3029
        %v3164 = vunpack.c.l.b16 %v3030
        %v3165 = vunpack.c.l.b16 %v3031
        %v3166 = vunpack.c.l.b16 %v3032
        %v3167 = vunpack.c.l.b16 %v3033
        %v3168 = vunpack.c.l.b16 %v3034
        %v3169 = vunpack.c.l.b16 %v3035
        %v3170 = vunpack.c.l.b16 %v3036
        %v3171 = vunpack.c.l.b16 %v3037
        %v3172 = vunpack.c.l.b16 %v3038
        %v3173 = vunpack.c.l.b16 %v3039
        %v3174 = vunpack.c.l.b16 %v3040
        %v3175 = vunpack.c.l.b16 %v3041
        %v3176 = vunpack.c.l.b16 %v3042
        %v3177 = vunpack.c.l.b16 %v3043
        %v3178 = vunpack.c.l.b16 %v3044
        %v3179 = vunpack.c.l.b16 %v3045
        %v3180 = vunpack.c.l.b16 %v3046
        %v3181 = vunpack.c.l.b16 %v3047
        %v3182 = vunpack.c.l.b16 %v3048
        %v3183 = vunpack.c.l.b16 %v3049
        %v3184 = vunpack.c.l.b16 %v3050
        %v3185 = vunpack.c.l.b16 %v3051
        %v3186 = vunpack.c.l.b16 %v3052
        %v3187 = vunpack.c.l.b16 %v3053
        %v3188 = vunpack.c.l.b16 %v3054
        %v3189 = vunpack.c.l.b16 %v3055
        %v3190 = vunpack.c.l.b16 %v3056
        %v3191 = vunpack.c.l.b16 %v3057
        %v3192 = vunpack.c.l.b16 %v3058
        %v3193 = vunpack.c.l.b16 %v3059
        %v3194 = vunpack.c.l.b16 %v3060
        %v3195 = vunpack.c.l.b16 %v3061
        %v3196 = vunpack.c.l.b16 %v3062
        %v3197 = vunpack.c.l.b16 %v3063
        %v3198 = vunpack.c.l.b16 %v3064
        %v3199 = vunpack.c.l.b16 %v3065
        %v3200 = vunpack.c.l.b16 %v3066
        %v3201 = vunpack.c.l.b16 %v3067
        %v3202 = vunpack.c.l.b16 %v3068
        %v3203 = vunpack.c.l.b16 %v3069
        %v3204 = vunpack.c.l.b16 %v3070
        %v3205 = vunpack.c.l.b16 %v3071
        %v3206 = vunpack.c.l.b16 %v3072
        %v3207 = vunpack.c.l.b16 %v3073
        %v3208 = vunpack.c.l.b16 %v3074
        %v3209 = vunpack.c.l.b16 %v3075
        %v3210 = vunpack.c.l.b16 %v3076
        %v3211 = vunpack.c.l.b16 %v3077
        %v3212 = vunpack.c.l.b16 %v3078
        %v3213 = vunpack.c.l.b16 %v3079
        %v3214 = vunpack.c.l.b16 %v3080
        %v3215 = vunpack.c.l.b16 %v3081
        %v3216 = vunpack.c.l.b16 %v3082
        %v3217 = vunpack.c.l.b16 %v3083
        %v3218 = vunpack.c.l.b16 %v3084
        %v3219 = vunpack.c.l.b16 %v3085
        %v3220 = vunpack.c.l.b16 %v3086
        %v3221 = vunpack.c.l.b16 %v3087
        %v3222 = vunpack.c.l.b16 %v3088
        %v3223 = vunpack.c.l.b16 %v3089
        %v3224 = vunpack.c.l.b16 %v3090
        %v3225 = vunpack.c.l.b16 %v3091
        %v3226 = vpack.c.b16 %v3160, %v3159
        %v3227 = vpack.c.b16 %v3162, %v3161
        %v3228 = vpack.c.b16 %v3164, %v3163
        %v3229 = vpack.c.b16 %v3166, %v3165
        %v3230 = vpack.c.b16 %v3168, %v3167
        %v3231 = vpack.c.b16 %v3170, %v3169
        %v3232 = vpack.c.b16 %v3172, %v3171
        %v3233 = vpack.c.b16 %v3174, %v3173
        %v3234 = vpack.c.b16 %v3176, %v3175
        %v3235 = vpack.c.b16 %v3178, %v3177
        %v3236 = vpack.c.b16 %v3180, %v3179
        %v3237 = vpack.c.b16 %v3182, %v3181
        %v3238 = vpack.c.b16 %v3184, %v3183
        %v3239 = vpack.c.b16 %v3186, %v3185
        %v3240 = vpack.c.b16 %v3188, %v3187
        %v3241 = vpack.c.b16 %v3190, %v3189
        %v3242 = vpack.c.b16 %v3192, %v3191
        %v3243 = vpack.c.b16 %v3194, %v3193
        %v3244 = vpack.c.b16 %v3196, %v3195
        %v3245 = vpack.c.b16 %v3198, %v3197
        %v3246 = vpack.c.b16 %v3200, %v3199
        %v3247 = vpack.c.b16 %v3202, %v3201
        %v3248 = vpack.c.b16 %v3204, %v3203
        %v3249 = vpack.c.b16 %v3206, %v3205
        %v3250 = vpack.c.b16 %v3208, %v3207
        %v3251 = vpack.c.b16 %v3210, %v3209
        %v3252 = vpack.c.b16 %v3212, %v3211
        %v3253 = vpack.c.b16 %v3214, %v3213
        %v3254 = vpack.c.b16 %v3216, %v3215
        %v3255 = vpack.c.b16 %v3218, %v3217
        %v3256 = vpack.c.b16 %v3220, %v3219
        %v3257 = vpack.c.b16 %v3222, %v3221
        %v3258 = vpack.c.b16 %v3224, %v3223
        %v3259 = vpack.c.b16 %v3225, %v3225
        %vm3293 = vcmask 138240
        %v3295 = vsel %vm3293, %v3024, 0
        %vm3297 = vcmask 1040384
        %v3298 = vsel 0, 4294967295, 65535
        %v3299 = vsel %vm3297, %v3298, 0
        %v3301 = vand.u32 %v3259, %v3299
        %3303 = vmatprep.subr.bf16.mxu0 0
        %3304 = vmatpush1.bf16.msra.mxu0 %v3233
        %3305 = vmatprep.subr.bf16.mxu0 0
        %3306 = vmatpush1.bf16.msra.mxu0 %v3232
        %3307 = vmatprep.subr.bf16.mxu0 0
        %3308 = vmatpush1.bf16.msra.mxu0 %v3231
        %3309 = vmatprep.subr.bf16.mxu0 0
        %3310 = vmatpush1.bf16.msra.mxu0 %v3230
        %3311 = vmatprep.subr.bf16.mxu0 0
        %3312 = vmatpush1.bf16.msra.mxu0 %v3229
        %3313 = vmatprep.subr.bf16.mxu0 0
        %3314 = vmatpush1.bf16.msra.mxu0 %v3228
        %3315 = vmatprep.subr.bf16.mxu0 0
        %3316 = vmatpush1.bf16.msra.mxu0 %v3227
        %3317 = vmatprep.subr.bf16.mxu0 0
        %3318 = vmatpush1.bf16.msra.mxu0 %v3226
        %3319 = vmatprep.subr.bf16.mxu0 0
        %3320 = vmatpush2.bf16.msra.mxu0 %v3241
        %3321 = vmatprep.subr.bf16.mxu0 0
        %3322 = vmatpush2.bf16.msra.mxu0 %v3240
        %3323 = vmatprep.subr.bf16.mxu0 0
        %3324 = vmatpush2.bf16.msra.mxu0 %v3239
        %3325 = vmatprep.subr.bf16.mxu0 0
        %3326 = vmatpush2.bf16.msra.mxu0 %v3238
        %3327 = vmatprep.subr.bf16.mxu0 0
        %3328 = vmatpush2.bf16.msra.mxu0 %v3237
        %3329 = vmatprep.subr.bf16.mxu0 0
        %3330 = vmatpush2.bf16.msra.mxu0 %v3236
        %3331 = vmatprep.subr.bf16.mxu0 0
        %3332 = vmatpush2.bf16.msra.mxu0 %v3235
        %3333 = vmatprep.subr.bf16.mxu0 0
        %3334 = vmatpush2.bf16.msra.mxu0 %v3234
        %3335 = vmatprep.mubr.bf16.mxu0 %v3021
        %3336 = vmatmul.mubr.bf16.gmra.mxu0 %v3020
        %v3337 = vpop.f32.mrf.mxu0
        %v3338 = vadd.f32 0.0, %v3337
        %v3339 = vpop.f32.mrf.mxu0
        %v3340 = vpop.f32.mrf.mxu0
        %v3341 = vadd.f32 0.0, %v3340
        %v3342 = vpop.f32.mrf.mxu0
        %3343 = vdwg.mxu0
        %3344 = vmatprep.subr.bf16.mxu0 0
        %3345 = vmatpush1.bf16.msra.mxu0 %v3249
        %3346 = vmatprep.subr.bf16.mxu0 0
        %3347 = vmatpush1.bf16.msra.mxu0 %v3248
        %3348 = vmatprep.subr.bf16.mxu0 0
        %3349 = vmatpush1.bf16.msra.mxu0 %v3247
        %3350 = vmatprep.subr.bf16.mxu0 0
        %3351 = vmatpush1.bf16.msra.mxu0 %v3246
        %3352 = vmatprep.subr.bf16.mxu0 0
        %3353 = vmatpush1.bf16.msra.mxu0 %v3245
        %3354 = vmatprep.subr.bf16.mxu0 0
        %3355 = vmatpush1.bf16.msra.mxu0 %v3244
        %3356 = vmatprep.subr.bf16.mxu0 0
        %3357 = vmatpush1.bf16.msra.mxu0 %v3243
        %3358 = vmatprep.subr.bf16.mxu0 0
        %3359 = vmatpush1.bf16.msra.mxu0 %v3242
        %3360 = vmatprep.subr.bf16.mxu0 0
        %3361 = vmatpush2.bf16.msra.mxu0 %v3257
        %3362 = vmatprep.subr.bf16.mxu0 0
        %3363 = vmatpush2.bf16.msra.mxu0 %v3256
        %3364 = vmatprep.subr.bf16.mxu0 0
        %3365 = vmatpush2.bf16.msra.mxu0 %v3255
        %3366 = vmatprep.subr.bf16.mxu0 0
        %3367 = vmatpush2.bf16.msra.mxu0 %v3254
        %3368 = vmatprep.subr.bf16.mxu0 0
        %3369 = vmatpush2.bf16.msra.mxu0 %v3253
        %3370 = vmatprep.subr.bf16.mxu0 0
        %3371 = vmatpush2.bf16.msra.mxu0 %v3252
        %3372 = vmatprep.subr.bf16.mxu0 0
        %3373 = vmatpush2.bf16.msra.mxu0 %v3251
        %3374 = vmatprep.subr.bf16.mxu0 0
        %3375 = vmatpush2.bf16.msra.mxu0 %v3250
        %3376 = vmatprep.mubr.bf16.mxu0 %v3023
        %3377 = vmatmul.mubr.bf16.gmra.mxu0 %v3022
        %v3378 = vpop.f32.mrf.mxu0
        %v3379 = vadd.f32 %v3338, %v3378
        %v3380 = vpop.f32.mrf.mxu0
        %v3381 = vpop.f32.mrf.mxu0
        %v3382 = vadd.f32 %v3341, %v3381
        %v3383 = vpop.f32.mrf.mxu0
        %3384 = vdwg.mxu0
        %3385 = vmatprep.subr.bf16.mxu0 0
        %3386 = vmatpush1.bf16.msra.mxu0 0
        %3387 = vmatprep.subr.bf16.mxu0 0
        %3388 = vmatpush1.bf16.msra.mxu0 0
        %3389 = vmatprep.subr.bf16.mxu0 0
        %3390 = vmatpush1.bf16.msra.mxu0 0
        %3391 = vmatprep.subr.bf16.mxu0 0
        %3392 = vmatpush1.bf16.msra.mxu0 0
        %3393 = vmatprep.subr.bf16.mxu0 0
        %3394 = vmatpush1.bf16.msra.mxu0 0
        %3395 = vmatprep.subr.bf16.mxu0 0
        %3396 = vmatpush1.bf16.msra.mxu0 0
        %3397 = vmatprep.subr.bf16.mxu0 0
        %3398 = vmatpush1.bf16.msra.mxu0 %v3301
        %3399 = vmatprep.subr.bf16.mxu0 0
        %3400 = vmatpush1.bf16.msra.mxu0 %v3258
        %3401 = vmatprep.subr.bf16.mxu0 0
        %3402 = vmatpush2.bf16.msra.mxu0 0
        %3403 = vmatprep.subr.bf16.mxu0 0
        %3404 = vmatpush2.bf16.msra.mxu0 0
        %3405 = vmatprep.subr.bf16.mxu0 0
        %3406 = vmatpush2.bf16.msra.mxu0 0
        %3407 = vmatprep.subr.bf16.mxu0 0
        %3408 = vmatpush2.bf16.msra.mxu0 0
        %3409 = vmatprep.subr.bf16.mxu0 0
        %3410 = vmatpush2.bf16.msra.mxu0 0
        %3411 = vmatprep.subr.bf16.mxu0 0
        %3412 = vmatpush2.bf16.msra.mxu0 0
        %3413 = vmatprep.subr.bf16.mxu0 0
        %3414 = vmatpush2.bf16.msra.mxu0 0
        %3415 = vmatprep.subr.bf16.mxu0 0
        %3416 = vmatpush2.bf16.msra.mxu0 0
        %3417 = vmatprep.mubr.bf16.mxu0 0
        %3418 = vmatmul.mubr.bf16.gmra.mxu0 %v3295
        %v3419 = vpop.f32.mrf.mxu0
        %v3420 = vadd.f32 %v3379, %v3419
        %v3421 = vpop.f32.mrf.mxu0
        %v3422 = vpop.f32.mrf.mxu0
        %v3423 = vadd.f32 %v3382, %v3422
        %v3424 = vpop.f32.mrf.mxu0
        %3425 = vdwg.mxu0
        %v3426 = vpack.c.bf16 %v3423, %v3420
        %v3427 = vld [vmem:[%s6] sm:$0xf]
        %v3428 = vld [vmem:[%s6 + $0x4] sm:$0xf]
        %v3429 = vld [vmem:[%s6 + $0x8] sm:$0xf]
        %v3430 = vld [vmem:[%s6 + $0xc] sm:$0x1]
        %s3431 = scalar_lea.vmem %s6, 16
        %v3432 = vld [vmem:[%s3431] sm:$0xf]
        %v3433 = vld [vmem:[%s3431 + $0x4] sm:$0xf]
        %v3434 = vld [vmem:[%s3431 + $0x8] sm:$0xf]
        %v3435 = vld [vmem:[%s3431 + $0xc] sm:$0x1]
        %v3437 = vshrl.u32 %v3426, 16
        %v3443 = vunpack.c.l.b16 %v3432
        %v3444 = vunpack.c.l.b16 %v3433
        %v3445 = vunpack.c.l.b16 %v3434
        %v3446 = vunpack.c.l.b16 %v3435
        %v3447 = vpack.c.b16 %v3444, %v3443
        %v3448 = vpack.c.b16 %v3446, %v3445
        %vm3450 = vcmask 203776
        %v3452 = vsel %vm3450, %v3437, 0
        %vm3454 = vcmask 1044480
        %v3455 = vsel %vm1580, 4294967295, 65535
        %v3456 = vsel %vm3454, %v3455, 0
        %v3458 = vand.u32 %v3448, %v3456
        %3460 = vmatprep.subr.bf16.mxu0 0
        %3461 = vmatpush1.bf16.msra.mxu0 0
        %3462 = vmatprep.subr.bf16.mxu0 0
        %3463 = vmatpush1.bf16.msra.mxu0 0
        %3464 = vmatprep.subr.bf16.mxu0 0
        %3465 = vmatpush1.bf16.msra.mxu0 0
        %3466 = vmatprep.subr.bf16.mxu0 0
        %3467 = vmatpush1.bf16.msra.mxu0 0
        %3468 = vmatprep.subr.bf16.mxu0 0
        %3469 = vmatpush1.bf16.msra.mxu0 0
        %3470 = vmatprep.subr.bf16.mxu0 0
        %3471 = vmatpush1.bf16.msra.mxu0 0
        %3472 = vmatprep.subr.bf16.mxu0 0
        %3473 = vmatpush1.bf16.msra.mxu0 %v3458
        %3474 = vmatprep.subr.bf16.mxu0 0
        %3475 = vmatpush1.bf16.msra.mxu0 %v3447
        %3476 = vmatprep.subr.bf16.mxu0 0
        %3477 = vmatpush2.bf16.msra.mxu0 0
        %3478 = vmatprep.subr.bf16.mxu0 0
        %3479 = vmatpush2.bf16.msra.mxu0 0
        %3480 = vmatprep.subr.bf16.mxu0 0
        %3481 = vmatpush2.bf16.msra.mxu0 0
        %3482 = vmatprep.subr.bf16.mxu0 0
        %3483 = vmatpush2.bf16.msra.mxu0 0
        %3484 = vmatprep.subr.bf16.mxu0 0
        %3485 = vmatpush2.bf16.msra.mxu0 0
        %3486 = vmatprep.subr.bf16.mxu0 0
        %3487 = vmatpush2.bf16.msra.mxu0 0
        %3488 = vmatprep.subr.bf16.mxu0 0
        %3489 = vmatpush2.bf16.msra.mxu0 0
        %3490 = vmatprep.subr.bf16.mxu0 0
        %3491 = vmatpush2.bf16.msra.mxu0 0
        %3492 = vmatprep.mubr.bf16.mxu0 0
        %3493 = vmatmul.mubr.bf16.gmra.mxu0 %v3452
        %v3494 = vpop.f32.mrf.mxu0
        %v3495 = vadd.f32 0.0, %v3494
        %v3496 = vpop.f32.mrf.mxu0
        %v3497 = vpop.f32.mrf.mxu0
        %v3498 = vpop.f32.mrf.mxu0
        %3499 = vdwg.mxu0
        %v3504 = vunpack.c.l.b16 %v3427
        %v3505 = vunpack.c.l.b16 %v3428
        %v3506 = vunpack.c.l.b16 %v3429
        %v3507 = vunpack.c.l.b16 %v3430
        %v3508 = vpack.c.b16 %v3505, %v3504
        %v3509 = vpack.c.b16 %v3507, %v3506
        %v3511 = vsel %vm3450, %v3426, 0
        %v3514 = vand.u32 %v3509, %v3456
        %3516 = vmatprep.subr.bf16.mxu0 0
        %3517 = vmatpush1.bf16.msra.mxu0 0
        %3518 = vmatprep.subr.bf16.mxu0 0
        %3519 = vmatpush1.bf16.msra.mxu0 0
        %3520 = vmatprep.subr.bf16.mxu0 0
        %3521 = vmatpush1.bf16.msra.mxu0 0
        %3522 = vmatprep.subr.bf16.mxu0 0
        %3523 = vmatpush1.bf16.msra.mxu0 0
        %3524 = vmatprep.subr.bf16.mxu0 0
        %3525 = vmatpush1.bf16.msra.mxu0 0
        %3526 = vmatprep.subr.bf16.mxu0 0
        %3527 = vmatpush1.bf16.msra.mxu0 0
        %3528 = vmatprep.subr.bf16.mxu0 0
        %3529 = vmatpush1.bf16.msra.mxu0 %v3514
        %3530 = vmatprep.subr.bf16.mxu0 0
        %3531 = vmatpush1.bf16.msra.mxu0 %v3508
        %3532 = vmatprep.subr.bf16.mxu0 0
        %3533 = vmatpush2.bf16.msra.mxu0 0
        %3534 = vmatprep.subr.bf16.mxu0 0
        %3535 = vmatpush2.bf16.msra.mxu0 0
        %3536 = vmatprep.subr.bf16.mxu0 0
        %3537 = vmatpush2.bf16.msra.mxu0 0
        %3538 = vmatprep.subr.bf16.mxu0 0
        %3539 = vmatpush2.bf16.msra.mxu0 0
        %3540 = vmatprep.subr.bf16.mxu0 0
        %3541 = vmatpush2.bf16.msra.mxu0 0
        %3542 = vmatprep.subr.bf16.mxu0 0
        %3543 = vmatpush2.bf16.msra.mxu0 0
        %3544 = vmatprep.subr.bf16.mxu0 0
        %3545 = vmatpush2.bf16.msra.mxu0 0
        %3546 = vmatprep.subr.bf16.mxu0 0
        %3547 = vmatpush2.bf16.msra.mxu0 0
        %3548 = vmatprep.mubr.bf16.mxu0 0
        %3549 = vmatmul.mubr.bf16.gmra.mxu0 %v3511
        %v3550 = vpop.f32.mrf.mxu0
        %v3551 = vadd.f32 %v3495, %v3550
        %v3552 = vpop.f32.mrf.mxu0
        %v3553 = vpop.f32.mrf.mxu0
        %v3554 = vpop.f32.mrf.mxu0
        %3555 = vdwg.mxu0
        %s3556 = scalar_lea.vmem %s6, 32
        %v3557 = vld [vmem:[%s3556] sm:$0xf]
        %v3558 = vld [vmem:[%s3556 + $0x4] sm:$0xf]
        %v3559 = vld [vmem:[%s3556 + $0x8] sm:$0xf]
        %v3560 = vld [vmem:[%s3556 + $0xc] sm:$0x1]
        %v3562 = vrot.slane %v3426, 1
        %v3567 = vunpack.c.l.b16 %v3557
        %v3568 = vunpack.c.l.b16 %v3558
        %v3569 = vunpack.c.l.b16 %v3559
        %v3570 = vunpack.c.l.b16 %v3560
        %v3571 = vpack.c.b16 %v3568, %v3567
        %v3572 = vpack.c.b16 %v3570, %v3569
        %v3575 = vsel %vm3450, %v3562, 0
        %v3578 = vand.u32 %v3572, %v3456
        %3580 = vmatprep.subr.bf16.mxu0 0
        %3581 = vmatpush1.bf16.msra.mxu0 0
        %3582 = vmatprep.subr.bf16.mxu0 0
        %3583 = vmatpush1.bf16.msra.mxu0 0
        %3584 = vmatprep.subr.bf16.mxu0 0
        %3585 = vmatpush1.bf16.msra.mxu0 0
        %3586 = vmatprep.subr.bf16.mxu0 0
        %3587 = vmatpush1.bf16.msra.mxu0 0
        %3588 = vmatprep.subr.bf16.mxu0 0
        %3589 = vmatpush1.bf16.msra.mxu0 0
        %3590 = vmatprep.subr.bf16.mxu0 0
        %3591 = vmatpush1.bf16.msra.mxu0 0
        %3592 = vmatprep.subr.bf16.mxu0 0
        %3593 = vmatpush1.bf16.msra.mxu0 %v3578
        %3594 = vmatprep.subr.bf16.mxu0 0
        %3595 = vmatpush1.bf16.msra.mxu0 %v3571
        %3596 = vmatprep.subr.bf16.mxu0 0
        %3597 = vmatpush2.bf16.msra.mxu0 0
        %3598 = vmatprep.subr.bf16.mxu0 0
        %3599 = vmatpush2.bf16.msra.mxu0 0
        %3600 = vmatprep.subr.bf16.mxu0 0
        %3601 = vmatpush2.bf16.msra.mxu0 0
        %3602 = vmatprep.subr.bf16.mxu0 0
        %3603 = vmatpush2.bf16.msra.mxu0 0
        %3604 = vmatprep.subr.bf16.mxu0 0
        %3605 = vmatpush2.bf16.msra.mxu0 0
        %3606 = vmatprep.subr.bf16.mxu0 0
        %3607 = vmatpush2.bf16.msra.mxu0 0
        %3608 = vmatprep.subr.bf16.mxu0 0
        %3609 = vmatpush2.bf16.msra.mxu0 0
        %3610 = vmatprep.subr.bf16.mxu0 0
        %3611 = vmatpush2.bf16.msra.mxu0 0
        %3612 = vmatprep.mubr.bf16.mxu0 0
        %3613 = vmatmul.mubr.bf16.gmra.mxu0 %v3575
        %v3614 = vpop.f32.mrf.mxu0
        %v3615 = vadd.f32 0.0, %v3614
        %v3616 = vpop.f32.mrf.mxu0
        %v3617 = vpop.f32.mrf.mxu0
        %v3618 = vpop.f32.mrf.mxu0
        %3619 = vdwg.mxu0
        %v3620 = vadd.f32 %v3551, %v3615
        %s3621 = scalar_lea.vmem %s6, 48
        %v3622 = vld [vmem:[%s3621] sm:$0xf]
        %v3623 = vld [vmem:[%s3621 + $0x4] sm:$0xf]
        %v3624 = vld [vmem:[%s3621 + $0x8] sm:$0xf]
        %v3625 = vld [vmem:[%s3621 + $0xc] sm:$0x1]
        %v3626 = vrot.slane %v3437, 1
        %v3631 = vunpack.c.l.b16 %v3622
        %v3632 = vunpack.c.l.b16 %v3623
        %v3633 = vunpack.c.l.b16 %v3624
        %v3634 = vunpack.c.l.b16 %v3625
        %v3635 = vpack.c.b16 %v3632, %v3631
        %v3636 = vpack.c.b16 %v3634, %v3633
        %v3639 = vsel %vm3450, %v3626, 0
        %v3642 = vand.u32 %v3636, %v3456
        %3644 = vmatprep.subr.bf16.mxu0 0
        %3645 = vmatpush1.bf16.msra.mxu0 0
        %3646 = vmatprep.subr.bf16.mxu0 0
        %3647 = vmatpush1.bf16.msra.mxu0 0
        %3648 = vmatprep.subr.bf16.mxu0 0
        %3649 = vmatpush1.bf16.msra.mxu0 0
        %3650 = vmatprep.subr.bf16.mxu0 0
        %3651 = vmatpush1.bf16.msra.mxu0 0
        %3652 = vmatprep.subr.bf16.mxu0 0
        %3653 = vmatpush1.bf16.msra.mxu0 0
        %3654 = vmatprep.subr.bf16.mxu0 0
        %3655 = vmatpush1.bf16.msra.mxu0 0
        %3656 = vmatprep.subr.bf16.mxu0 0
        %3657 = vmatpush1.bf16.msra.mxu0 %v3642
        %3658 = vmatprep.subr.bf16.mxu0 0
        %3659 = vmatpush1.bf16.msra.mxu0 %v3635
        %3660 = vmatprep.subr.bf16.mxu0 0
        %3661 = vmatpush2.bf16.msra.mxu0 0
        %3662 = vmatprep.subr.bf16.mxu0 0
        %3663 = vmatpush2.bf16.msra.mxu0 0
        %3664 = vmatprep.subr.bf16.mxu0 0
        %3665 = vmatpush2.bf16.msra.mxu0 0
        %3666 = vmatprep.subr.bf16.mxu0 0
        %3667 = vmatpush2.bf16.msra.mxu0 0
        %3668 = vmatprep.subr.bf16.mxu0 0
        %3669 = vmatpush2.bf16.msra.mxu0 0
        %3670 = vmatprep.subr.bf16.mxu0 0
        %3671 = vmatpush2.bf16.msra.mxu0 0
        %3672 = vmatprep.subr.bf16.mxu0 0
        %3673 = vmatpush2.bf16.msra.mxu0 0
        %3674 = vmatprep.subr.bf16.mxu0 0
        %3675 = vmatpush2.bf16.msra.mxu0 0
        %3676 = vmatprep.mubr.bf16.mxu0 0
        %3677 = vmatmul.mubr.bf16.gmra.mxu0 %v3639
        %v3678 = vpop.f32.mrf.mxu0
        %v3679 = vadd.f32 0.0, %v3678
        %v3680 = vpop.f32.mrf.mxu0
        %v3681 = vpop.f32.mrf.mxu0
        %v3682 = vpop.f32.mrf.mxu0
        %3683 = vdwg.mxu0
        %v3684 = vadd.f32 %v3620, %v3679
        %s3685 = scalar_lea.vmem %s6, 64
        %v3686 = vld [vmem:[%s3685] sm:$0xf]
        %v3687 = vld [vmem:[%s3685 + $0x4] sm:$0xf]
        %v3688 = vld [vmem:[%s3685 + $0x8] sm:$0xf]
        %v3689 = vld [vmem:[%s3685 + $0xc] sm:$0x1]
        %v3690 = vrot.slane %v3426, 2
        %v3695 = vunpack.c.l.b16 %v3686
        %v3696 = vunpack.c.l.b16 %v3687
        %v3697 = vunpack.c.l.b16 %v3688
        %v3698 = vunpack.c.l.b16 %v3689
        %v3699 = vpack.c.b16 %v3696, %v3695
        %v3700 = vpack.c.b16 %v3698, %v3697
        %v3703 = vsel %vm3450, %v3690, 0
        %v3706 = vand.u32 %v3700, %v3456
        %3708 = vmatprep.subr.bf16.mxu0 0
        %3709 = vmatpush1.bf16.msra.mxu0 0
        %3710 = vmatprep.subr.bf16.mxu0 0
        %3711 = vmatpush1.bf16.msra.mxu0 0
        %3712 = vmatprep.subr.bf16.mxu0 0
        %3713 = vmatpush1.bf16.msra.mxu0 0
        %3714 = vmatprep.subr.bf16.mxu0 0
        %3715 = vmatpush1.bf16.msra.mxu0 0
        %3716 = vmatprep.subr.bf16.mxu0 0
        %3717 = vmatpush1.bf16.msra.mxu0 0
        %3718 = vmatprep.subr.bf16.mxu0 0
        %3719 = vmatpush1.bf16.msra.mxu0 0
        %3720 = vmatprep.subr.bf16.mxu0 0
        %3721 = vmatpush1.bf16.msra.mxu0 %v3706
        %3722 = vmatprep.subr.bf16.mxu0 0
        %3723 = vmatpush1.bf16.msra.mxu0 %v3699
        %3724 = vmatprep.subr.bf16.mxu0 0
        %3725 = vmatpush2.bf16.msra.mxu0 0
        %3726 = vmatprep.subr.bf16.mxu0 0
        %3727 = vmatpush2.bf16.msra.mxu0 0
        %3728 = vmatprep.subr.bf16.mxu0 0
        %3729 = vmatpush2.bf16.msra.mxu0 0
        %3730 = vmatprep.subr.bf16.mxu0 0
        %3731 = vmatpush2.bf16.msra.mxu0 0
        %3732 = vmatprep.subr.bf16.mxu0 0
        %3733 = vmatpush2.bf16.msra.mxu0 0
        %3734 = vmatprep.subr.bf16.mxu0 0
        %3735 = vmatpush2.bf16.msra.mxu0 0
        %3736 = vmatprep.subr.bf16.mxu0 0
        %3737 = vmatpush2.bf16.msra.mxu0 0
        %3738 = vmatprep.subr.bf16.mxu0 0
        %3739 = vmatpush2.bf16.msra.mxu0 0
        %3740 = vmatprep.mubr.bf16.mxu0 0
        %3741 = vmatmul.mubr.bf16.gmra.mxu0 %v3703
        %v3742 = vpop.f32.mrf.mxu0
        %v3743 = vadd.f32 0.0, %v3742
        %v3744 = vpop.f32.mrf.mxu0
        %v3745 = vpop.f32.mrf.mxu0
        %v3746 = vpop.f32.mrf.mxu0
        %3747 = vdwg.mxu0
        %v3748 = vadd.f32 %v3684, %v3743
        %s3749 = scalar_lea.vmem %s6, 80
        %v3750 = vld [vmem:[%s3749] sm:$0xf]
        %v3751 = vld [vmem:[%s3749 + $0x4] sm:$0xf]
        %v3752 = vld [vmem:[%s3749 + $0x8] sm:$0xf]
        %v3753 = vld [vmem:[%s3749 + $0xc] sm:$0x1]
        %v3754 = vrot.slane %v3437, 2
        %v3759 = vunpack.c.l.b16 %v3750
        %v3760 = vunpack.c.l.b16 %v3751
        %v3761 = vunpack.c.l.b16 %v3752
        %v3762 = vunpack.c.l.b16 %v3753
        %v3763 = vpack.c.b16 %v3760, %v3759
        %v3764 = vpack.c.b16 %v3762, %v3761
        %v3767 = vsel %vm3450, %v3754, 0
        %v3770 = vand.u32 %v3764, %v3456
        %3772 = vmatprep.subr.bf16.mxu0 0
        %3773 = vmatpush1.bf16.msra.mxu0 0
        %3774 = vmatprep.subr.bf16.mxu0 0
        %3775 = vmatpush1.bf16.msra.mxu0 0
        %3776 = vmatprep.subr.bf16.mxu0 0
        %3777 = vmatpush1.bf16.msra.mxu0 0
        %3778 = vmatprep.subr.bf16.mxu0 0
        %3779 = vmatpush1.bf16.msra.mxu0 0
        %3780 = vmatprep.subr.bf16.mxu0 0
        %3781 = vmatpush1.bf16.msra.mxu0 0
        %3782 = vmatprep.subr.bf16.mxu0 0
        %3783 = vmatpush1.bf16.msra.mxu0 0
        %3784 = vmatprep.subr.bf16.mxu0 0
        %3785 = vmatpush1.bf16.msra.mxu0 %v3770
        %3786 = vmatprep.subr.bf16.mxu0 0
        %3787 = vmatpush1.bf16.msra.mxu0 %v3763
        %3788 = vmatprep.subr.bf16.mxu0 0
        %3789 = vmatpush2.bf16.msra.mxu0 0
        %3790 = vmatprep.subr.bf16.mxu0 0
        %3791 = vmatpush2.bf16.msra.mxu0 0
        %3792 = vmatprep.subr.bf16.mxu0 0
        %3793 = vmatpush2.bf16.msra.mxu0 0
        %3794 = vmatprep.subr.bf16.mxu0 0
        %3795 = vmatpush2.bf16.msra.mxu0 0
        %3796 = vmatprep.subr.bf16.mxu0 0
        %3797 = vmatpush2.bf16.msra.mxu0 0
        %3798 = vmatprep.subr.bf16.mxu0 0
        %3799 = vmatpush2.bf16.msra.mxu0 0
        %3800 = vmatprep.subr.bf16.mxu0 0
        %3801 = vmatpush2.bf16.msra.mxu0 0
        %3802 = vmatprep.subr.bf16.mxu0 0
        %3803 = vmatpush2.bf16.msra.mxu0 0
        %3804 = vmatprep.mubr.bf16.mxu0 0
        %3805 = vmatmul.mubr.bf16.gmra.mxu0 %v3767
        %v3806 = vpop.f32.mrf.mxu0
        %v3807 = vadd.f32 0.0, %v3806
        %v3808 = vpop.f32.mrf.mxu0
        %v3809 = vpop.f32.mrf.mxu0
        %v3810 = vpop.f32.mrf.mxu0
        %3811 = vdwg.mxu0
        %v3812 = vadd.f32 %v3748, %v3807
        %s3813 = scalar_lea.vmem %s6, 96
        %v3814 = vld [vmem:[%s3813] sm:$0xf]
        %v3815 = vld [vmem:[%s3813 + $0x4] sm:$0xf]
        %v3816 = vld [vmem:[%s3813 + $0x8] sm:$0xf]
        %v3817 = vld [vmem:[%s3813 + $0xc] sm:$0x1]
        %v3818 = vrot.slane %v3426, 3
        %v3823 = vunpack.c.l.b16 %v3814
        %v3824 = vunpack.c.l.b16 %v3815
        %v3825 = vunpack.c.l.b16 %v3816
        %v3826 = vunpack.c.l.b16 %v3817
        %v3827 = vpack.c.b16 %v3824, %v3823
        %v3828 = vpack.c.b16 %v3826, %v3825
        %v3831 = vsel %vm3450, %v3818, 0
        %v3834 = vand.u32 %v3828, %v3456
        %3836 = vmatprep.subr.bf16.mxu0 0
        %3837 = vmatpush1.bf16.msra.mxu0 0
        %3838 = vmatprep.subr.bf16.mxu0 0
        %3839 = vmatpush1.bf16.msra.mxu0 0
        %3840 = vmatprep.subr.bf16.mxu0 0
        %3841 = vmatpush1.bf16.msra.mxu0 0
        %3842 = vmatprep.subr.bf16.mxu0 0
        %3843 = vmatpush1.bf16.msra.mxu0 0
        %3844 = vmatprep.subr.bf16.mxu0 0
        %3845 = vmatpush1.bf16.msra.mxu0 0
        %3846 = vmatprep.subr.bf16.mxu0 0
        %3847 = vmatpush1.bf16.msra.mxu0 0
        %3848 = vmatprep.subr.bf16.mxu0 0
        %3849 = vmatpush1.bf16.msra.mxu0 %v3834
        %3850 = vmatprep.subr.bf16.mxu0 0
        %3851 = vmatpush1.bf16.msra.mxu0 %v3827
        %3852 = vmatprep.subr.bf16.mxu0 0
        %3853 = vmatpush2.bf16.msra.mxu0 0
        %3854 = vmatprep.subr.bf16.mxu0 0
        %3855 = vmatpush2.bf16.msra.mxu0 0
        %3856 = vmatprep.subr.bf16.mxu0 0
        %3857 = vmatpush2.bf16.msra.mxu0 0
        %3858 = vmatprep.subr.bf16.mxu0 0
        %3859 = vmatpush2.bf16.msra.mxu0 0
        %3860 = vmatprep.subr.bf16.mxu0 0
        %3861 = vmatpush2.bf16.msra.mxu0 0
        %3862 = vmatprep.subr.bf16.mxu0 0
        %3863 = vmatpush2.bf16.msra.mxu0 0
        %3864 = vmatprep.subr.bf16.mxu0 0
        %3865 = vmatpush2.bf16.msra.mxu0 0
        %3866 = vmatprep.subr.bf16.mxu0 0
        %3867 = vmatpush2.bf16.msra.mxu0 0
        %3868 = vmatprep.mubr.bf16.mxu0 0
        %3869 = vmatmul.mubr.bf16.gmra.mxu0 %v3831
        %v3870 = vpop.f32.mrf.mxu0
        %v3871 = vadd.f32 0.0, %v3870
        %v3872 = vpop.f32.mrf.mxu0
        %v3873 = vpop.f32.mrf.mxu0
        %v3874 = vpop.f32.mrf.mxu0
        %3875 = vdwg.mxu0
        %v3876 = vadd.f32 %v3812, %v3871
        %s3877 = scalar_lea.vmem %s6, 112
        %v3878 = vld [vmem:[%s3877] sm:$0xf]
        %v3879 = vld [vmem:[%s3877 + $0x4] sm:$0xf]
        %v3880 = vld [vmem:[%s3877 + $0x8] sm:$0xf]
        %v3881 = vld [vmem:[%s3877 + $0xc] sm:$0x1]
        %v3882 = vrot.slane %v3437, 3
        %v3887 = vunpack.c.l.b16 %v3878
        %v3888 = vunpack.c.l.b16 %v3879
        %v3889 = vunpack.c.l.b16 %v3880
        %v3890 = vunpack.c.l.b16 %v3881
        %v3891 = vpack.c.b16 %v3888, %v3887
        %v3892 = vpack.c.b16 %v3890, %v3889
        %v3895 = vsel %vm3450, %v3882, 0
        %v3898 = vand.u32 %v3892, %v3456
        %3900 = vmatprep.subr.bf16.mxu0 0
        %3901 = vmatpush1.bf16.msra.mxu0 0
        %3902 = vmatprep.subr.bf16.mxu0 0
        %3903 = vmatpush1.bf16.msra.mxu0 0
        %3904 = vmatprep.subr.bf16.mxu0 0
        %3905 = vmatpush1.bf16.msra.mxu0 0
        %3906 = vmatprep.subr.bf16.mxu0 0
        %3907 = vmatpush1.bf16.msra.mxu0 0
        %3908 = vmatprep.subr.bf16.mxu0 0
        %3909 = vmatpush1.bf16.msra.mxu0 0
        %3910 = vmatprep.subr.bf16.mxu0 0
        %3911 = vmatpush1.bf16.msra.mxu0 0
        %3912 = vmatprep.subr.bf16.mxu0 0
        %3913 = vmatpush1.bf16.msra.mxu0 %v3898
        %3914 = vmatprep.subr.bf16.mxu0 0
        %3915 = vmatpush1.bf16.msra.mxu0 %v3891
        %3916 = vmatprep.subr.bf16.mxu0 0
        %3917 = vmatpush2.bf16.msra.mxu0 0
        %3918 = vmatprep.subr.bf16.mxu0 0
        %3919 = vmatpush2.bf16.msra.mxu0 0
        %3920 = vmatprep.subr.bf16.mxu0 0
        %3921 = vmatpush2.bf16.msra.mxu0 0
        %3922 = vmatprep.subr.bf16.mxu0 0
        %3923 = vmatpush2.bf16.msra.mxu0 0
        %3924 = vmatprep.subr.bf16.mxu0 0
        %3925 = vmatpush2.bf16.msra.mxu0 0
        %3926 = vmatprep.subr.bf16.mxu0 0
        %3927 = vmatpush2.bf16.msra.mxu0 0
        %3928 = vmatprep.subr.bf16.mxu0 0
        %3929 = vmatpush2.bf16.msra.mxu0 0
        %3930 = vmatprep.subr.bf16.mxu0 0
        %3931 = vmatpush2.bf16.msra.mxu0 0
        %3932 = vmatprep.mubr.bf16.mxu0 0
        %3933 = vmatmul.mubr.bf16.gmra.mxu0 %v3895
        %v3934 = vpop.f32.mrf.mxu0
        %v3935 = vadd.f32 0.0, %v3934
        %v3936 = vpop.f32.mrf.mxu0
        %v3937 = vpop.f32.mrf.mxu0
        %v3938 = vpop.f32.mrf.mxu0
        %3939 = vdwg.mxu0
        %v3940 = vadd.f32 %v3876, %v3935
        %s3941 = scalar_lea.vmem %s6, 128
        %v3942 = vld [vmem:[%s3941] sm:$0xf]
        %v3943 = vld [vmem:[%s3941 + $0x4] sm:$0xf]
        %v3944 = vld [vmem:[%s3941 + $0x8] sm:$0xf]
        %v3945 = vld [vmem:[%s3941 + $0xc] sm:$0x1]
        %v3946 = vrot.slane %v3426, 4
        %v3951 = vunpack.c.l.b16 %v3942
        %v3952 = vunpack.c.l.b16 %v3943
        %v3953 = vunpack.c.l.b16 %v3944
        %v3954 = vunpack.c.l.b16 %v3945
        %v3955 = vpack.c.b16 %v3952, %v3951
        %v3956 = vpack.c.b16 %v3954, %v3953
        %v3959 = vsel %vm3450, %v3946, 0
        %v3962 = vand.u32 %v3956, %v3456
        %3964 = vmatprep.subr.bf16.mxu0 0
        %3965 = vmatpush1.bf16.msra.mxu0 0
        %3966 = vmatprep.subr.bf16.mxu0 0
        %3967 = vmatpush1.bf16.msra.mxu0 0
        %3968 = vmatprep.subr.bf16.mxu0 0
        %3969 = vmatpush1.bf16.msra.mxu0 0
        %3970 = vmatprep.subr.bf16.mxu0 0
        %3971 = vmatpush1.bf16.msra.mxu0 0
        %3972 = vmatprep.subr.bf16.mxu0 0
        %3973 = vmatpush1.bf16.msra.mxu0 0
        %3974 = vmatprep.subr.bf16.mxu0 0
        %3975 = vmatpush1.bf16.msra.mxu0 0
        %3976 = vmatprep.subr.bf16.mxu0 0
        %3977 = vmatpush1.bf16.msra.mxu0 %v3962
        %3978 = vmatprep.subr.bf16.mxu0 0
        %3979 = vmatpush1.bf16.msra.mxu0 %v3955
        %3980 = vmatprep.subr.bf16.mxu0 0
        %3981 = vmatpush2.bf16.msra.mxu0 0
        %3982 = vmatprep.subr.bf16.mxu0 0
        %3983 = vmatpush2.bf16.msra.mxu0 0
        %3984 = vmatprep.subr.bf16.mxu0 0
        %3985 = vmatpush2.bf16.msra.mxu0 0
        %3986 = vmatprep.subr.bf16.mxu0 0
        %3987 = vmatpush2.bf16.msra.mxu0 0
        %3988 = vmatprep.subr.bf16.mxu0 0
        %3989 = vmatpush2.bf16.msra.mxu0 0
        %3990 = vmatprep.subr.bf16.mxu0 0
        %3991 = vmatpush2.bf16.msra.mxu0 0
        %3992 = vmatprep.subr.bf16.mxu0 0
        %3993 = vmatpush2.bf16.msra.mxu0 0
        %3994 = vmatprep.subr.bf16.mxu0 0
        %3995 = vmatpush2.bf16.msra.mxu0 0
        %3996 = vmatprep.mubr.bf16.mxu0 0
        %3997 = vmatmul.mubr.bf16.gmra.mxu0 %v3959
        %v3998 = vpop.f32.mrf.mxu0
        %v3999 = vadd.f32 0.0, %v3998
        %v4000 = vpop.f32.mrf.mxu0
        %v4001 = vpop.f32.mrf.mxu0
        %v4002 = vpop.f32.mrf.mxu0
        %4003 = vdwg.mxu0
        %v4004 = vadd.f32 %v3940, %v3999
        %s4005 = scalar_lea.vmem %s6, 144
        %v4006 = vld [vmem:[%s4005] sm:$0xf]
        %v4007 = vld [vmem:[%s4005 + $0x4] sm:$0xf]
        %v4008 = vld [vmem:[%s4005 + $0x8] sm:$0xf]
        %v4009 = vld [vmem:[%s4005 + $0xc] sm:$0x1]
        %v4010 = vrot.slane %v3437, 4
        %v4015 = vunpack.c.l.b16 %v4006
        %v4016 = vunpack.c.l.b16 %v4007
        %v4017 = vunpack.c.l.b16 %v4008
        %v4018 = vunpack.c.l.b16 %v4009
        %v4019 = vpack.c.b16 %v4016, %v4015
        %v4020 = vpack.c.b16 %v4018, %v4017
        %v4023 = vsel %vm3450, %v4010, 0
        %v4026 = vand.u32 %v4020, %v3456
        %4028 = vmatprep.subr.bf16.mxu0 0
        %4029 = vmatpush1.bf16.msra.mxu0 0
        %4030 = vmatprep.subr.bf16.mxu0 0
        %4031 = vmatpush1.bf16.msra.mxu0 0
        %4032 = vmatprep.subr.bf16.mxu0 0
        %4033 = vmatpush1.bf16.msra.mxu0 0
        %4034 = vmatprep.subr.bf16.mxu0 0
        %4035 = vmatpush1.bf16.msra.mxu0 0
        %4036 = vmatprep.subr.bf16.mxu0 0
        %4037 = vmatpush1.bf16.msra.mxu0 0
        %4038 = vmatprep.subr.bf16.mxu0 0
        %4039 = vmatpush1.bf16.msra.mxu0 0
        %4040 = vmatprep.subr.bf16.mxu0 0
        %4041 = vmatpush1.bf16.msra.mxu0 %v4026
        %4042 = vmatprep.subr.bf16.mxu0 0
        %4043 = vmatpush1.bf16.msra.mxu0 %v4019
        %4044 = vmatprep.subr.bf16.mxu0 0
        %4045 = vmatpush2.bf16.msra.mxu0 0
        %4046 = vmatprep.subr.bf16.mxu0 0
        %4047 = vmatpush2.bf16.msra.mxu0 0
        %4048 = vmatprep.subr.bf16.mxu0 0
        %4049 = vmatpush2.bf16.msra.mxu0 0
        %4050 = vmatprep.subr.bf16.mxu0 0
        %4051 = vmatpush2.bf16.msra.mxu0 0
        %4052 = vmatprep.subr.bf16.mxu0 0
        %4053 = vmatpush2.bf16.msra.mxu0 0
        %4054 = vmatprep.subr.bf16.mxu0 0
        %4055 = vmatpush2.bf16.msra.mxu0 0
        %4056 = vmatprep.subr.bf16.mxu0 0
        %4057 = vmatpush2.bf16.msra.mxu0 0
        %4058 = vmatprep.subr.bf16.mxu0 0
        %4059 = vmatpush2.bf16.msra.mxu0 0
        %4060 = vmatprep.mubr.bf16.mxu0 0
        %4061 = vmatmul.mubr.bf16.gmra.mxu0 %v4023
        %v4062 = vpop.f32.mrf.mxu0
        %v4063 = vadd.f32 0.0, %v4062
        %v4064 = vpop.f32.mrf.mxu0
        %v4065 = vpop.f32.mrf.mxu0
        %v4066 = vpop.f32.mrf.mxu0
        %4067 = vdwg.mxu0
        %v4068 = vadd.f32 %v4004, %v4063
        %s4069 = scalar_lea.vmem %s6, 160
        %v4070 = vld [vmem:[%s4069] sm:$0xf]
        %v4071 = vld [vmem:[%s4069 + $0x4] sm:$0xf]
        %v4072 = vld [vmem:[%s4069 + $0x8] sm:$0xf]
        %v4073 = vld [vmem:[%s4069 + $0xc] sm:$0x1]
        %v4074 = vrot.slane %v3426, 5
        %v4079 = vunpack.c.l.b16 %v4070
        %v4080 = vunpack.c.l.b16 %v4071
        %v4081 = vunpack.c.l.b16 %v4072
        %v4082 = vunpack.c.l.b16 %v4073
        %v4083 = vpack.c.b16 %v4080, %v4079
        %v4084 = vpack.c.b16 %v4082, %v4081
        %v4087 = vsel %vm3450, %v4074, 0
        %v4090 = vand.u32 %v4084, %v3456
        %4092 = vmatprep.subr.bf16.mxu0 0
        %4093 = vmatpush1.bf16.msra.mxu0 0
        %4094 = vmatprep.subr.bf16.mxu0 0
        %4095 = vmatpush1.bf16.msra.mxu0 0
        %4096 = vmatprep.subr.bf16.mxu0 0
        %4097 = vmatpush1.bf16.msra.mxu0 0
        %4098 = vmatprep.subr.bf16.mxu0 0
        %4099 = vmatpush1.bf16.msra.mxu0 0
        %4100 = vmatprep.subr.bf16.mxu0 0
        %4101 = vmatpush1.bf16.msra.mxu0 0
        %4102 = vmatprep.subr.bf16.mxu0 0
        %4103 = vmatpush1.bf16.msra.mxu0 0
        %4104 = vmatprep.subr.bf16.mxu0 0
        %4105 = vmatpush1.bf16.msra.mxu0 %v4090
        %4106 = vmatprep.subr.bf16.mxu0 0
        %4107 = vmatpush1.bf16.msra.mxu0 %v4083
        %4108 = vmatprep.subr.bf16.mxu0 0
        %4109 = vmatpush2.bf16.msra.mxu0 0
        %4110 = vmatprep.subr.bf16.mxu0 0
        %4111 = vmatpush2.bf16.msra.mxu0 0
        %4112 = vmatprep.subr.bf16.mxu0 0
        %4113 = vmatpush2.bf16.msra.mxu0 0
        %4114 = vmatprep.subr.bf16.mxu0 0
        %4115 = vmatpush2.bf16.msra.mxu0 0
        %4116 = vmatprep.subr.bf16.mxu0 0
        %4117 = vmatpush2.bf16.msra.mxu0 0
        %4118 = vmatprep.subr.bf16.mxu0 0
        %4119 = vmatpush2.bf16.msra.mxu0 0
        %4120 = vmatprep.subr.bf16.mxu0 0
        %4121 = vmatpush2.bf16.msra.mxu0 0
        %4122 = vmatprep.subr.bf16.mxu0 0
        %4123 = vmatpush2.bf16.msra.mxu0 0
        %4124 = vmatprep.mubr.bf16.mxu0 0
        %4125 = vmatmul.mubr.bf16.gmra.mxu0 %v4087
        %v4126 = vpop.f32.mrf.mxu0
        %v4127 = vadd.f32 0.0, %v4126
        %v4128 = vpop.f32.mrf.mxu0
        %v4129 = vpop.f32.mrf.mxu0
        %v4130 = vpop.f32.mrf.mxu0
        %4131 = vdwg.mxu0
        %v4132 = vadd.f32 %v4068, %v4127
        %s4133 = scalar_lea.vmem %s6, 176
        %v4134 = vld [vmem:[%s4133] sm:$0xf]
        %v4135 = vld [vmem:[%s4133 + $0x4] sm:$0xf]
        %v4136 = vld [vmem:[%s4133 + $0x8] sm:$0xf]
        %v4137 = vld [vmem:[%s4133 + $0xc] sm:$0x1]
        %v4138 = vrot.slane %v3437, 5
        %v4143 = vunpack.c.l.b16 %v4134
        %v4144 = vunpack.c.l.b16 %v4135
        %v4145 = vunpack.c.l.b16 %v4136
        %v4146 = vunpack.c.l.b16 %v4137
        %v4147 = vpack.c.b16 %v4144, %v4143
        %v4148 = vpack.c.b16 %v4146, %v4145
        %v4151 = vsel %vm3450, %v4138, 0
        %v4154 = vand.u32 %v4148, %v3456
        %4156 = vmatprep.subr.bf16.mxu0 0
        %4157 = vmatpush1.bf16.msra.mxu0 0
        %4158 = vmatprep.subr.bf16.mxu0 0
        %4159 = vmatpush1.bf16.msra.mxu0 0
        %4160 = vmatprep.subr.bf16.mxu0 0
        %4161 = vmatpush1.bf16.msra.mxu0 0
        %4162 = vmatprep.subr.bf16.mxu0 0
        %4163 = vmatpush1.bf16.msra.mxu0 0
        %4164 = vmatprep.subr.bf16.mxu0 0
        %4165 = vmatpush1.bf16.msra.mxu0 0
        %4166 = vmatprep.subr.bf16.mxu0 0
        %4167 = vmatpush1.bf16.msra.mxu0 0
        %4168 = vmatprep.subr.bf16.mxu0 0
        %4169 = vmatpush1.bf16.msra.mxu0 %v4154
        %4170 = vmatprep.subr.bf16.mxu0 0
        %4171 = vmatpush1.bf16.msra.mxu0 %v4147
        %4172 = vmatprep.subr.bf16.mxu0 0
        %4173 = vmatpush2.bf16.msra.mxu0 0
        %4174 = vmatprep.subr.bf16.mxu0 0
        %4175 = vmatpush2.bf16.msra.mxu0 0
        %4176 = vmatprep.subr.bf16.mxu0 0
        %4177 = vmatpush2.bf16.msra.mxu0 0
        %4178 = vmatprep.subr.bf16.mxu0 0
        %4179 = vmatpush2.bf16.msra.mxu0 0
        %4180 = vmatprep.subr.bf16.mxu0 0
        %4181 = vmatpush2.bf16.msra.mxu0 0
        %4182 = vmatprep.subr.bf16.mxu0 0
        %4183 = vmatpush2.bf16.msra.mxu0 0
        %4184 = vmatprep.subr.bf16.mxu0 0
        %4185 = vmatpush2.bf16.msra.mxu0 0
        %4186 = vmatprep.subr.bf16.mxu0 0
        %4187 = vmatpush2.bf16.msra.mxu0 0
        %4188 = vmatprep.mubr.bf16.mxu0 0
        %4189 = vmatmul.mubr.bf16.gmra.mxu0 %v4151
        %v4190 = vpop.f32.mrf.mxu0
        %v4191 = vadd.f32 0.0, %v4190
        %v4192 = vpop.f32.mrf.mxu0
        %v4193 = vpop.f32.mrf.mxu0
        %v4194 = vpop.f32.mrf.mxu0
        %4195 = vdwg.mxu0
        %v4196 = vadd.f32 %v4132, %v4191
        %s4197 = scalar_lea.vmem %s6, 192
        %v4198 = vld [vmem:[%s4197] sm:$0xf]
        %v4199 = vld [vmem:[%s4197 + $0x4] sm:$0xf]
        %v4200 = vld [vmem:[%s4197 + $0x8] sm:$0xf]
        %v4201 = vld [vmem:[%s4197 + $0xc] sm:$0x1]
        %v4202 = vrot.slane %v3426, 6
        %v4207 = vunpack.c.l.b16 %v4198
        %v4208 = vunpack.c.l.b16 %v4199
        %v4209 = vunpack.c.l.b16 %v4200
        %v4210 = vunpack.c.l.b16 %v4201
        %v4211 = vpack.c.b16 %v4208, %v4207
        %v4212 = vpack.c.b16 %v4210, %v4209
        %v4215 = vsel %vm3450, %v4202, 0
        %v4218 = vand.u32 %v4212, %v3456
        %4220 = vmatprep.subr.bf16.mxu0 0
        %4221 = vmatpush1.bf16.msra.mxu0 0
        %4222 = vmatprep.subr.bf16.mxu0 0
        %4223 = vmatpush1.bf16.msra.mxu0 0
        %4224 = vmatprep.subr.bf16.mxu0 0
        %4225 = vmatpush1.bf16.msra.mxu0 0
        %4226 = vmatprep.subr.bf16.mxu0 0
        %4227 = vmatpush1.bf16.msra.mxu0 0
        %4228 = vmatprep.subr.bf16.mxu0 0
        %4229 = vmatpush1.bf16.msra.mxu0 0
        %4230 = vmatprep.subr.bf16.mxu0 0
        %4231 = vmatpush1.bf16.msra.mxu0 0
        %4232 = vmatprep.subr.bf16.mxu0 0
        %4233 = vmatpush1.bf16.msra.mxu0 %v4218
        %4234 = vmatprep.subr.bf16.mxu0 0
        %4235 = vmatpush1.bf16.msra.mxu0 %v4211
        %4236 = vmatprep.subr.bf16.mxu0 0
        %4237 = vmatpush2.bf16.msra.mxu0 0
        %4238 = vmatprep.subr.bf16.mxu0 0
        %4239 = vmatpush2.bf16.msra.mxu0 0
        %4240 = vmatprep.subr.bf16.mxu0 0
        %4241 = vmatpush2.bf16.msra.mxu0 0
        %4242 = vmatprep.subr.bf16.mxu0 0
        %4243 = vmatpush2.bf16.msra.mxu0 0
        %4244 = vmatprep.subr.bf16.mxu0 0
        %4245 = vmatpush2.bf16.msra.mxu0 0
        %4246 = vmatprep.subr.bf16.mxu0 0
        %4247 = vmatpush2.bf16.msra.mxu0 0
        %4248 = vmatprep.subr.bf16.mxu0 0
        %4249 = vmatpush2.bf16.msra.mxu0 0
        %4250 = vmatprep.subr.bf16.mxu0 0
        %4251 = vmatpush2.bf16.msra.mxu0 0
        %4252 = vmatprep.mubr.bf16.mxu0 0
        %4253 = vmatmul.mubr.bf16.gmra.mxu0 %v4215
        %v4254 = vpop.f32.mrf.mxu0
        %v4255 = vadd.f32 0.0, %v4254
        %v4256 = vpop.f32.mrf.mxu0
        %v4257 = vpop.f32.mrf.mxu0
        %v4258 = vpop.f32.mrf.mxu0
        %4259 = vdwg.mxu0
        %v4260 = vadd.f32 %v4196, %v4255
        %s4261 = scalar_lea.vmem %s6, 208
        %v4262 = vld [vmem:[%s4261] sm:$0xf]
        %v4263 = vld [vmem:[%s4261 + $0x4] sm:$0xf]
        %v4264 = vld [vmem:[%s4261 + $0x8] sm:$0xf]
        %v4265 = vld [vmem:[%s4261 + $0xc] sm:$0x1]
        %v4266 = vrot.slane %v3437, 6
        %v4271 = vunpack.c.l.b16 %v4262
        %v4272 = vunpack.c.l.b16 %v4263
        %v4273 = vunpack.c.l.b16 %v4264
        %v4274 = vunpack.c.l.b16 %v4265
        %v4275 = vpack.c.b16 %v4272, %v4271
        %v4276 = vpack.c.b16 %v4274, %v4273
        %v4279 = vsel %vm3450, %v4266, 0
        %v4282 = vand.u32 %v4276, %v3456
        %4284 = vmatprep.subr.bf16.mxu0 0
        %4285 = vmatpush1.bf16.msra.mxu0 0
        %4286 = vmatprep.subr.bf16.mxu0 0
        %4287 = vmatpush1.bf16.msra.mxu0 0
        %4288 = vmatprep.subr.bf16.mxu0 0
        %4289 = vmatpush1.bf16.msra.mxu0 0
        %4290 = vmatprep.subr.bf16.mxu0 0
        %4291 = vmatpush1.bf16.msra.mxu0 0
        %4292 = vmatprep.subr.bf16.mxu0 0
        %4293 = vmatpush1.bf16.msra.mxu0 0
        %4294 = vmatprep.subr.bf16.mxu0 0
        %4295 = vmatpush1.bf16.msra.mxu0 0
        %4296 = vmatprep.subr.bf16.mxu0 0
        %4297 = vmatpush1.bf16.msra.mxu0 %v4282
        %4298 = vmatprep.subr.bf16.mxu0 0
        %4299 = vmatpush1.bf16.msra.mxu0 %v4275
        %4300 = vmatprep.subr.bf16.mxu0 0
        %4301 = vmatpush2.bf16.msra.mxu0 0
        %4302 = vmatprep.subr.bf16.mxu0 0
        %4303 = vmatpush2.bf16.msra.mxu0 0
        %4304 = vmatprep.subr.bf16.mxu0 0
        %4305 = vmatpush2.bf16.msra.mxu0 0
        %4306 = vmatprep.subr.bf16.mxu0 0
        %4307 = vmatpush2.bf16.msra.mxu0 0
        %4308 = vmatprep.subr.bf16.mxu0 0
        %4309 = vmatpush2.bf16.msra.mxu0 0
        %4310 = vmatprep.subr.bf16.mxu0 0
        %4311 = vmatpush2.bf16.msra.mxu0 0
        %4312 = vmatprep.subr.bf16.mxu0 0
        %4313 = vmatpush2.bf16.msra.mxu0 0
        %4314 = vmatprep.subr.bf16.mxu0 0
        %4315 = vmatpush2.bf16.msra.mxu0 0
        %4316 = vmatprep.mubr.bf16.mxu0 0
        %4317 = vmatmul.mubr.bf16.gmra.mxu0 %v4279
        %v4318 = vpop.f32.mrf.mxu0
        %v4319 = vadd.f32 0.0, %v4318
        %v4320 = vpop.f32.mrf.mxu0
        %v4321 = vpop.f32.mrf.mxu0
        %v4322 = vpop.f32.mrf.mxu0
        %4323 = vdwg.mxu0
        %v4324 = vadd.f32 %v4260, %v4319
        %s4325 = scalar_lea.vmem %s6, 224
        %v4326 = vld [vmem:[%s4325] sm:$0xf]
        %v4327 = vld [vmem:[%s4325 + $0x4] sm:$0xf]
        %v4328 = vld [vmem:[%s4325 + $0x8] sm:$0xf]
        %v4329 = vld [vmem:[%s4325 + $0xc] sm:$0x1]
        %v4330 = vrot.slane %v3426, 7
        %v4335 = vunpack.c.l.b16 %v4326
        %v4336 = vunpack.c.l.b16 %v4327
        %v4337 = vunpack.c.l.b16 %v4328
        %v4338 = vunpack.c.l.b16 %v4329
        %v4339 = vpack.c.b16 %v4336, %v4335
        %v4340 = vpack.c.b16 %v4338, %v4337
        %v4343 = vsel %vm3450, %v4330, 0
        %v4346 = vand.u32 %v4340, %v3456
        %4348 = vmatprep.subr.bf16.mxu0 0
        %4349 = vmatpush1.bf16.msra.mxu0 0
        %4350 = vmatprep.subr.bf16.mxu0 0
        %4351 = vmatpush1.bf16.msra.mxu0 0
        %4352 = vmatprep.subr.bf16.mxu0 0
        %4353 = vmatpush1.bf16.msra.mxu0 0
        %4354 = vmatprep.subr.bf16.mxu0 0
        %4355 = vmatpush1.bf16.msra.mxu0 0
        %4356 = vmatprep.subr.bf16.mxu0 0
        %4357 = vmatpush1.bf16.msra.mxu0 0
        %4358 = vmatprep.subr.bf16.mxu0 0
        %4359 = vmatpush1.bf16.msra.mxu0 0
        %4360 = vmatprep.subr.bf16.mxu0 0
        %4361 = vmatpush1.bf16.msra.mxu0 %v4346
        %4362 = vmatprep.subr.bf16.mxu0 0
        %4363 = vmatpush1.bf16.msra.mxu0 %v4339
        %4364 = vmatprep.subr.bf16.mxu0 0
        %4365 = vmatpush2.bf16.msra.mxu0 0
        %4366 = vmatprep.subr.bf16.mxu0 0
        %4367 = vmatpush2.bf16.msra.mxu0 0
        %4368 = vmatprep.subr.bf16.mxu0 0
        %4369 = vmatpush2.bf16.msra.mxu0 0
        %4370 = vmatprep.subr.bf16.mxu0 0
        %4371 = vmatpush2.bf16.msra.mxu0 0
        %4372 = vmatprep.subr.bf16.mxu0 0
        %4373 = vmatpush2.bf16.msra.mxu0 0
        %4374 = vmatprep.subr.bf16.mxu0 0
        %4375 = vmatpush2.bf16.msra.mxu0 0
        %4376 = vmatprep.subr.bf16.mxu0 0
        %4377 = vmatpush2.bf16.msra.mxu0 0
        %4378 = vmatprep.subr.bf16.mxu0 0
        %4379 = vmatpush2.bf16.msra.mxu0 0
        %4380 = vmatprep.mubr.bf16.mxu0 0
        %4381 = vmatmul.mubr.bf16.gmra.mxu0 %v4343
        %v4382 = vpop.f32.mrf.mxu0
        %v4383 = vadd.f32 0.0, %v4382
        %v4384 = vpop.f32.mrf.mxu0
        %v4385 = vpop.f32.mrf.mxu0
        %v4386 = vpop.f32.mrf.mxu0
        %4387 = vdwg.mxu0
        %v4388 = vadd.f32 %v4324, %v4383
        %s4389 = scalar_lea.vmem %s6, 240
        %v4390 = vld [vmem:[%s4389] sm:$0xf]
        %v4391 = vld [vmem:[%s4389 + $0x4] sm:$0xf]
        %v4392 = vld [vmem:[%s4389 + $0x8] sm:$0xf]
        %v4393 = vld [vmem:[%s4389 + $0xc] sm:$0x1]
        %v4394 = vrot.slane %v3437, 7
        %v4399 = vunpack.c.l.b16 %v4390
        %v4400 = vunpack.c.l.b16 %v4391
        %v4401 = vunpack.c.l.b16 %v4392
        %v4402 = vunpack.c.l.b16 %v4393
        %v4403 = vpack.c.b16 %v4400, %v4399
        %v4404 = vpack.c.b16 %v4402, %v4401
        %v4407 = vsel %vm3450, %v4394, 0
        %v4410 = vand.u32 %v4404, %v3456
        %4412 = vmatprep.subr.bf16.mxu0 0
        %4413 = vmatpush1.bf16.msra.mxu0 0
        %4414 = vmatprep.subr.bf16.mxu0 0
        %4415 = vmatpush1.bf16.msra.mxu0 0
        %4416 = vmatprep.subr.bf16.mxu0 0
        %4417 = vmatpush1.bf16.msra.mxu0 0
        %4418 = vmatprep.subr.bf16.mxu0 0
        %4419 = vmatpush1.bf16.msra.mxu0 0
        %4420 = vmatprep.subr.bf16.mxu0 0
        %4421 = vmatpush1.bf16.msra.mxu0 0
        %4422 = vmatprep.subr.bf16.mxu0 0
        %4423 = vmatpush1.bf16.msra.mxu0 0
        %4424 = vmatprep.subr.bf16.mxu0 0
        %4425 = vmatpush1.bf16.msra.mxu0 %v4410
        %4426 = vmatprep.subr.bf16.mxu0 0
        %4427 = vmatpush1.bf16.msra.mxu0 %v4403
        %4428 = vmatprep.subr.bf16.mxu0 0
        %4429 = vmatpush2.bf16.msra.mxu0 0
        %4430 = vmatprep.subr.bf16.mxu0 0
        %4431 = vmatpush2.bf16.msra.mxu0 0
        %4432 = vmatprep.subr.bf16.mxu0 0
        %4433 = vmatpush2.bf16.msra.mxu0 0
        %4434 = vmatprep.subr.bf16.mxu0 0
        %4435 = vmatpush2.bf16.msra.mxu0 0
        %4436 = vmatprep.subr.bf16.mxu0 0
        %4437 = vmatpush2.bf16.msra.mxu0 0
        %4438 = vmatprep.subr.bf16.mxu0 0
        %4439 = vmatpush2.bf16.msra.mxu0 0
        %4440 = vmatprep.subr.bf16.mxu0 0
        %4441 = vmatpush2.bf16.msra.mxu0 0
        %4442 = vmatprep.subr.bf16.mxu0 0
        %4443 = vmatpush2.bf16.msra.mxu0 0
        %4444 = vmatprep.mubr.bf16.mxu0 0
        %4445 = vmatmul.mubr.bf16.gmra.mxu0 %v4407
        %v4446 = vpop.f32.mrf.mxu0
        %v4447 = vadd.f32 0.0, %v4446
        %v4448 = vpop.f32.mrf.mxu0
        %v4449 = vpop.f32.mrf.mxu0
        %v4450 = vpop.f32.mrf.mxu0
        %4451 = vdwg.mxu0
        %v4452 = vadd.f32 %v4388, %v4447
        %v4453 = vld [vmem:[%s7] sm:$0x1]
        %v4454 = vadd.f32 %v4452, %v4453
        %v4455 = vmax.f32 %v4454, 0.0
        %v4456 = vpack.c.bf16 %v4455, %v4455
        %v4457 = vld [vmem:[%s8] sm:$0xf]
        %v4458 = vld [vmem:[%s8 + $0x4] sm:$0xf]
        %v4459 = vld [vmem:[%s8 + $0x8] sm:$0xf]
        %v4460 = vld [vmem:[%s8 + $0xc] sm:$0xf]
        %v4461 = vld [vmem:[%s8 + $0x10] sm:$0xf]
        %v4462 = vld [vmem:[%s8 + $0x14] sm:$0xf]
        %v4463 = vld [vmem:[%s8 + $0x18] sm:$0xf]
        %v4464 = vld [vmem:[%s8 + $0x1c] sm:$0xf]
        %v4465 = vld [vmem:[%s8 + $0x20] sm:$0xf]
        %v4466 = vld [vmem:[%s8 + $0x24] sm:$0xf]
        %v4467 = vld [vmem:[%s8 + $0x28] sm:$0xf]
        %v4468 = vld [vmem:[%s8 + $0x2c] sm:$0xf]
        %v4469 = vld [vmem:[%s8 + $0x30] sm:$0xf]
        %v4470 = vld [vmem:[%s8 + $0x34] sm:$0xf]
        %v4471 = vld [vmem:[%s8 + $0x38] sm:$0xf]
        %v4472 = vld [vmem:[%s9] sm:$0x1]
        %v4488 = vunpack.c.l.b16 %v4457
        %v4489 = vunpack.c.l.b16 %v4458
        %v4490 = vunpack.c.l.b16 %v4459
        %v4491 = vunpack.c.l.b16 %v4460
        %v4492 = vunpack.c.l.b16 %v4461
        %v4493 = vunpack.c.l.b16 %v4462
        %v4494 = vunpack.c.l.b16 %v4463
        %v4495 = vunpack.c.l.b16 %v4464
        %v4496 = vunpack.c.l.b16 %v4465
        %v4497 = vunpack.c.l.b16 %v4466
        %v4498 = vunpack.c.l.b16 %v4467
        %v4499 = vunpack.c.l.b16 %v4468
        %v4500 = vunpack.c.l.b16 %v4469
        %v4501 = vunpack.c.l.b16 %v4470
        %v4502 = vunpack.c.l.b16 %v4471
        %v4503 = vpack.c.b16 %v4489, %v4488
        %v4504 = vpack.c.b16 %v4491, %v4490
        %v4505 = vpack.c.b16 %v4493, %v4492
        %v4506 = vpack.c.b16 %v4495, %v4494
        %v4507 = vpack.c.b16 %v4497, %v4496
        %v4508 = vpack.c.b16 %v4499, %v4498
        %v4509 = vpack.c.b16 %v4501, %v4500
        %v4510 = vpack.c.b16 %v4502, %v4502
        %vm4518 = vcmask 982016
        %v4520 = vsel %vm4518, %v4456, 0
        %v4523 = vsel %vm1580, %v4510, 0
        %4525 = vmatprep.subr.bf16.mxu0 0
        %4526 = vmatpush1.bf16.msra.mxu0 %v4523
        %4527 = vmatprep.subr.bf16.mxu0 0
        %4528 = vmatpush1.bf16.msra.mxu0 %v4509
        %4529 = vmatprep.subr.bf16.mxu0 0
        %4530 = vmatpush1.bf16.msra.mxu0 %v4508
        %4531 = vmatprep.subr.bf16.mxu0 0
        %4532 = vmatpush1.bf16.msra.mxu0 %v4507
        %4533 = vmatprep.subr.bf16.mxu0 0
        %4534 = vmatpush1.bf16.msra.mxu0 %v4506
        %4535 = vmatprep.subr.bf16.mxu0 0
        %4536 = vmatpush1.bf16.msra.mxu0 %v4505
        %4537 = vmatprep.subr.bf16.mxu0 0
        %4538 = vmatpush1.bf16.msra.mxu0 %v4504
        %4539 = vmatprep.subr.bf16.mxu0 0
        %4540 = vmatpush1.bf16.msra.mxu0 %v4503
        %4541 = vmatprep.subr.bf16.mxu0 0
        %4542 = vmatpush2.bf16.msra.mxu0 0
        %4543 = vmatprep.subr.bf16.mxu0 0
        %4544 = vmatpush2.bf16.msra.mxu0 0
        %4545 = vmatprep.subr.bf16.mxu0 0
        %4546 = vmatpush2.bf16.msra.mxu0 0
        %4547 = vmatprep.subr.bf16.mxu0 0
        %4548 = vmatpush2.bf16.msra.mxu0 0
        %4549 = vmatprep.subr.bf16.mxu0 0
        %4550 = vmatpush2.bf16.msra.mxu0 0
        %4551 = vmatprep.subr.bf16.mxu0 0
        %4552 = vmatpush2.bf16.msra.mxu0 0
        %4553 = vmatprep.subr.bf16.mxu0 0
        %4554 = vmatpush2.bf16.msra.mxu0 0
        %4555 = vmatprep.subr.bf16.mxu0 0
        %4556 = vmatpush2.bf16.msra.mxu0 0
        %4557 = vmatprep.mubr.bf16.mxu0 0
        %4558 = vmatmul.mubr.bf16.gmra.mxu0 %v4520
        %v4559 = vpop.f32.mrf.mxu0
        %v4560 = vadd.f32 %v4472, %v4559
        %v4561 = vpop.f32.mrf.mxu0
        %v4562 = vpop.f32.mrf.mxu0
        %v4563 = vpop.f32.mrf.mxu0
        %4564 = vdwg.mxu0
        %v4565 = vmax.f32 %v4560, 0.0
        %v4566 = vpack.c.bf16 %v4565, %v4565
        %v4567 = vld [vmem:[%s10] sm:$0xf]
        %v4568 = vld [vmem:[%s10 + $0x4] sm:$0xf]
        %v4569 = vld [vmem:[%s10 + $0x8] sm:$0xf]
        %v4570 = vld [vmem:[%s10 + $0xc] sm:$0xf]
        %v4571 = vld [vmem:[%s10 + $0x10] sm:$0xf]
        %v4572 = vld [vmem:[%s10 + $0x14] sm:$0xf]
        %v4573 = vld [vmem:[%s10 + $0x18] sm:$0xf]
        %v4574 = vld [vmem:[%s10 + $0x1c] sm:$0xf]
        %v4575 = vld [vmem:[%s10 + $0x20] sm:$0xf]
        %v4576 = vld [vmem:[%s10 + $0x24] sm:$0xf]
        %v4577 = vld [vmem:[%s10 + $0x28] sm:$0x3]
        %v4578 = vld [vmem:[%s11] sm:$0x1]
        %v4590 = vunpack.c.l.b16 %v4567
        %v4591 = vunpack.c.l.b16 %v4568
        %v4592 = vunpack.c.l.b16 %v4569
        %v4593 = vunpack.c.l.b16 %v4570
        %v4594 = vunpack.c.l.b16 %v4571
        %v4595 = vunpack.c.l.b16 %v4572
        %v4596 = vunpack.c.l.b16 %v4573
        %v4597 = vunpack.c.l.b16 %v4574
        %v4598 = vunpack.c.l.b16 %v4575
        %v4599 = vunpack.c.l.b16 %v4576
        %v4600 = vunpack.c.l.b16 %v4577
        %v4601 = vpack.c.b16 %v4591, %v4590
        %v4602 = vpack.c.b16 %v4593, %v4592
        %v4603 = vpack.c.b16 %v4595, %v4594
        %v4604 = vpack.c.b16 %v4597, %v4596
        %v4605 = vpack.c.b16 %v4599, %v4598
        %v4606 = vpack.c.b16 %v4600, %v4600
        %vm4612 = vcmask 687104
        %v4614 = vsel %vm4612, %v4566, 0
        %vm4616 = vcmask 1041408
        %v4618 = vsel %vm4616, %v4606, 0
        %4620 = vmatprep.subr.bf16.mxu0 0
        %4621 = vmatpush1.bf16.msra.mxu0 0
        %4622 = vmatprep.subr.bf16.mxu0 0
        %4623 = vmatpush1.bf16.msra.mxu0 0
        %4624 = vmatprep.subr.bf16.mxu0 0
        %4625 = vmatpush1.bf16.msra.mxu0 %v4618
        %4626 = vmatprep.subr.bf16.mxu0 0
        %4627 = vmatpush1.bf16.msra.mxu0 %v4605
        %4628 = vmatprep.subr.bf16.mxu0 0
        %4629 = vmatpush1.bf16.msra.mxu0 %v4604
        %4630 = vmatprep.subr.bf16.mxu0 0
        %4631 = vmatpush1.bf16.msra.mxu0 %v4603
        %4632 = vmatprep.subr.bf16.mxu0 0
        %4633 = vmatpush1.bf16.msra.mxu0 %v4602
        %4634 = vmatprep.subr.bf16.mxu0 0
        %4635 = vmatpush1.bf16.msra.mxu0 %v4601
        %4636 = vmatprep.subr.bf16.mxu0 0
        %4637 = vmatpush2.bf16.msra.mxu0 0
        %4638 = vmatprep.subr.bf16.mxu0 0
        %4639 = vmatpush2.bf16.msra.mxu0 0
        %4640 = vmatprep.subr.bf16.mxu0 0
        %4641 = vmatpush2.bf16.msra.mxu0 0
        %4642 = vmatprep.subr.bf16.mxu0 0
        %4643 = vmatpush2.bf16.msra.mxu0 0
        %4644 = vmatprep.subr.bf16.mxu0 0
        %4645 = vmatpush2.bf16.msra.mxu0 0
        %4646 = vmatprep.subr.bf16.mxu0 0
        %4647 = vmatpush2.bf16.msra.mxu0 0
        %4648 = vmatprep.subr.bf16.mxu0 0
        %4649 = vmatpush2.bf16.msra.mxu0 0
        %4650 = vmatprep.subr.bf16.mxu0 0
        %4651 = vmatpush2.bf16.msra.mxu0 0
        %4652 = vmatprep.mubr.bf16.mxu0 0
        %4653 = vmatmul.mubr.bf16.gmra.mxu0 %v4614
        %v4654 = vpop.f32.mrf.mxu0
        %v4655 = vadd.f32 %v4578, %v4654
        %v4656 = vpop.f32.mrf.mxu0
        %v4657 = vpop.f32.mrf.mxu0
        %v4658 = vpop.f32.mrf.mxu0
        %4659 = vdwg.mxu0
        %vm4660 = vcmask 73728
        %4661 = vst.msk [vmem:[%s405] sm:$0x1] %vm4660, %v4655
        %s4662 = sand.u32 %s291, 1
        %s4663 = scalar_lea.sflag [#allocation5], %s4662
        %s4664 = sand.u32 %s291, 1
        %s4665 = scalar_lea.vmem [#allocation4], %s4664
        // Predicated region
        $region69: #{cnn_forward.1} parent=67 // pred_check
          %p4666 = pneg %p301
        $region70: #{cnn_forward.1} parent=67 // pred_check_branch
          %4668 = sbr.rel (%p4666) target = $region72
        $region71: #{cnn_forward.1} parent=67 // pred_region
          %s4670 = ssub.s32 16, 16
          %4671 = vsyncadd %s4663, %s4670
          %s4672 = smul.addr %s26, 16
          %s4673 = scalar_lea.hbm %s12, %s4672
          %s4675 = sshll.u32 %s4665, 4
          %s4676 = int_to_ptr.vmem [resolvable:$true] %s4675
          %4678 = dma.vmem_to_hbm [thread:$0]  %s4676, 16, %s4673, %s4663
        $region72: #{cnn_forward.1} parent=67 // pred_fallthru
          _
      $region68: #{cnn_forward.1} parent=5 // pred_fallthru
        _
      %p4679 = scmp.le.s32.totalorder 2, %s21
      // Predicated region
      $region73: #{cnn_forward.1} parent=5 // pred_check
        %p4680 = pneg %p4679
      $region74: #{cnn_forward.1} parent=5 // pred_check_branch
        %4682 = sbr.rel (%p4680) target = $region76
      $region75: #{cnn_forward.1} parent=5 // pred_region
        %s4683 = ssub.s32 %s21, 2
        // Predicated region
        $region77: #{cnn_forward.1} parent=75 // pred_check
          %p4684 = pneg %p307
        $region78: #{cnn_forward.1} parent=75 // pred_check_branch
          %4686 = sbr.rel (%p4684) target = $region80
        $region79: #{cnn_forward.1} parent=75 // pred_region
          %s4687 = sand.u32 %s292, 1
          %s4688 = scalar_lea.sflag [#allocation5], %s4687
          %s4689 = sand.u32 %s292, 1
          %s4690 = scalar_lea.vmem [#allocation4], %s4689
          %4691 = dma.done %s4688, 16
        $region80: #{cnn_forward.1} parent=75 // pred_fallthru
          _
      $region76: #{cnn_forward.1} parent=5 // pred_fallthru
        _
    $region6: #{cnn_forward.1} parent=1 // loop_footer
      %s25 = sadd.s32 1, %s21
    $region7: #{cnn_forward.1} parent=1 // loop_footer_branch
      %20 = sbr.rel target = $region3
    $region8: #{cnn_forward.1} parent=1 // loop_exit
      _
    %4692 = vsyncpa [#allocation5], 1
    %s4693 = scalar_lea.sflag [#allocation5], 1
    %4694 = vsyncpa %s4693, 1

</llo_original>
